<compile_context>
chip_gen: v6e
topology: v6e:2x2x1
jax: 0.10.0
libtpu: 0.0.40
codegen_flags: <defaults>
</compile_context>

<pallas_src>
import jax
import jax.numpy as jnp
from jax.experimental import pallas as pl
from jax.experimental.pallas import tpu as pltpu


def _self_attention_kernel(x_q_ref, x_kv_ref, wq_ref, bq_ref, wkv_ref, bkv_ref,
                           o_ref, q_scr, m_scr, l_scr, acc_scr):
    """One (batch-tile, kv-tile) grid step of online-softmax self attention."""
    kv = pl.program_id(1)
    TB, S, D = x_q_ref.shape
    TK = x_kv_ref.shape[1]

    # ---- per-batch-tile init (first KV step): Q projection + running stats ----
    @pl.when(kv == 0)
    def _init():
        xq = x_q_ref[...].reshape(TB * S, D).astype(wq_ref.dtype)
        q = jnp.dot(xq, wq_ref[...], preferred_element_type=jnp.float32)
        q = q + bq_ref[...]                               # bias stays f32
        q_scr[...] = q.reshape(TB, S, D).astype(q_scr.dtype)
        m_scr[...] = jnp.full(m_scr.shape, -jnp.inf, dtype=m_scr.dtype)
        l_scr[...] = jnp.zeros(l_scr.shape, dtype=l_scr.dtype)
        acc_scr[...] = jnp.zeros(acc_scr.shape, dtype=acc_scr.dtype)

    # ---- fused K|V projection for this KV tile: one (TB*TK, D)@(D, 2D) pass ----
    xkv = x_kv_ref[...].reshape(TB * TK, D).astype(wkv_ref.dtype)
    kvp = jnp.dot(xkv, wkv_ref[...], preferred_element_type=jnp.float32)
    kvp = kvp + bkv_ref[...]
    k_t = kvp[:, :D].reshape(TB, TK, D).astype(q_scr.dtype)
    v_t = kvp[:, D:].reshape(TB, TK, D).astype(q_scr.dtype)

    # ---- online softmax update (statistics in f32) ----
    # NOTE: no 1/sqrt(D) scale — the PyTorch module does raw Q.bmm(K^T).
    # The bkd-contraction may emit a per-tile K relayout; K changes every KV
    # step anyway, so it is amortised over the whole (S, TK) score tile.
    s = jnp.einsum("bqd,bkd->bqk", q_scr[...], k_t,
                   preferred_element_type=jnp.float32)            # (TB, S, TK)
    m_prev = m_scr[...]
    m_new = jnp.maximum(m_prev, jnp.max(s, axis=-1, keepdims=True))
    alpha = jnp.exp(m_prev - m_new)                               # 0 on step 0
    p = jnp.exp(s - m_new)
    l_scr[...] = alpha * l_scr[...] + jnp.sum(p, axis=-1, keepdims=True)
    acc_scr[...] = alpha * acc_scr[...] + jnp.einsum(
        "bqk,bkd->bqd", p.astype(v_t.dtype), v_t,
        preferred_element_type=jnp.float32)
    m_scr[...] = m_new

    # ---- finalize: normalize + AdaptiveMaxPool1d(1) over the sequence axis ----
    @pl.when(kv == pl.num_programs(1) - 1)
    def _finalize():
        out = acc_scr[...] / l_scr[...]       # exact division (tight f32 path)
        o_ref[...] = jnp.max(out, axis=1).astype(o_ref.dtype)


def prepare_params(wq, bq, wk, bk, wv, bv, compute_dtype=jnp.bfloat16):
    """One-time parameter prep, hoisted out of the per-call path.

    PyTorch nn.Linear stores weight as (out_features, in_features); transpose
    to (in, out) so the kernel never transposes, and fuse K|V into one (D, 2D)
    weight so each KV tile needs a single MXU pass.  Matmul operands are cast
    to `compute_dtype` (bf16 for MXU peak & halved DMA); biases stay f32.
    """
    wq_t = jnp.asarray(wq).T.astype(compute_dtype)
    wkv = jnp.concatenate([jnp.asarray(wk).T, jnp.asarray(wv).T],
                          axis=1).astype(compute_dtype)
    bq2 = jnp.asarray(bq).reshape(1, -1).astype(jnp.float32)
    bkv = jnp.concatenate([jnp.asarray(bk), jnp.asarray(bv)]
                          ).reshape(1, -1).astype(jnp.float32)
    return wq_t, bq2, wkv, bkv


def self_attention(x, params, *, block_b=None, block_k=None):
    """x: (B, S, D) with D = hidden_dim*2; params from prepare_params()."""
    wq_t, bq, wkv, bkv = params
    B, S, D = x.shape
    compute_dtype = wq_t.dtype

    if block_b is None:
        block_b = 8 if B % 8 == 0 else B
    if block_k is None:
        block_k = 32 if S % 32 == 0 else S
    assert B % block_b == 0, (B, block_b)
    assert S % block_k == 0, (S, block_k)

    # Pass activations in the compute dtype (halves x DMA on the bf16 path).
    x = x.astype(compute_dtype)
    grid = (B // block_b, S // block_k)

    return pl.pallas_call(
        _self_attention_kernel,
        out_shape=jax.ShapeDtypeStruct((B, D), jnp.float32),
        grid_spec=pltpu.PrefetchScalarGridSpec(
            num_scalar_prefetch=0,
            grid=grid,
            in_specs=[
                # full-sequence x for the Q projection: resident per batch tile
                pl.BlockSpec((block_b, S, D), lambda b, k: (b, 0, 0)),
                # streamed x tile for the K/V projection of this KV step
                pl.BlockSpec((block_b, block_k, D), lambda b, k: (b, k, 0)),
                # grid-invariant fused weights / biases: DMA'd once, resident
                pl.BlockSpec((D, D), lambda b, k: (0, 0)),
                pl.BlockSpec((1, D), lambda b, k: (0, 0)),
                pl.BlockSpec((D, 2 * D), lambda b, k: (0, 0)),
                pl.BlockSpec((1, 2 * D), lambda b, k: (0, 0)),
            ],
            out_specs=pl.BlockSpec((block_b, D), lambda b, k: (b, 0)),
            scratch_shapes=[
                pltpu.VMEM((block_b, S, D), compute_dtype),   # Q
                pltpu.VMEM((block_b, S, 1), jnp.float32),     # running max m
                pltpu.VMEM((block_b, S, 1), jnp.float32),     # running denom l
                pltpu.VMEM((block_b, S, D), jnp.float32),     # output accum
            ],
        ),
        compiler_params=pltpu.CompilerParams(
            dimension_semantics=("parallel", "arbitrary")),
    )(x, x, wq_t, bq, wkv, bkv)


def reference(x, wq, bq, wk, bk, wv, bv):
    """Pure-JAX reference matching the PyTorch forward pass exactly."""
    Q = jnp.einsum("bsd,ed->bse", x, wq) + bq
    K = jnp.einsum("bsd,ed->bse", x, wk) + bk
    V = jnp.einsum("bsd,ed->bse", x, wv) + bv
    scores = jax.nn.softmax(jnp.einsum("bqd,bkd->bqk", Q, K), axis=2)
    out = jnp.einsum("bqk,bkd->bqd", scores, V)
    return jnp.max(out, axis=1)   # AdaptiveMaxPool1d(1) over seq, squeezed


if __name__ == "__main__":
    # Small shapes consistent with the module: feature dim D = hidden_dim*2 = 128
    # (one full lane); B/S sized so both grid axes have >1 step.
    hidden_dim = 64
    D = hidden_dim * 2            # 128
    B, S = 16, 64                 # grid = (2 batch tiles, 2 KV tiles)

    key = jax.random.PRNGKey(0)
    kx, kq, kbq, kk, kbk, kv, kbv = jax.random.split(key, 7)
    x = jax.random.normal(kx, (B, S, D), dtype=jnp.float32)

    # nn.Linear default init scale ~ 1/sqrt(in_features); deterministic & small.
    scale = 1.0 / jnp.sqrt(jnp.float32(D))
    wq = jax.random.uniform(kq, (D, D), jnp.float32, -scale, scale)
    bq = jax.random.uniform(kbq, (D,), jnp.float32, -scale, scale)
    wk = jax.random.uniform(kk, (D, D), jnp.float32, -scale, scale)
    bk = jax.random.uniform(kbk, (D,), jnp.float32, -scale, scale)
    wv = jax.random.uniform(kv, (D, D), jnp.float32, -scale, scale)
    bv = jax.random.uniform(kbv, (D,), jnp.float32, -scale, scale)

    ref = reference(x, wq, bq, wk, bk, wv, bv)
    attn = jax.jit(self_attention)

    # 1) f32 compute path: exact module semantics, tight tolerance.
    params_f32 = prepare_params(wq, bq, wk, bk, wv, bv, compute_dtype=jnp.float32)
    out_f32 = jax.block_until_ready(attn(x, params_f32))
    assert out_f32.shape == (B, D), out_f32.shape
    assert jnp.allclose(out_f32, ref, atol=5e-3, rtol=5e-3), \
        float(jnp.max(jnp.abs(out_f32 - ref)))

    # 2) bf16 MXU-operand perf path: f32 accumulation and f32 softmax keep the
    #    error to operand rounding only; logits are unscaled (no 1/sqrt(D), as
    #    in the module), so tolerance is correspondingly relaxed.
    params_bf16 = prepare_params(wq, bq, wk, bk, wv, bv, compute_dtype=jnp.bfloat16)
    out_bf16 = jax.block_until_ready(attn(x, params_bf16))
    assert out_bf16.shape == (B, D), out_bf16.shape
    assert jnp.allclose(out_bf16, ref, atol=1e-1, rtol=5e-2), \
        float(jnp.max(jnp.abs(out_bf16 - ref)))

    print("KERNEL_OK")
</pallas_src>

<mosaic_0001>
module attributes {stable_mosaic.version = 11 : i64} {
  func.func @_self_attention_kernel(%arg0: i32, %arg1: i32, %arg2: memref<8x64x128xf32, #tpu.memory_space<vmem>>, %arg3: memref<8x32x128xf32, #tpu.memory_space<vmem>>, %arg4: memref<128x128xf32, #tpu.memory_space<vmem>>, %arg5: memref<1x128xf32, #tpu.memory_space<vmem>>, %arg6: memref<128x256xf32, #tpu.memory_space<vmem>>, %arg7: memref<1x256xf32, #tpu.memory_space<vmem>>, %arg8: memref<8x128xf32, #tpu.memory_space<vmem>>, %arg9: memref<8x64x128xf32, #tpu.memory_space<vmem>>, %arg10: memref<8x64x1xf32, #tpu.memory_space<vmem>>, %arg11: memref<8x64x1xf32, #tpu.memory_space<vmem>>, %arg12: memref<8x64x128xf32, #tpu.memory_space<vmem>>) attributes {dimension_semantics = [#tpu.dimension_semantics<parallel>, #tpu.dimension_semantics<arbitrary>], iteration_bounds = array<i64: 2, 2>, scalar_prefetch = 0 : i64, scratch_operands = 4 : i64, tpu.core_type = #tpu.core_type<tc>, window_params = [{transform_indices = @transform_0, window_bounds = array<i64: 8, 64, 128>}, {transform_indices = @transform_1, window_bounds = array<i64: 8, 32, 128>}, {pipeline_mode = #tpu.pipeline_mode<synchronous>, transform_indices = @transform_2, window_bounds = array<i64: 128, 128>}, {pipeline_mode = #tpu.pipeline_mode<synchronous>, transform_indices = @transform_3, window_bounds = array<i64: 1, 128>}, {pipeline_mode = #tpu.pipeline_mode<synchronous>, transform_indices = @transform_4, window_bounds = array<i64: 128, 256>}, {pipeline_mode = #tpu.pipeline_mode<synchronous>, transform_indices = @transform_5, window_bounds = array<i64: 1, 256>}, {transform_indices = @transform_6, window_bounds = array<i64: 8, 128>}]} {
    %c0_i32 = arith.constant 0 : i32
    %0 = arith.cmpi eq, %arg1, %c0_i32 : i32
    %1 = arith.extui %0 : i1 to i32
    %c0_i32_0 = arith.constant 0 : i32
    %2 = arith.cmpi ne, %1, %c0_i32_0 : i32
    scf.if %2 {
      %c0_33 = arith.constant 0 : index
      %c0_34 = arith.constant 0 : index
      %c0_35 = arith.constant 0 : index
      %41 = vector.load %arg2[%c0_33, %c0_34, %c0_35] : memref<8x64x128xf32, #tpu.memory_space<vmem>>, vector<8x64x128xf32>
      %42 = vector.shape_cast %41 : vector<8x64x128xf32> to vector<512x128xf32>
      %c0_36 = arith.constant 0 : index
      %c0_37 = arith.constant 0 : index
      %43 = vector.load %arg4[%c0_36, %c0_37] : memref<128x128xf32, #tpu.memory_space<vmem>>, vector<128x128xf32>
      %cst_38 = arith.constant dense<0.000000e+00> : vector<512x128xf32>
      %44 = tpu.matmul %42, %43, %cst_38 {dimension_numbers = #tpu.dot_dimension_numbers<[1], [0], [0], [1], [0, 0, 1, 1], [], []>} : vector<512x128xf32>, vector<128x128xf32>, vector<512x128xf32> -> vector<512x128xf32>
      %c0_39 = arith.constant 0 : index
      %c0_40 = arith.constant 0 : index
      %45 = vector.load %arg5[%c0_39, %c0_40] : memref<1x128xf32, #tpu.memory_space<vmem>>, vector<1x128xf32>
      %46 = vector.broadcast %45 : vector<1x128xf32> to vector<512x128xf32>
      %47 = arith.addf %44, %46 : vector<512x128xf32>
      %48 = vector.shape_cast %47 : vector<512x128xf32> to vector<8x64x128xf32>
      %c0_41 = arith.constant 0 : index
      %c0_42 = arith.constant 0 : index
      %c0_43 = arith.constant 0 : index
      %49 = vector.load %arg9[%c0_41, %c0_42, %c0_43] : memref<8x64x128xf32, #tpu.memory_space<vmem>>, vector<8x64x128xf32>
      tpu.vector_store %arg9[%c0_41, %c0_42, %c0_43], %48 {strides = array<i32>} : memref<8x64x128xf32, #tpu.memory_space<vmem>>, vector<8x64x128xf32>,
      %cst_44 = arith.constant 0xFF800000 : f32
      %50 = vector.broadcast %cst_44 : f32 to vector<8x64x1xf32>
      %c0_45 = arith.constant 0 : index
      %c0_46 = arith.constant 0 : index
      %c0_47 = arith.constant 0 : index
      %51 = vector.load %arg10[%c0_45, %c0_46, %c0_47] : memref<8x64x1xf32, #tpu.memory_space<vmem>>, vector<8x64x1xf32>
      tpu.vector_store %arg10[%c0_45, %c0_46, %c0_47], %50 {strides = array<i32>} : memref<8x64x1xf32, #tpu.memory_space<vmem>>, vector<8x64x1xf32>,
      %cst_48 = arith.constant 0.000000e+00 : f32
      %52 = vector.broadcast %cst_48 : f32 to vector<8x64x1xf32>
      %c0_49 = arith.constant 0 : index
      %c0_50 = arith.constant 0 : index
      %c0_51 = arith.constant 0 : index
      %53 = vector.load %arg11[%c0_49, %c0_50, %c0_51] : memref<8x64x1xf32, #tpu.memory_space<vmem>>, vector<8x64x1xf32>
      tpu.vector_store %arg11[%c0_49, %c0_50, %c0_51], %52 {strides = array<i32>} : memref<8x64x1xf32, #tpu.memory_space<vmem>>, vector<8x64x1xf32>,
      %cst_52 = arith.constant 0.000000e+00 : f32
      %54 = vector.broadcast %cst_52 : f32 to vector<8x64x128xf32>
      %c0_53 = arith.constant 0 : index
      %c0_54 = arith.constant 0 : index
      %c0_55 = arith.constant 0 : index
      %55 = vector.load %arg12[%c0_53, %c0_54, %c0_55] : memref<8x64x128xf32, #tpu.memory_space<vmem>>, vector<8x64x128xf32>
      tpu.vector_store %arg12[%c0_53, %c0_54, %c0_55], %54 {strides = array<i32>} : memref<8x64x128xf32, #tpu.memory_space<vmem>>, vector<8x64x128xf32>,
    } else {
    }
    %c0 = arith.constant 0 : index
    %c0_1 = arith.constant 0 : index
    %c0_2 = arith.constant 0 : index
    %3 = vector.load %arg3[%c0, %c0_1, %c0_2] : memref<8x32x128xf32, #tpu.memory_space<vmem>>, vector<8x32x128xf32>
    %4 = vector.shape_cast %3 : vector<8x32x128xf32> to vector<256x128xf32>
    %c0_3 = arith.constant 0 : index
    %c0_4 = arith.constant 0 : index
    %5 = vector.load %arg6[%c0_3, %c0_4] : memref<128x256xf32, #tpu.memory_space<vmem>>, vector<128x256xf32>
    %cst = arith.constant dense<0.000000e+00> : vector<256x256xf32>
    %6 = tpu.matmul %4, %5, %cst {dimension_numbers = #tpu.dot_dimension_numbers<[1], [0], [0], [1], [0, 0, 1, 1], [], []>} : vector<256x128xf32>, vector<128x256xf32>, vector<256x256xf32> -> vector<256x256xf32>
    %c0_5 = arith.constant 0 : index
    %c0_6 = arith.constant 0 : index
    %7 = vector.load %arg7[%c0_5, %c0_6] : memref<1x256xf32, #tpu.memory_space<vmem>>, vector<1x256xf32>
    %8 = vector.broadcast %7 : vector<1x256xf32> to vector<256x256xf32>
    %9 = arith.addf %6, %8 : vector<256x256xf32>
    %10 = vector.extract_strided_slice %9 {offsets = [0, 0], sizes = [256, 128], strides = [1, 1]} : vector<256x256xf32> to vector<256x128xf32>
    %11 = vector.shape_cast %10 : vector<256x128xf32> to vector<8x32x128xf32>
    %12 = vector.extract_strided_slice %9 {offsets = [0, 128], sizes = [256, 128], strides = [1, 1]} : vector<256x256xf32> to vector<256x128xf32>
    %13 = vector.shape_cast %12 : vector<256x128xf32> to vector<8x32x128xf32>
    %c0_7 = arith.constant 0 : index
    %c0_8 = arith.constant 0 : index
    %c0_9 = arith.constant 0 : index
    %14 = vector.load %arg9[%c0_7, %c0_8, %c0_9] : memref<8x64x128xf32, #tpu.memory_space<vmem>>, vector<8x64x128xf32>
    "tpu.trace_start"() <{level = 10 : i32, message = "bqd,bkd->bqk"}> : () -> ()
    %cst_10 = arith.constant dense<0.000000e+00> : vector<8x64x32xf32>
    %15 = tpu.matmul %14, %11, %cst_10 {dimension_numbers = #tpu.dot_dimension_numbers<[2], [2], [1], [1], [0, 0, 0, 1, 1, 1], [0], [0]>} : vector<8x64x128xf32>, vector<8x32x128xf32>, vector<8x64x32xf32> -> vector<8x64x32xf32>
    "tpu.trace_stop"() : () -> ()
    %c0_11 = arith.constant 0 : index
    %c0_12 = arith.constant 0 : index
    %c0_13 = arith.constant 0 : index
    %16 = vector.load %arg10[%c0_11, %c0_12, %c0_13] : memref<8x64x1xf32, #tpu.memory_space<vmem>>, vector<8x64x1xf32>
    %cst_14 = arith.constant dense<0xFF800000> : vector<8x64xf32>
    %17 = vector.multi_reduction <maximumf>, %15, %cst_14 [2] : vector<8x64x32xf32> to vector<8x64xf32>
    %18 = vector.shape_cast %17 : vector<8x64xf32> to vector<8x64x1xf32>
    %19 = arith.maximumf %16, %18 : vector<8x64x1xf32>
    %20 = arith.subf %16, %19 : vector<8x64x1xf32>
    %21 = math.exp %20 : vector<8x64x1xf32>
    %22 = vector.broadcast %19 : vector<8x64x1xf32> to vector<8x64x32xf32>
    %23 = arith.subf %15, %22 : vector<8x64x32xf32>
    %24 = math.exp %23 : vector<8x64x32xf32>
    %c0_15 = arith.constant 0 : index
    %c0_16 = arith.constant 0 : index
    %c0_17 = arith.constant 0 : index
    %25 = vector.load %arg11[%c0_15, %c0_16, %c0_17] : memref<8x64x1xf32, #tpu.memory_space<vmem>>, vector<8x64x1xf32>
    %26 = arith.mulf %21, %25 : vector<8x64x1xf32>
    %cst_18 = arith.constant dense<0.000000e+00> : vector<8x64xf32>
    %27 = vector.multi_reduction <add>, %24, %cst_18 [2] : vector<8x64x32xf32> to vector<8x64xf32>
    %28 = vector.shape_cast %27 : vector<8x64xf32> to vector<8x64x1xf32>
    %29 = arith.addf %26, %28 : vector<8x64x1xf32>
    %c0_19 = arith.constant 0 : index
    %c0_20 = arith.constant 0 : index
    %c0_21 = arith.constant 0 : index
    %30 = vector.load %arg11[%c0_19, %c0_20, %c0_21] : memref<8x64x1xf32, #tpu.memory_space<vmem>>, vector<8x64x1xf32>
    tpu.vector_store %arg11[%c0_19, %c0_20, %c0_21], %29 {strides = array<i32>} : memref<8x64x1xf32, #tpu.memory_space<vmem>>, vector<8x64x1xf32>,
    %c0_22 = arith.constant 0 : index
    %c0_23 = arith.constant 0 : index
    %c0_24 = arith.constant 0 : index
    %31 = vector.load %arg12[%c0_22, %c0_23, %c0_24] : memref<8x64x128xf32, #tpu.memory_space<vmem>>, vector<8x64x128xf32>
    %32 = vector.broadcast %21 : vector<8x64x1xf32> to vector<8x64x128xf32>
    %33 = arith.mulf %32, %31 : vector<8x64x128xf32>
    "tpu.trace_start"() <{level = 10 : i32, message = "bqk,bkd->bqd"}> : () -> ()
    %cst_25 = arith.constant dense<0.000000e+00> : vector<8x64x128xf32>
    %34 = tpu.matmul %24, %13, %cst_25 {dimension_numbers = #tpu.dot_dimension_numbers<[2], [1], [1], [2], [0, 0, 0, 1, 1, 2], [0], [0]>} : vector<8x64x32xf32>, vector<8x32x128xf32>, vector<8x64x128xf32> -> vector<8x64x128xf32>
    "tpu.trace_stop"() : () -> ()
    %35 = arith.addf %33, %34 : vector<8x64x128xf32>
    %c0_26 = arith.constant 0 : index
    %c0_27 = arith.constant 0 : index
    %c0_28 = arith.constant 0 : index
    %36 = vector.load %arg12[%c0_26, %c0_27, %c0_28] : memref<8x64x128xf32, #tpu.memory_space<vmem>>, vector<8x64x128xf32>
    tpu.vector_store %arg12[%c0_26, %c0_27, %c0_28], %35 {strides = array<i32>} : memref<8x64x128xf32, #tpu.memory_space<vmem>>, vector<8x64x128xf32>,
    %c0_29 = arith.constant 0 : index
    %c0_30 = arith.constant 0 : index
    %c0_31 = arith.constant 0 : index
    %37 = vector.load %arg10[%c0_29, %c0_30, %c0_31] : memref<8x64x1xf32, #tpu.memory_space<vmem>>, vector<8x64x1xf32>
    tpu.vector_store %arg10[%c0_29, %c0_30, %c0_31], %19 {strides = array<i32>} : memref<8x64x1xf32, #tpu.memory_space<vmem>>, vector<8x64x1xf32>,
    %c1_i32 = arith.constant 1 : i32
    %38 = arith.cmpi eq, %arg1, %c1_i32 : i32
    %39 = arith.extui %38 : i1 to i32
    %c0_i32_32 = arith.constant 0 : i32
    %40 = arith.cmpi ne, %39, %c0_i32_32 : i32
    scf.if %40 {
      %c0_33 = arith.constant 0 : index
      %c0_34 = arith.constant 0 : index
      %c0_35 = arith.constant 0 : index
      %41 = vector.load %arg12[%c0_33, %c0_34, %c0_35] : memref<8x64x128xf32, #tpu.memory_space<vmem>>, vector<8x64x128xf32>
      %c0_36 = arith.constant 0 : index
      %c0_37 = arith.constant 0 : index
      %c0_38 = arith.constant 0 : index
      %42 = vector.load %arg11[%c0_36, %c0_37, %c0_38] : memref<8x64x1xf32, #tpu.memory_space<vmem>>, vector<8x64x1xf32>
      %43 = vector.broadcast %42 : vector<8x64x1xf32> to vector<8x64x128xf32>
      %44 = arith.divf %41, %43 : vector<8x64x128xf32>
      %cst_39 = arith.constant dense<0xFF800000> : vector<8x128xf32>
      %45 = vector.multi_reduction <maximumf>, %44, %cst_39 [1] : vector<8x64x128xf32> to vector<8x128xf32>
      %c0_40 = arith.constant 0 : index
      %c0_41 = arith.constant 0 : index
      %46 = vector.load %arg8[%c0_40, %c0_41] : memref<8x128xf32, #tpu.memory_space<vmem>>, vector<8x128xf32>
      tpu.vector_store %arg8[%c0_40, %c0_41], %45 {strides = array<i32>} : memref<8x128xf32, #tpu.memory_space<vmem>>, vector<8x128xf32>,
    } else {
    }
    return
  }
  func.func @transform_0(%arg0: i32, %arg1: i32) -> (i32, i32, i32) {
    %c0_i32 = arith.constant 0 : i32
    %c0_i32_0 = arith.constant 0 : i32
    %c0_i32_1 = arith.constant 0 : i32
    return %arg0, %c0_i32, %c0_i32_0 : i32, i32, i32
  }
  func.func @transform_1(%arg0: i32, %arg1: i32) -> (i32, i32, i32) {
    %c0_i32 = arith.constant 0 : i32
    %c0_i32_0 = arith.constant 0 : i32
    return %arg0, %arg1, %c0_i32 : i32, i32, i32
  }
  func.func @transform_2(%arg0: i32, %arg1: i32) -> (i32, i32) {
    %c0_i32 = arith.constant 0 : i32
    %c0_i32_0 = arith.constant 0 : i32
    %c0_i32_1 = arith.constant 0 : i32
    return %c0_i32, %c0_i32_0 : i32, i32
  }
  func.func @transform_3(%arg0: i32, %arg1: i32) -> (i32, i32) {
    %c0_i32 = arith.constant 0 : i32
    %c0_i32_0 = arith.constant 0 : i32
    %c0_i32_1 = arith.constant 0 : i32
    return %c0_i32, %c0_i32_0 : i32, i32
  }
  func.func @transform_4(%arg0: i32, %arg1: i32) -> (i32, i32) {
    %c0_i32 = arith.constant 0 : i32
    %c0_i32_0 = arith.constant 0 : i32
    %c0_i32_1 = arith.constant 0 : i32
    return %c0_i32, %c0_i32_0 : i32, i32
  }
  func.func @transform_5(%arg0: i32, %arg1: i32) -> (i32, i32) {
    %c0_i32 = arith.constant 0 : i32
    %c0_i32_0 = arith.constant 0 : i32
    %c0_i32_1 = arith.constant 0 : i32
    return %c0_i32, %c0_i32_0 : i32, i32
  }
  func.func @transform_6(%arg0: i32, %arg1: i32) -> (i32, i32) {
    %c0_i32 = arith.constant 0 : i32
    %c0_i32_0 = arith.constant 0 : i32
    return %arg0, %c0_i32 : i32, i32
  }
}

</mosaic_0001>

<llo_original>
// kernel: self_attention.1
$region0: #{self_attention.1}
  #allocation0 [shape = 'u32[]', space=smem, size = 0x4, offset = 0x4, fixed_abs, tag = 'smem constant byte address 0x4 - core index']
  #allocation1 [shape = 'u32[144,128]{1,0:T(1,128)}', space=vmem, size = 0x12000, scoped, tag = 'internal scratch']
  #allocation2 [shape = 'f32[8,64,128]{2,1,0:T(8,128)}', space=vmem, size = 0x40000, scoped, tag = 'scratch operand']
  #allocation3 [shape = 'f32[8,64,1]{2,1,0:T(8,128)}', space=vmem, size = 0x40000, scoped, tag = 'scratch operand']
  #allocation4 [shape = 'f32[8,64,1]{2,1,0:T(8,128)}', space=vmem, size = 0x40000, scoped, tag = 'scratch operand']
  #allocation5 [shape = 'f32[8,64,128]{2,1,0:T(8,128)}', space=vmem, size = 0x40000, scoped, tag = 'scratch operand']
  #allocation15 [shape = 's32[]', space=sflag, size = 0x4, offset = 0, fixed_abs, tag = 'sflag constant byte address 0x0 - dummy sync flag']
  %s0 = inlined_call_operand.hbm [shape: f32[16,64,128], index: 0, kind: input, shape index: {}, may-alias: {0,1}]
  %s1 = inlined_call_operand.hbm [shape: f32[16,64,128], index: 1, kind: input, shape index: {}, may-alias: {0,1}]
  %s2 = inlined_call_operand.hbm [shape: f32[128,128], index: 2, kind: input, shape index: {}]
  %s3 = inlined_call_operand.vmem [shape: f32[1,128], index: 3, kind: input, shape index: {}]
  %s4 = inlined_call_operand.hbm [shape: f32[128,256], index: 4, kind: input, shape index: {}]
  %s5 = inlined_call_operand.vmem [shape: f32[1,256], index: 5, kind: input, shape index: {}]
  %s6 = inlined_call_operand.hbm [shape: f32[16,128], index: 6, kind: output, shape index: {}]
  %s7 = sld [smem:[#allocation0]]
  $region81: #{self_attention.1} parent=0
    _
  %s9 = ssub.s32 1, %s7
  %s10 = scalar_select 0, %s9, %s7
  $region1: #{self_attention.1} parent=0
    #allocation6 [shape = 'u8[524288]{0}', space=vmem, size = 0x80000, scoped, tag = 'input window, operand 0']
    #allocation7 [shape = 's32[2]{0}', space=sflag, size = 0x8, scoped, tag = 'scoped memory for self_attention.1']
    #allocation8 [shape = 's32[2]{0}', space=sflag, size = 0x8, scoped, tag = 'scoped memory for self_attention.1']
    #allocation9 [shape = 'u8[262144]{0}', space=vmem, size = 0x40000, scoped, tag = 'input window, operand 1']
    #allocation10 [shape = 's32[2]{0}', space=sflag, size = 0x8, scoped, tag = 'scoped memory for self_attention.1']
    #allocation11 [shape = 'u8[65536]{0}', space=vmem, size = 0x10000, scoped, tag = 'input window, operand 2, single buffered']
    #allocation12 [shape = 'u8[131072]{0}', space=vmem, size = 0x20000, scoped, tag = 'input window, operand 4, single buffered']
    #allocation13 [shape = 's32[1]{0}', space=sflag, size = 0x4, scoped, tag = 'scoped memory for self_attention.1']
    #allocation14 [shape = 'u8[8192]{0}', space=vmem, size = 0x2000, scoped, tag = 'output window, operand 0']
    %11 = vsyncpa [#allocation7], 0
    %s12 = scalar_lea.sflag [#allocation7], 1
    %13 = vsyncpa %s12, 0
    %14 = vsyncpa [#allocation10], 0
    %s15 = scalar_lea.sflag [#allocation10], 1
    %16 = vsyncpa %s15, 0
    %17 = vsyncpa [#allocation13], 0
    %18 = vsyncpa [#allocation8], 0
    %s19 = scalar_lea.sflag [#allocation8], 1
    %20 = vsyncpa %s19, 0
    loop: start=0, step=1, limit=6
    $region2: #{self_attention.1} parent=1 // loop_pre_header
      _
    $region3: #{self_attention.1} parent=1 // loop_header
      %s22 = sphi 0, %s26
      %p23 = scmp.ge.s32.totalorder %s22, 6
      %s29 = sphi 0, %s41
      %s30 = sphi 0, %s37
      %s31 = sphi 0, %s29
      %s32 = sphi 0, %s30
      %s33 = sphi 0, %s31
      %s34 = sphi 0, %s32
      %s44 = sphi 0, %s46
      %s47 = sphi 0, %s44
      %s48 = sphi 0, %s47
      %s64 = sphi 0, %s48
      %s72 = sphi 0, %s74
      %s75 = sphi 0, %s72
      %s76 = sphi 0, %s75
      %s92 = sphi 0, %s76
      %s96 = sphi 0, %s96
      %s98 = sphi 0, %s96
      %s99 = sphi 0, %s98
      %s113 = sphi 0, %s99
      %s117 = sphi 0, %s117
      %s119 = sphi 0, %s117
      %s120 = sphi 0, %s119
      %s134 = sphi 0, %s120
      %s138 = sphi 0, %s138
      %s140 = sphi 0, %s138
      %s141 = sphi 0, %s140
      %s155 = sphi 0, %s141
      %s159 = sphi 0, %s159
      %s161 = sphi 0, %s159
      %s162 = sphi 0, %s161
      %s176 = sphi 0, %s162
      %s182 = sphi 0, %s184
      %s185 = sphi 0, %s182
      %s186 = sphi 0, %s185
      %s202 = sphi 0, %s186
    $region4: #{self_attention.1} parent=1 // loop_header_branch
      %25 = sbr.rel (%p23) target = $region8
    $region5: #{self_attention.1} parent=1 // loop_body
      %s27 = ssub.s32 %s22, 1
      %s28 = ssub.s32 %s22, 2
      %s35 = sadd.s32 1, %s30
      %p36 = scmp.ge.s32.totalorder %s35, 2
      %s37 = scalar_select %p36, 0, %s35
      %s38 = sadd.s32 1, %s29
      %s39 = scalar_select %p36, %s38, %s29
      %p40 = scmp.ge.s32.totalorder %s39, 2
      %s41 = scalar_select %p40, 0, %s39
      %s42 = ssub.s32 %s29, %s41
      %p43 = scmp.eq.s32.totalorder %s42, 0
      %s45 = sadd.s32 %s44, 1
      %s46 = scalar_select %p43, %s44, %s45
      %p49 = pneg %p43
      %p50 = scmp.eq.s32.totalorder %s22, 3
      %p51 = por %p49, %p50
      %p52 = scmp.ne.s32.totalorder %s44, %s47
      %p53 = scmp.eq.s32.totalorder %s22, 0
      %p54 = por %p52, %p53
      %p55 = scmp.ne.s32.totalorder %s44, %s47
      %p56 = scmp.eq.s32.totalorder %s27, 3
      %p57 = por %p55, %p56
      %p58 = scmp.ne.s32.totalorder %s47, %s48
      %p59 = scmp.eq.s32.totalorder %s27, 0
      %p60 = por %p58, %p59
      %p61 = scmp.ne.s32.totalorder %s47, %s48
      %p62 = scmp.eq.s32.totalorder %s28, 3
      %p63 = por %p61, %p62
      %p65 = scmp.ne.s32.totalorder %s48, %s64
      %p66 = scmp.eq.s32.totalorder %s28, 0
      %p67 = por %p65, %p66
      %s68 = ssub.s32 %s29, %s41
      %s69 = ssub.s32 %s30, %s37
      %s70 = sor.u32 %s68, %s69
      %p71 = scmp.eq.s32.totalorder %s70, 0
      %s73 = sadd.s32 %s72, 1
      %s74 = scalar_select %p71, %s72, %s73
      %p77 = pneg %p71
      %p78 = scmp.eq.s32.totalorder %s22, 3
      %p79 = por %p77, %p78
      %p80 = scmp.ne.s32.totalorder %s72, %s75
      %p81 = scmp.eq.s32.totalorder %s22, 0
      %p82 = por %p80, %p81
      %p83 = scmp.ne.s32.totalorder %s72, %s75
      %p84 = scmp.eq.s32.totalorder %s27, 3
      %p85 = por %p83, %p84
      %p86 = scmp.ne.s32.totalorder %s75, %s76
      %p87 = scmp.eq.s32.totalorder %s27, 0
      %p88 = por %p86, %p87
      %p89 = scmp.ne.s32.totalorder %s75, %s76
      %p90 = scmp.eq.s32.totalorder %s28, 3
      %p91 = por %p89, %p90
      %p93 = scmp.ne.s32.totalorder %s76, %s92
      %p94 = scmp.eq.s32.totalorder %s28, 0
      %p95 = por %p93, %p94
      %s97 = sadd.s32 %s96, 1
      %p100 = scmp.eq.s32.totalorder %s22, 3
      %p101 = scmp.ne.s32.totalorder %s96, %s98
      %p102 = scmp.eq.s32.totalorder %s22, 0
      %p103 = por %p101, %p102
      %p104 = scmp.ne.s32.totalorder %s96, %s98
      %p105 = scmp.eq.s32.totalorder %s27, 3
      %p106 = por %p104, %p105
      %p107 = scmp.ne.s32.totalorder %s98, %s99
      %p108 = scmp.eq.s32.totalorder %s27, 0
      %p109 = por %p107, %p108
      %p110 = scmp.ne.s32.totalorder %s98, %s99
      %p111 = scmp.eq.s32.totalorder %s28, 3
      %p112 = por %p110, %p111
      %p114 = scmp.ne.s32.totalorder %s99, %s113
      %p115 = scmp.eq.s32.totalorder %s28, 0
      %p116 = por %p114, %p115
      %s118 = sadd.s32 %s117, 1
      %p121 = scmp.eq.s32.totalorder %s22, 3
      %p122 = scmp.ne.s32.totalorder %s117, %s119
      %p123 = scmp.eq.s32.totalorder %s22, 0
      %p124 = por %p122, %p123
      %p125 = scmp.ne.s32.totalorder %s117, %s119
      %p126 = scmp.eq.s32.totalorder %s27, 3
      %p127 = por %p125, %p126
      %p128 = scmp.ne.s32.totalorder %s119, %s120
      %p129 = scmp.eq.s32.totalorder %s27, 0
      %p130 = por %p128, %p129
      %p131 = scmp.ne.s32.totalorder %s119, %s120
      %p132 = scmp.eq.s32.totalorder %s28, 3
      %p133 = por %p131, %p132
      %p135 = scmp.ne.s32.totalorder %s120, %s134
      %p136 = scmp.eq.s32.totalorder %s28, 0
      %p137 = por %p135, %p136
      %s139 = sadd.s32 %s138, 1
      %p142 = scmp.eq.s32.totalorder %s22, 3
      %p143 = scmp.ne.s32.totalorder %s138, %s140
      %p144 = scmp.eq.s32.totalorder %s22, 0
      %p145 = por %p143, %p144
      %p146 = scmp.ne.s32.totalorder %s138, %s140
      %p147 = scmp.eq.s32.totalorder %s27, 3
      %p148 = por %p146, %p147
      %p149 = scmp.ne.s32.totalorder %s140, %s141
      %p150 = scmp.eq.s32.totalorder %s27, 0
      %p151 = por %p149, %p150
      %p152 = scmp.ne.s32.totalorder %s140, %s141
      %p153 = scmp.eq.s32.totalorder %s28, 3
      %p154 = por %p152, %p153
      %p156 = scmp.ne.s32.totalorder %s141, %s155
      %p157 = scmp.eq.s32.totalorder %s28, 0
      %p158 = por %p156, %p157
      %s160 = sadd.s32 %s159, 1
      %p163 = scmp.eq.s32.totalorder %s22, 3
      %p164 = scmp.ne.s32.totalorder %s159, %s161
      %p165 = scmp.eq.s32.totalorder %s22, 0
      %p166 = por %p164, %p165
      %p167 = scmp.ne.s32.totalorder %s159, %s161
      %p168 = scmp.eq.s32.totalorder %s27, 3
      %p169 = por %p167, %p168
      %p170 = scmp.ne.s32.totalorder %s161, %s162
      %p171 = scmp.eq.s32.totalorder %s27, 0
      %p172 = por %p170, %p171
      %p173 = scmp.ne.s32.totalorder %s161, %s162
      %p174 = scmp.eq.s32.totalorder %s28, 3
      %p175 = por %p173, %p174
      %p177 = scmp.ne.s32.totalorder %s162, %s176
      %p178 = scmp.eq.s32.totalorder %s28, 0
      %p179 = por %p177, %p178
      %s180 = ssub.s32 %s29, %s41
      %p181 = scmp.eq.s32.totalorder %s180, 0
      %s183 = sadd.s32 %s182, 1
      %s184 = scalar_select %p181, %s182, %s183
      %p187 = pneg %p181
      %p188 = scmp.eq.s32.totalorder %s22, 3
      %p189 = por %p187, %p188
      %p190 = scmp.ne.s32.totalorder %s182, %s185
      %p191 = scmp.eq.s32.totalorder %s22, 0
      %p192 = por %p190, %p191
      %p193 = scmp.ne.s32.totalorder %s182, %s185
      %p194 = scmp.eq.s32.totalorder %s27, 3
      %p195 = por %p193, %p194
      %p196 = scmp.ne.s32.totalorder %s185, %s186
      %p197 = scmp.eq.s32.totalorder %s27, 0
      %p198 = por %p196, %p197
      %p199 = scmp.ne.s32.totalorder %s185, %s186
      %p200 = scmp.eq.s32.totalorder %s28, 3
      %p201 = por %p199, %p200
      %p203 = scmp.ne.s32.totalorder %s186, %s202
      %p204 = scmp.eq.s32.totalorder %s28, 0
      %p205 = por %p203, %p204
      %p206 = scmp.le.s32.totalorder 1, %s22
      %p207 = scmp.lt.s32.totalorder %s22, 5
      %p208 = pnand %p206, %p207
      %p209 = pneg %p208
      // Predicated region
      $region9: #{self_attention.1} parent=5 // pred_check
        _
      $region10: #{self_attention.1} parent=5 // pred_check_branch
        %211 = sbr.rel (%p208) target = $region12
      $region11: #{self_attention.1} parent=5 // pred_region
        %s212 = ssub.s32 %s22, 1
        // Predicated region
        $region13: #{self_attention.1} parent=11 // pred_check
          %p213 = pneg %p109
        $region14: #{self_attention.1} parent=11 // pred_check_branch
          %215 = sbr.rel (%p213) target = $region16
        $region15: #{self_attention.1} parent=11 // pred_region
          %s217 = ssub.s32 2048, 2048
          %218 = vsyncadd [#allocation10], %s217
          %s219 = sshll.u32 [#allocation11], 4
          %s220 = int_to_ptr.vmem [resolvable:$true] %s219
          %225 = dma.hbm_to_vmem [thread:$0]  %s2, 2048, %s220, [#allocation10], 128, 128, 8
        $region16: #{self_attention.1} parent=11 // pred_fallthru
          _
        // Predicated region
        $region17: #{self_attention.1} parent=11 // pred_check
          %p226 = pneg %p130
        $region18: #{self_attention.1} parent=11 // pred_check_branch
          %228 = sbr.rel (%p226) target = $region20
        $region19: #{self_attention.1} parent=11 // pred_region
          _
        $region20: #{self_attention.1} parent=11 // pred_fallthru
          _
        // Predicated region
        $region21: #{self_attention.1} parent=11 // pred_check
          %p229 = pneg %p151
        $region22: #{self_attention.1} parent=11 // pred_check_branch
          %231 = sbr.rel (%p229) target = $region24
        $region23: #{self_attention.1} parent=11 // pred_region
          %s233 = ssub.s32 4096, 4096
          %234 = vsyncadd [#allocation13], %s233
          %s235 = sshll.u32 [#allocation12], 4
          %s236 = int_to_ptr.vmem [resolvable:$true] %s235
          %241 = dma.hbm_to_vmem [thread:$0]  %s4, 4096, %s236, [#allocation13], 256, 256, 16
        $region24: #{self_attention.1} parent=11 // pred_fallthru
          _
        // Predicated region
        $region25: #{self_attention.1} parent=11 // pred_check
          %p242 = pneg %p172
        $region26: #{self_attention.1} parent=11 // pred_check_branch
          %244 = sbr.rel (%p242) target = $region28
        $region27: #{self_attention.1} parent=11 // pred_region
          _
        $region28: #{self_attention.1} parent=11 // pred_fallthru
          _
      $region12: #{self_attention.1} parent=5 // pred_fallthru
        _
      %p245 = scmp.lt.s32.totalorder %s22, 4
      // Predicated region
      $region29: #{self_attention.1} parent=5 // pred_check
        %p246 = pneg %p245
      $region30: #{self_attention.1} parent=5 // pred_check_branch
        %248 = sbr.rel (%p246) target = $region32
      $region31: #{self_attention.1} parent=5 // pred_region
        // Predicated region
        $region33: #{self_attention.1} parent=31 // pred_check
          %p249 = pneg %p54
        $region34: #{self_attention.1} parent=31 // pred_check_branch
          %251 = sbr.rel (%p249) target = $region36
        $region35: #{self_attention.1} parent=31 // pred_region
          %s252 = sand.u32 %s44, 1
          %s253 = scalar_lea.sflag [#allocation7], %s252
          %s254 = sand.u32 %s44, 1
          %s255 = smul.addr %s254, 512
          %s256 = scalar_lea.vmem [#allocation6], %s255
          %s257 = smul.u32 8, %s29
          %s259 = ssub.s32 8192, 8192
          %260 = vsyncadd %s253, %s259
          %s261 = smul.addr %s257, 8
          %s262 = smul.addr %s261, 128
          %s263 = scalar_lea.hbm %s0, %s262
          %s264 = sshll.u32 %s256, 4
          %s265 = int_to_ptr.vmem [resolvable:$true] %s264
          %270 = dma.hbm_to_vmem [thread:$0]  %s263, 8192, %s265, %s253, 128, 128, 8
        $region36: #{self_attention.1} parent=31 // pred_fallthru
          _
        // Predicated region
        $region37: #{self_attention.1} parent=31 // pred_check
          %p271 = pneg %p82
        $region38: #{self_attention.1} parent=31 // pred_check_branch
          %273 = sbr.rel (%p271) target = $region40
        $region39: #{self_attention.1} parent=31 // pred_region
          #allocation16 [shape = 'u32[6]{0}', space=smem, size = 0x18, scoped, tag = 'DMA stride descriptor']
          %s274 = sand.u32 %s22, 1
          %s275 = scalar_lea.sflag [#allocation10], %s274
          %s276 = sand.u32 %s72, 1
          %s277 = smul.addr %s276, 256
          %s278 = scalar_lea.vmem [#allocation9], %s277
          %s279 = smul.u32 8, %s29
          %s280 = smul.u32 4, %s30
          %s282 = ssub.s32 4096, 4096
          %283 = vsyncadd %s275, %s282
          %s284 = smul.addr %s279, 8
          %s285 = sadd.s32 %s280, %s284
          %s286 = smul.addr %s285, 128
          %s287 = scalar_lea.hbm %s1, %s286
          %s289 = sshll.u32 1, 14
          %s290 = sxor.u32 4294967295, %s289
          %s292 = sld [smem:[#allocation0]]
          %s293 = sadd.s32 2, %s292
          %s295 = sshll.u32 7, 26
          %s296 = sxor.u32 4294967295, %s295
          %s297 = sand.u32 0, %s296
          %s298 = sshll.u32 %s293, 26
          %s299 = sor.u32 %s297, %s298
          %s300 = sshll.u32 %s278, 4
          %s301 = int_to_ptr.vmem [resolvable:$true] %s300
          %307 = sst [smem:[#allocation16]] 1024
          %s308 = scalar_lea.smem [#allocation16], 1
          %309 = sst [smem:[%s308]] 512
          %s310 = scalar_lea.smem [#allocation16], 2
          %311 = sst [smem:[%s310]] 4
          %s312 = scalar_lea.smem [#allocation16], 3
          %313 = sst [smem:[%s312]] 128
          %s314 = scalar_lea.smem [#allocation16], 4
          %315 = sst [smem:[%s314]] 128
          %s316 = scalar_lea.smem [#allocation16], 5
          %317 = sst [smem:[%s316]] 8
          %319 = dma.general %s287, 4096, %s301, %s275, 131072, [#allocation16], %s299, 0
        $region40: #{self_attention.1} parent=31 // pred_fallthru
          _
      $region32: #{self_attention.1} parent=5 // pred_fallthru
        _
      %p320 = scmp.le.s32.totalorder 1, %s22
      %p321 = scmp.lt.s32.totalorder %s22, 5
      %p322 = pnand %p320, %p321
      %p323 = pneg %p322
      // Predicated region
      $region41: #{self_attention.1} parent=5 // pred_check
        _
      $region42: #{self_attention.1} parent=5 // pred_check_branch
        %325 = sbr.rel (%p322) target = $region44
      $region43: #{self_attention.1} parent=5 // pred_region
        %s326 = ssub.s32 %s22, 1
        %s327 = sand.u32 %s47, 1
        %s328 = scalar_lea.sflag [#allocation7], %s327
        %s329 = sand.u32 %s47, 1
        %s330 = smul.addr %s329, 512
        %s331 = scalar_lea.vmem [#allocation6], %s330
        // Predicated region
        $region45: #{self_attention.1} parent=43 // pred_check
          %p332 = pneg %p60
        $region46: #{self_attention.1} parent=43 // pred_check_branch
          %334 = sbr.rel (%p332) target = $region48
        $region47: #{self_attention.1} parent=43 // pred_region
          %335 = dma.done %s328, 8192
        $region48: #{self_attention.1} parent=43 // pred_fallthru
          _
        %s336 = sand.u32 %s27, 1
        %s337 = scalar_lea.sflag [#allocation10], %s336
        %s338 = sand.u32 %s75, 1
        %s339 = smul.addr %s338, 256
        %s340 = scalar_lea.vmem [#allocation9], %s339
        // Predicated region
        $region49: #{self_attention.1} parent=43 // pred_check
          %p341 = pneg %p88
        $region50: #{self_attention.1} parent=43 // pred_check_branch
          %343 = sbr.rel (%p341) target = $region52
        $region51: #{self_attention.1} parent=43 // pred_region
          %344 = dma.done %s337, 4096
        $region52: #{self_attention.1} parent=43 // pred_fallthru
          _
        // Predicated region
        $region53: #{self_attention.1} parent=43 // pred_check
          %p345 = pneg %p109
        $region54: #{self_attention.1} parent=43 // pred_check_branch
          %347 = sbr.rel (%p345) target = $region56
        $region55: #{self_attention.1} parent=43 // pred_region
          %348 = dma.done [#allocation10], 2048
        $region56: #{self_attention.1} parent=43 // pred_fallthru
          _
        // Predicated region
        $region57: #{self_attention.1} parent=43 // pred_check
          %p349 = pneg %p151
        $region58: #{self_attention.1} parent=43 // pred_check_branch
          %351 = sbr.rel (%p349) target = $region60
        $region59: #{self_attention.1} parent=43 // pred_region
          %352 = dma.done [#allocation13], 4096
        $region60: #{self_attention.1} parent=43 // pred_fallthru
          _
        %s353 = sand.u32 %s47, 1
        %s354 = scalar_lea.sflag [#allocation7], %s353
        %s355 = sand.u32 %s47, 1
        %s356 = smul.addr %s355, 512
        %s357 = scalar_lea.vmem [#allocation6], %s356
        %p358 = pneg %p60
        %p359 = pneg %p57
        %s360 = sand.u32 %s27, 1
        %s361 = scalar_lea.sflag [#allocation10], %s360
        %s362 = sand.u32 %s75, 1
        %s363 = smul.addr %s362, 256
        %s364 = scalar_lea.vmem [#allocation9], %s363
        %p365 = pneg %p88
        %p366 = pneg %p85
        %p367 = pneg %p109
        %p368 = pneg %p106
        %p369 = pneg %p130
        %p370 = pneg %p127
        %p371 = pneg %p151
        %p372 = pneg %p148
        %p373 = pneg %p172
        %p374 = pneg %p169
        %p375 = pneg %p198
        %p376 = pneg %p195
        %s377 = sand.u32 %s185, 1
        %s378 = scalar_lea.sflag [#allocation8], %s377
        %s379 = sand.u32 %s185, 1
        %s380 = smul.addr %s379, 8
        %s381 = scalar_lea.vmem [#allocation14], %s380
        %s382 = smul.u32 8, %s31
        %s383 = smul.u32 8, %s31
        %s384 = smul.u32 4, %s32
        %p385 = scmp.eq.s32.totalorder %s32, 0
        // Predicated region
        $region61: #{self_attention.1} parent=43 // pred_check
          %p386 = pneg %p385
        $region62: #{self_attention.1} parent=43 // pred_check_branch
          %388 = sbr.rel (%p386) target = $region64
        $region63: #{self_attention.1} parent=43 // pred_region
          %v389 = vld [vmem:[%s331] sm:$0xff]
          %v390 = vld [vmem:[%s331 + $0x8] sm:$0xff]
          %v391 = vld [vmem:[%s331 + $0x10] sm:$0xff]
          %v392 = vld [vmem:[%s331 + $0x18] sm:$0xff]
          %v393 = vld [vmem:[%s331 + $0x20] sm:$0xff]
          %v394 = vld [vmem:[%s331 + $0x28] sm:$0xff]
          %v395 = vld [vmem:[%s331 + $0x30] sm:$0xff]
          %v396 = vld [vmem:[%s331 + $0x38] sm:$0xff]
          %v397 = vld [vmem:[%s331 + $0x40] sm:$0xff]
          %v398 = vld [vmem:[%s331 + $0x48] sm:$0xff]
          %v399 = vld [vmem:[%s331 + $0x50] sm:$0xff]
          %v400 = vld [vmem:[%s331 + $0x58] sm:$0xff]
          %v401 = vld [vmem:[%s331 + $0x60] sm:$0xff]
          %v402 = vld [vmem:[%s331 + $0x68] sm:$0xff]
          %v403 = vld [vmem:[%s331 + $0x70] sm:$0xff]
          %v404 = vld [vmem:[%s331 + $0x78] sm:$0xff]
          %v405 = vld [vmem:[%s331 + $0x80] sm:$0xff]
          %v406 = vld [vmem:[%s331 + $0x88] sm:$0xff]
          %v407 = vld [vmem:[%s331 + $0x90] sm:$0xff]
          %v408 = vld [vmem:[%s331 + $0x98] sm:$0xff]
          %v409 = vld [vmem:[%s331 + $0xa0] sm:$0xff]
          %v410 = vld [vmem:[%s331 + $0xa8] sm:$0xff]
          %v411 = vld [vmem:[%s331 + $0xb0] sm:$0xff]
          %v412 = vld [vmem:[%s331 + $0xb8] sm:$0xff]
          %v413 = vld [vmem:[%s331 + $0xc0] sm:$0xff]
          %v414 = vld [vmem:[%s331 + $0xc8] sm:$0xff]
          %v415 = vld [vmem:[%s331 + $0xd0] sm:$0xff]
          %v416 = vld [vmem:[%s331 + $0xd8] sm:$0xff]
          %v417 = vld [vmem:[%s331 + $0xe0] sm:$0xff]
          %v418 = vld [vmem:[%s331 + $0xe8] sm:$0xff]
          %v419 = vld [vmem:[%s331 + $0xf0] sm:$0xff]
          %v420 = vld [vmem:[%s331 + $0xf8] sm:$0xff]
          %v421 = vld [vmem:[%s331 + $0x100] sm:$0xff]
          %v422 = vld [vmem:[%s331 + $0x108] sm:$0xff]
          %v423 = vld [vmem:[%s331 + $0x110] sm:$0xff]
          %v424 = vld [vmem:[%s331 + $0x118] sm:$0xff]
          %v425 = vld [vmem:[%s331 + $0x120] sm:$0xff]
          %v426 = vld [vmem:[%s331 + $0x128] sm:$0xff]
          %v427 = vld [vmem:[%s331 + $0x130] sm:$0xff]
          %v428 = vld [vmem:[%s331 + $0x138] sm:$0xff]
          %v429 = vld [vmem:[%s331 + $0x140] sm:$0xff]
          %v430 = vld [vmem:[%s331 + $0x148] sm:$0xff]
          %v431 = vld [vmem:[%s331 + $0x150] sm:$0xff]
          %v432 = vld [vmem:[%s331 + $0x158] sm:$0xff]
          %v433 = vld [vmem:[%s331 + $0x160] sm:$0xff]
          %v434 = vld [vmem:[%s331 + $0x168] sm:$0xff]
          %v435 = vld [vmem:[%s331 + $0x170] sm:$0xff]
          %v436 = vld [vmem:[%s331 + $0x178] sm:$0xff]
          %v437 = vld [vmem:[%s331 + $0x180] sm:$0xff]
          %v438 = vld [vmem:[%s331 + $0x188] sm:$0xff]
          %v439 = vld [vmem:[%s331 + $0x190] sm:$0xff]
          %v440 = vld [vmem:[%s331 + $0x198] sm:$0xff]
          %v441 = vld [vmem:[%s331 + $0x1a0] sm:$0xff]
          %v442 = vld [vmem:[%s331 + $0x1a8] sm:$0xff]
          %v443 = vld [vmem:[%s331 + $0x1b0] sm:$0xff]
          %v444 = vld [vmem:[%s331 + $0x1b8] sm:$0xff]
          %v445 = vld [vmem:[%s331 + $0x1c0] sm:$0xff]
          %v446 = vld [vmem:[%s331 + $0x1c8] sm:$0xff]
          %v447 = vld [vmem:[%s331 + $0x1d0] sm:$0xff]
          %v448 = vld [vmem:[%s331 + $0x1d8] sm:$0xff]
          %v449 = vld [vmem:[%s331 + $0x1e0] sm:$0xff]
          %v450 = vld [vmem:[%s331 + $0x1e8] sm:$0xff]
          %v451 = vld [vmem:[%s331 + $0x1f0] sm:$0xff]
          %v452 = vld [vmem:[%s331 + $0x1f8] sm:$0xff]
          %v453 = vld [vmem:[#allocation11] sm:$0xff]
          %v454 = vld [vmem:[#allocation11 + $0x8] sm:$0xff]
          %v455 = vld [vmem:[#allocation11 + $0x10] sm:$0xff]
          %v456 = vld [vmem:[#allocation11 + $0x18] sm:$0xff]
          %v457 = vld [vmem:[#allocation11 + $0x20] sm:$0xff]
          %v458 = vld [vmem:[#allocation11 + $0x28] sm:$0xff]
          %v459 = vld [vmem:[#allocation11 + $0x30] sm:$0xff]
          %v460 = vld [vmem:[#allocation11 + $0x38] sm:$0xff]
          %v461 = vld [vmem:[#allocation11 + $0x40] sm:$0xff]
          %v462 = vld [vmem:[#allocation11 + $0x48] sm:$0xff]
          %v463 = vld [vmem:[#allocation11 + $0x50] sm:$0xff]
          %v464 = vld [vmem:[#allocation11 + $0x58] sm:$0xff]
          %v465 = vld [vmem:[#allocation11 + $0x60] sm:$0xff]
          %v466 = vld [vmem:[#allocation11 + $0x68] sm:$0xff]
          %v467 = vld [vmem:[#allocation11 + $0x70] sm:$0xff]
          %v468 = vld [vmem:[#allocation11 + $0x78] sm:$0xff]
          %v469 = vld [vmem:[%s3] sm:$0x1]
          %v471 = vlaneseq
          %v472 = vshrl.u32 %v471, 7
          %v473 = vsub.s32 0, %v472
          %v474 = vrot.slane %v469, %v473
          %476 = vmatprep.subr.mxu0 0.0
          %477 = vmatpush1.msra.mxu0 %v468
          %478 = vmatprep.subr.mxu0 0.0
          %479 = vmatpush1.msra.mxu0 %v467
          %480 = vmatprep.subr.mxu0 0.0
          %481 = vmatpush1.msra.mxu0 %v466
          %482 = vmatprep.subr.mxu0 0.0
          %483 = vmatpush1.msra.mxu0 %v465
          %484 = vmatprep.subr.mxu0 0.0
          %485 = vmatpush1.msra.mxu0 %v464
          %486 = vmatprep.subr.mxu0 0.0
          %487 = vmatpush1.msra.mxu0 %v463
          %488 = vmatprep.subr.mxu0 0.0
          %489 = vmatpush1.msra.mxu0 %v462
          %490 = vmatprep.subr.mxu0 0.0
          %491 = vmatpush1.msra.mxu0 %v461
          %492 = vmatprep.subr.mxu0 0.0
          %493 = vmatpush1.msra.mxu0 %v460
          %494 = vmatprep.subr.mxu0 0.0
          %495 = vmatpush1.msra.mxu0 %v459
          %496 = vmatprep.subr.mxu0 0.0
          %497 = vmatpush1.msra.mxu0 %v458
          %498 = vmatprep.subr.mxu0 0.0
          %499 = vmatpush1.msra.mxu0 %v457
          %500 = vmatprep.subr.mxu0 0.0
          %501 = vmatpush1.msra.mxu0 %v456
          %502 = vmatprep.subr.mxu0 0.0
          %503 = vmatpush1.msra.mxu0 %v455
          %504 = vmatprep.subr.mxu0 0.0
          %505 = vmatpush1.msra.mxu0 %v454
          %506 = vmatprep.subr.mxu0 0.0
          %507 = vmatpush1.msra.mxu0 %v453
          %508 = vmatprep.subr.mxu0 0.0
          %509 = vmatpush2.msra.mxu0 0.0
          %510 = vmatprep.subr.mxu0 0.0
          %511 = vmatpush2.msra.mxu0 0.0
          %512 = vmatprep.subr.mxu0 0.0
          %513 = vmatpush2.msra.mxu0 0.0
          %514 = vmatprep.subr.mxu0 0.0
          %515 = vmatpush2.msra.mxu0 0.0
          %516 = vmatprep.subr.mxu0 0.0
          %517 = vmatpush2.msra.mxu0 0.0
          %518 = vmatprep.subr.mxu0 0.0
          %519 = vmatpush2.msra.mxu0 0.0
          %520 = vmatprep.subr.mxu0 0.0
          %521 = vmatpush2.msra.mxu0 0.0
          %522 = vmatprep.subr.mxu0 0.0
          %523 = vmatpush2.msra.mxu0 0.0
          %524 = vmatprep.subr.mxu0 0.0
          %525 = vmatpush2.msra.mxu0 0.0
          %526 = vmatprep.subr.mxu0 0.0
          %527 = vmatpush2.msra.mxu0 0.0
          %528 = vmatprep.subr.mxu0 0.0
          %529 = vmatpush2.msra.mxu0 0.0
          %530 = vmatprep.subr.mxu0 0.0
          %531 = vmatpush2.msra.mxu0 0.0
          %532 = vmatprep.subr.mxu0 0.0
          %533 = vmatpush2.msra.mxu0 0.0
          %534 = vmatprep.subr.mxu0 0.0
          %535 = vmatpush2.msra.mxu0 0.0
          %536 = vmatprep.subr.mxu0 0.0
          %537 = vmatpush2.msra.mxu0 0.0
          %538 = vmatprep.subr.mxu0 0.0
          %539 = vmatpush2.msra.mxu0 0.0
          %540 = vmatprep.mubr.f32.mxu0 0.0
          %541 = vmatmul.mubr.f32.gmra.mxu0 %v389
          %v542 = vpop.f32.mrf.mxu0
          %v543 = vadd.f32 %v474, %v542
          %v544 = vpop.f32.mrf.mxu0
          %545 = vmatprep.mubr.f32.mxu0 0.0
          %546 = vmatmul.mubr.f32.gmra.mxu0 %v390
          %v547 = vpop.f32.mrf.mxu0
          %v548 = vadd.f32 %v474, %v547
          %v549 = vpop.f32.mrf.mxu0
          %550 = vmatprep.mubr.f32.mxu0 0.0
          %551 = vmatmul.mubr.f32.gmra.mxu0 %v391
          %v552 = vpop.f32.mrf.mxu0
          %v553 = vadd.f32 %v474, %v552
          %v554 = vpop.f32.mrf.mxu0
          %555 = vmatprep.mubr.f32.mxu0 0.0
          %556 = vmatmul.mubr.f32.gmra.mxu0 %v392
          %v557 = vpop.f32.mrf.mxu0
          %v558 = vadd.f32 %v474, %v557
          %v559 = vpop.f32.mrf.mxu0
          %560 = vmatprep.mubr.f32.mxu0 0.0
          %561 = vmatmul.mubr.f32.gmra.mxu0 %v393
          %v562 = vpop.f32.mrf.mxu0
          %v563 = vadd.f32 %v474, %v562
          %v564 = vpop.f32.mrf.mxu0
          %565 = vmatprep.mubr.f32.mxu0 0.0
          %566 = vmatmul.mubr.f32.gmra.mxu0 %v394
          %v567 = vpop.f32.mrf.mxu0
          %v568 = vadd.f32 %v474, %v567
          %v569 = vpop.f32.mrf.mxu0
          %570 = vmatprep.mubr.f32.mxu0 0.0
          %571 = vmatmul.mubr.f32.gmra.mxu0 %v395
          %v572 = vpop.f32.mrf.mxu0
          %v573 = vadd.f32 %v474, %v572
          %v574 = vpop.f32.mrf.mxu0
          %575 = vmatprep.mubr.f32.mxu0 0.0
          %576 = vmatmul.mubr.f32.gmra.mxu0 %v396
          %v577 = vpop.f32.mrf.mxu0
          %v578 = vadd.f32 %v474, %v577
          %v579 = vpop.f32.mrf.mxu0
          %580 = vmatprep.mubr.f32.mxu0 0.0
          %581 = vmatmul.mubr.f32.gmra.mxu0 %v397
          %v582 = vpop.f32.mrf.mxu0
          %v583 = vadd.f32 %v474, %v582
          %v584 = vpop.f32.mrf.mxu0
          %585 = vmatprep.mubr.f32.mxu0 0.0
          %586 = vmatmul.mubr.f32.gmra.mxu0 %v398
          %v587 = vpop.f32.mrf.mxu0
          %v588 = vadd.f32 %v474, %v587
          %v589 = vpop.f32.mrf.mxu0
          %590 = vmatprep.mubr.f32.mxu0 0.0
          %591 = vmatmul.mubr.f32.gmra.mxu0 %v399
          %v592 = vpop.f32.mrf.mxu0
          %v593 = vadd.f32 %v474, %v592
          %v594 = vpop.f32.mrf.mxu0
          %595 = vmatprep.mubr.f32.mxu0 0.0
          %596 = vmatmul.mubr.f32.gmra.mxu0 %v400
          %v597 = vpop.f32.mrf.mxu0
          %v598 = vadd.f32 %v474, %v597
          %v599 = vpop.f32.mrf.mxu0
          %600 = vmatprep.mubr.f32.mxu0 0.0
          %601 = vmatmul.mubr.f32.gmra.mxu0 %v401
          %v602 = vpop.f32.mrf.mxu0
          %v603 = vadd.f32 %v474, %v602
          %v604 = vpop.f32.mrf.mxu0
          %605 = vmatprep.mubr.f32.mxu0 0.0
          %606 = vmatmul.mubr.f32.gmra.mxu0 %v402
          %v607 = vpop.f32.mrf.mxu0
          %v608 = vadd.f32 %v474, %v607
          %v609 = vpop.f32.mrf.mxu0
          %610 = vmatprep.mubr.f32.mxu0 0.0
          %611 = vmatmul.mubr.f32.gmra.mxu0 %v403
          %v612 = vpop.f32.mrf.mxu0
          %v613 = vadd.f32 %v474, %v612
          %v614 = vpop.f32.mrf.mxu0
          %615 = vmatprep.mubr.f32.mxu0 0.0
          %616 = vmatmul.mubr.f32.gmra.mxu0 %v404
          %v617 = vpop.f32.mrf.mxu0
          %v618 = vadd.f32 %v474, %v617
          %v619 = vpop.f32.mrf.mxu0
          %620 = vmatprep.mubr.f32.mxu0 0.0
          %621 = vmatmul.mubr.f32.gmra.mxu0 %v405
          %v622 = vpop.f32.mrf.mxu0
          %v623 = vadd.f32 %v474, %v622
          %v624 = vpop.f32.mrf.mxu0
          %625 = vmatprep.mubr.f32.mxu0 0.0
          %626 = vmatmul.mubr.f32.gmra.mxu0 %v406
          %v627 = vpop.f32.mrf.mxu0
          %v628 = vadd.f32 %v474, %v627
          %v629 = vpop.f32.mrf.mxu0
          %630 = vmatprep.mubr.f32.mxu0 0.0
          %631 = vmatmul.mubr.f32.gmra.mxu0 %v407
          %v632 = vpop.f32.mrf.mxu0
          %v633 = vadd.f32 %v474, %v632
          %v634 = vpop.f32.mrf.mxu0
          %635 = vmatprep.mubr.f32.mxu0 0.0
          %636 = vmatmul.mubr.f32.gmra.mxu0 %v408
          %v637 = vpop.f32.mrf.mxu0
          %v638 = vadd.f32 %v474, %v637
          %v639 = vpop.f32.mrf.mxu0
          %640 = vmatprep.mubr.f32.mxu0 0.0
          %641 = vmatmul.mubr.f32.gmra.mxu0 %v409
          %v642 = vpop.f32.mrf.mxu0
          %v643 = vadd.f32 %v474, %v642
          %v644 = vpop.f32.mrf.mxu0
          %645 = vmatprep.mubr.f32.mxu0 0.0
          %646 = vmatmul.mubr.f32.gmra.mxu0 %v410
          %v647 = vpop.f32.mrf.mxu0
          %v648 = vadd.f32 %v474, %v647
          %v649 = vpop.f32.mrf.mxu0
          %650 = vmatprep.mubr.f32.mxu0 0.0
          %651 = vmatmul.mubr.f32.gmra.mxu0 %v411
          %v652 = vpop.f32.mrf.mxu0
          %v653 = vadd.f32 %v474, %v652
          %v654 = vpop.f32.mrf.mxu0
          %655 = vmatprep.mubr.f32.mxu0 0.0
          %656 = vmatmul.mubr.f32.gmra.mxu0 %v412
          %v657 = vpop.f32.mrf.mxu0
          %v658 = vadd.f32 %v474, %v657
          %v659 = vpop.f32.mrf.mxu0
          %660 = vmatprep.mubr.f32.mxu0 0.0
          %661 = vmatmul.mubr.f32.gmra.mxu0 %v413
          %v662 = vpop.f32.mrf.mxu0
          %v663 = vadd.f32 %v474, %v662
          %v664 = vpop.f32.mrf.mxu0
          %665 = vmatprep.mubr.f32.mxu0 0.0
          %666 = vmatmul.mubr.f32.gmra.mxu0 %v414
          %v667 = vpop.f32.mrf.mxu0
          %v668 = vadd.f32 %v474, %v667
          %v669 = vpop.f32.mrf.mxu0
          %670 = vmatprep.mubr.f32.mxu0 0.0
          %671 = vmatmul.mubr.f32.gmra.mxu0 %v415
          %v672 = vpop.f32.mrf.mxu0
          %v673 = vadd.f32 %v474, %v672
          %v674 = vpop.f32.mrf.mxu0
          %675 = vmatprep.mubr.f32.mxu0 0.0
          %676 = vmatmul.mubr.f32.gmra.mxu0 %v416
          %v677 = vpop.f32.mrf.mxu0
          %v678 = vadd.f32 %v474, %v677
          %v679 = vpop.f32.mrf.mxu0
          %680 = vmatprep.mubr.f32.mxu0 0.0
          %681 = vmatmul.mubr.f32.gmra.mxu0 %v417
          %v682 = vpop.f32.mrf.mxu0
          %v683 = vadd.f32 %v474, %v682
          %v684 = vpop.f32.mrf.mxu0
          %685 = vmatprep.mubr.f32.mxu0 0.0
          %686 = vmatmul.mubr.f32.gmra.mxu0 %v418
          %v687 = vpop.f32.mrf.mxu0
          %v688 = vadd.f32 %v474, %v687
          %v689 = vpop.f32.mrf.mxu0
          %690 = vmatprep.mubr.f32.mxu0 0.0
          %691 = vmatmul.mubr.f32.gmra.mxu0 %v419
          %v692 = vpop.f32.mrf.mxu0
          %v693 = vadd.f32 %v474, %v692
          %v694 = vpop.f32.mrf.mxu0
          %695 = vmatprep.mubr.f32.mxu0 0.0
          %696 = vmatmul.mubr.f32.gmra.mxu0 %v420
          %v697 = vpop.f32.mrf.mxu0
          %v698 = vadd.f32 %v474, %v697
          %v699 = vpop.f32.mrf.mxu0
          %700 = vmatprep.mubr.f32.mxu0 0.0
          %701 = vmatmul.mubr.f32.gmra.mxu0 %v421
          %v702 = vpop.f32.mrf.mxu0
          %v703 = vadd.f32 %v474, %v702
          %v704 = vpop.f32.mrf.mxu0
          %705 = vmatprep.mubr.f32.mxu0 0.0
          %706 = vmatmul.mubr.f32.gmra.mxu0 %v422
          %v707 = vpop.f32.mrf.mxu0
          %v708 = vadd.f32 %v474, %v707
          %v709 = vpop.f32.mrf.mxu0
          %710 = vmatprep.mubr.f32.mxu0 0.0
          %711 = vmatmul.mubr.f32.gmra.mxu0 %v423
          %v712 = vpop.f32.mrf.mxu0
          %v713 = vadd.f32 %v474, %v712
          %v714 = vpop.f32.mrf.mxu0
          %715 = vmatprep.mubr.f32.mxu0 0.0
          %716 = vmatmul.mubr.f32.gmra.mxu0 %v424
          %v717 = vpop.f32.mrf.mxu0
          %v718 = vadd.f32 %v474, %v717
          %v719 = vpop.f32.mrf.mxu0
          %720 = vmatprep.mubr.f32.mxu0 0.0
          %721 = vmatmul.mubr.f32.gmra.mxu0 %v425
          %v722 = vpop.f32.mrf.mxu0
          %v723 = vadd.f32 %v474, %v722
          %v724 = vpop.f32.mrf.mxu0
          %725 = vmatprep.mubr.f32.mxu0 0.0
          %726 = vmatmul.mubr.f32.gmra.mxu0 %v426
          %v727 = vpop.f32.mrf.mxu0
          %v728 = vadd.f32 %v474, %v727
          %v729 = vpop.f32.mrf.mxu0
          %730 = vmatprep.mubr.f32.mxu0 0.0
          %731 = vmatmul.mubr.f32.gmra.mxu0 %v427
          %v732 = vpop.f32.mrf.mxu0
          %v733 = vadd.f32 %v474, %v732
          %v734 = vpop.f32.mrf.mxu0
          %735 = vmatprep.mubr.f32.mxu0 0.0
          %736 = vmatmul.mubr.f32.gmra.mxu0 %v428
          %v737 = vpop.f32.mrf.mxu0
          %v738 = vadd.f32 %v474, %v737
          %v739 = vpop.f32.mrf.mxu0
          %740 = vmatprep.mubr.f32.mxu0 0.0
          %741 = vmatmul.mubr.f32.gmra.mxu0 %v429
          %v742 = vpop.f32.mrf.mxu0
          %v743 = vadd.f32 %v474, %v742
          %v744 = vpop.f32.mrf.mxu0
          %745 = vmatprep.mubr.f32.mxu0 0.0
          %746 = vmatmul.mubr.f32.gmra.mxu0 %v430
          %v747 = vpop.f32.mrf.mxu0
          %v748 = vadd.f32 %v474, %v747
          %v749 = vpop.f32.mrf.mxu0
          %750 = vmatprep.mubr.f32.mxu0 0.0
          %751 = vmatmul.mubr.f32.gmra.mxu0 %v431
          %v752 = vpop.f32.mrf.mxu0
          %v753 = vadd.f32 %v474, %v752
          %v754 = vpop.f32.mrf.mxu0
          %755 = vmatprep.mubr.f32.mxu0 0.0
          %756 = vmatmul.mubr.f32.gmra.mxu0 %v432
          %v757 = vpop.f32.mrf.mxu0
          %v758 = vadd.f32 %v474, %v757
          %v759 = vpop.f32.mrf.mxu0
          %760 = vmatprep.mubr.f32.mxu0 0.0
          %761 = vmatmul.mubr.f32.gmra.mxu0 %v433
          %v762 = vpop.f32.mrf.mxu0
          %v763 = vadd.f32 %v474, %v762
          %v764 = vpop.f32.mrf.mxu0
          %765 = vmatprep.mubr.f32.mxu0 0.0
          %766 = vmatmul.mubr.f32.gmra.mxu0 %v434
          %v767 = vpop.f32.mrf.mxu0
          %v768 = vadd.f32 %v474, %v767
          %v769 = vpop.f32.mrf.mxu0
          %770 = vmatprep.mubr.f32.mxu0 0.0
          %771 = vmatmul.mubr.f32.gmra.mxu0 %v435
          %v772 = vpop.f32.mrf.mxu0
          %v773 = vadd.f32 %v474, %v772
          %v774 = vpop.f32.mrf.mxu0
          %775 = vmatprep.mubr.f32.mxu0 0.0
          %776 = vmatmul.mubr.f32.gmra.mxu0 %v436
          %v777 = vpop.f32.mrf.mxu0
          %v778 = vadd.f32 %v474, %v777
          %v779 = vpop.f32.mrf.mxu0
          %780 = vmatprep.mubr.f32.mxu0 0.0
          %781 = vmatmul.mubr.f32.gmra.mxu0 %v437
          %v782 = vpop.f32.mrf.mxu0
          %v783 = vadd.f32 %v474, %v782
          %v784 = vpop.f32.mrf.mxu0
          %785 = vmatprep.mubr.f32.mxu0 0.0
          %786 = vmatmul.mubr.f32.gmra.mxu0 %v438
          %v787 = vpop.f32.mrf.mxu0
          %v788 = vadd.f32 %v474, %v787
          %v789 = vpop.f32.mrf.mxu0
          %790 = vmatprep.mubr.f32.mxu0 0.0
          %791 = vmatmul.mubr.f32.gmra.mxu0 %v439
          %v792 = vpop.f32.mrf.mxu0
          %v793 = vadd.f32 %v474, %v792
          %v794 = vpop.f32.mrf.mxu0
          %795 = vmatprep.mubr.f32.mxu0 0.0
          %796 = vmatmul.mubr.f32.gmra.mxu0 %v440
          %v797 = vpop.f32.mrf.mxu0
          %v798 = vadd.f32 %v474, %v797
          %v799 = vpop.f32.mrf.mxu0
          %800 = vmatprep.mubr.f32.mxu0 0.0
          %801 = vmatmul.mubr.f32.gmra.mxu0 %v441
          %v802 = vpop.f32.mrf.mxu0
          %v803 = vadd.f32 %v474, %v802
          %v804 = vpop.f32.mrf.mxu0
          %805 = vmatprep.mubr.f32.mxu0 0.0
          %806 = vmatmul.mubr.f32.gmra.mxu0 %v442
          %v807 = vpop.f32.mrf.mxu0
          %v808 = vadd.f32 %v474, %v807
          %v809 = vpop.f32.mrf.mxu0
          %810 = vmatprep.mubr.f32.mxu0 0.0
          %811 = vmatmul.mubr.f32.gmra.mxu0 %v443
          %v812 = vpop.f32.mrf.mxu0
          %v813 = vadd.f32 %v474, %v812
          %v814 = vpop.f32.mrf.mxu0
          %815 = vmatprep.mubr.f32.mxu0 0.0
          %816 = vmatmul.mubr.f32.gmra.mxu0 %v444
          %v817 = vpop.f32.mrf.mxu0
          %v818 = vadd.f32 %v474, %v817
          %v819 = vpop.f32.mrf.mxu0
          %820 = vmatprep.mubr.f32.mxu0 0.0
          %821 = vmatmul.mubr.f32.gmra.mxu0 %v445
          %v822 = vpop.f32.mrf.mxu0
          %v823 = vadd.f32 %v474, %v822
          %v824 = vpop.f32.mrf.mxu0
          %825 = vmatprep.mubr.f32.mxu0 0.0
          %826 = vmatmul.mubr.f32.gmra.mxu0 %v446
          %v827 = vpop.f32.mrf.mxu0
          %v828 = vadd.f32 %v474, %v827
          %v829 = vpop.f32.mrf.mxu0
          %830 = vmatprep.mubr.f32.mxu0 0.0
          %831 = vmatmul.mubr.f32.gmra.mxu0 %v447
          %v832 = vpop.f32.mrf.mxu0
          %v833 = vadd.f32 %v474, %v832
          %v834 = vpop.f32.mrf.mxu0
          %835 = vmatprep.mubr.f32.mxu0 0.0
          %836 = vmatmul.mubr.f32.gmra.mxu0 %v448
          %v837 = vpop.f32.mrf.mxu0
          %v838 = vadd.f32 %v474, %v837
          %v839 = vpop.f32.mrf.mxu0
          %840 = vmatprep.mubr.f32.mxu0 0.0
          %841 = vmatmul.mubr.f32.gmra.mxu0 %v449
          %v842 = vpop.f32.mrf.mxu0
          %v843 = vadd.f32 %v474, %v842
          %v844 = vpop.f32.mrf.mxu0
          %845 = vmatprep.mubr.f32.mxu0 0.0
          %846 = vmatmul.mubr.f32.gmra.mxu0 %v450
          %v847 = vpop.f32.mrf.mxu0
          %v848 = vadd.f32 %v474, %v847
          %v849 = vpop.f32.mrf.mxu0
          %850 = vmatprep.mubr.f32.mxu0 0.0
          %851 = vmatmul.mubr.f32.gmra.mxu0 %v451
          %v852 = vpop.f32.mrf.mxu0
          %v853 = vadd.f32 %v474, %v852
          %v854 = vpop.f32.mrf.mxu0
          %855 = vmatprep.mubr.f32.mxu0 0.0
          %856 = vmatmul.mubr.f32.gmra.mxu0 %v452
          %v857 = vpop.f32.mrf.mxu0
          %v858 = vadd.f32 %v474, %v857
          %v859 = vpop.f32.mrf.mxu0
          %860 = vdwg.mxu0
          %861 = vst [vmem:[#allocation2] sm:$0xff] %v543
          %862 = vst [vmem:[#allocation2 + $0x8] sm:$0xff] %v548
          %863 = vst [vmem:[#allocation2 + $0x10] sm:$0xff] %v553
          %864 = vst [vmem:[#allocation2 + $0x18] sm:$0xff] %v558
          %865 = vst [vmem:[#allocation2 + $0x20] sm:$0xff] %v563
          %866 = vst [vmem:[#allocation2 + $0x28] sm:$0xff] %v568
          %867 = vst [vmem:[#allocation2 + $0x30] sm:$0xff] %v573
          %868 = vst [vmem:[#allocation2 + $0x38] sm:$0xff] %v578
          %869 = vst [vmem:[#allocation2 + $0x40] sm:$0xff] %v583
          %870 = vst [vmem:[#allocation2 + $0x48] sm:$0xff] %v588
          %871 = vst [vmem:[#allocation2 + $0x50] sm:$0xff] %v593
          %872 = vst [vmem:[#allocation2 + $0x58] sm:$0xff] %v598
          %873 = vst [vmem:[#allocation2 + $0x60] sm:$0xff] %v603
          %874 = vst [vmem:[#allocation2 + $0x68] sm:$0xff] %v608
          %875 = vst [vmem:[#allocation2 + $0x70] sm:$0xff] %v613
          %876 = vst [vmem:[#allocation2 + $0x78] sm:$0xff] %v618
          %877 = vst [vmem:[#allocation2 + $0x80] sm:$0xff] %v623
          %878 = vst [vmem:[#allocation2 + $0x88] sm:$0xff] %v628
          %879 = vst [vmem:[#allocation2 + $0x90] sm:$0xff] %v633
          %880 = vst [vmem:[#allocation2 + $0x98] sm:$0xff] %v638
          %881 = vst [vmem:[#allocation2 + $0xa0] sm:$0xff] %v643
          %882 = vst [vmem:[#allocation2 + $0xa8] sm:$0xff] %v648
          %883 = vst [vmem:[#allocation2 + $0xb0] sm:$0xff] %v653
          %884 = vst [vmem:[#allocation2 + $0xb8] sm:$0xff] %v658
          %885 = vst [vmem:[#allocation2 + $0xc0] sm:$0xff] %v663
          %886 = vst [vmem:[#allocation2 + $0xc8] sm:$0xff] %v668
          %887 = vst [vmem:[#allocation2 + $0xd0] sm:$0xff] %v673
          %888 = vst [vmem:[#allocation2 + $0xd8] sm:$0xff] %v678
          %889 = vst [vmem:[#allocation2 + $0xe0] sm:$0xff] %v683
          %890 = vst [vmem:[#allocation2 + $0xe8] sm:$0xff] %v688
          %891 = vst [vmem:[#allocation2 + $0xf0] sm:$0xff] %v693
          %892 = vst [vmem:[#allocation2 + $0xf8] sm:$0xff] %v698
          %893 = vst [vmem:[#allocation2 + $0x100] sm:$0xff] %v703
          %894 = vst [vmem:[#allocation2 + $0x108] sm:$0xff] %v708
          %895 = vst [vmem:[#allocation2 + $0x110] sm:$0xff] %v713
          %896 = vst [vmem:[#allocation2 + $0x118] sm:$0xff] %v718
          %897 = vst [vmem:[#allocation2 + $0x120] sm:$0xff] %v723
          %898 = vst [vmem:[#allocation2 + $0x128] sm:$0xff] %v728
          %899 = vst [vmem:[#allocation2 + $0x130] sm:$0xff] %v733
          %900 = vst [vmem:[#allocation2 + $0x138] sm:$0xff] %v738
          %901 = vst [vmem:[#allocation2 + $0x140] sm:$0xff] %v743
          %902 = vst [vmem:[#allocation2 + $0x148] sm:$0xff] %v748
          %903 = vst [vmem:[#allocation2 + $0x150] sm:$0xff] %v753
          %904 = vst [vmem:[#allocation2 + $0x158] sm:$0xff] %v758
          %905 = vst [vmem:[#allocation2 + $0x160] sm:$0xff] %v763
          %906 = vst [vmem:[#allocation2 + $0x168] sm:$0xff] %v768
          %907 = vst [vmem:[#allocation2 + $0x170] sm:$0xff] %v773
          %908 = vst [vmem:[#allocation2 + $0x178] sm:$0xff] %v778
          %909 = vst [vmem:[#allocation2 + $0x180] sm:$0xff] %v783
          %910 = vst [vmem:[#allocation2 + $0x188] sm:$0xff] %v788
          %911 = vst [vmem:[#allocation2 + $0x190] sm:$0xff] %v793
          %912 = vst [vmem:[#allocation2 + $0x198] sm:$0xff] %v798
          %913 = vst [vmem:[#allocation2 + $0x1a0] sm:$0xff] %v803
          %914 = vst [vmem:[#allocation2 + $0x1a8] sm:$0xff] %v808
          %915 = vst [vmem:[#allocation2 + $0x1b0] sm:$0xff] %v813
          %916 = vst [vmem:[#allocation2 + $0x1b8] sm:$0xff] %v818
          %917 = vst [vmem:[#allocation2 + $0x1c0] sm:$0xff] %v823
          %918 = vst [vmem:[#allocation2 + $0x1c8] sm:$0xff] %v828
          %919 = vst [vmem:[#allocation2 + $0x1d0] sm:$0xff] %v833
          %920 = vst [vmem:[#allocation2 + $0x1d8] sm:$0xff] %v838
          %921 = vst [vmem:[#allocation2 + $0x1e0] sm:$0xff] %v843
          %922 = vst [vmem:[#allocation2 + $0x1e8] sm:$0xff] %v848
          %923 = vst [vmem:[#allocation2 + $0x1f0] sm:$0xff] %v853
          %924 = vst [vmem:[#allocation2 + $0x1f8] sm:$0xff] %v858
          %vm925 = vcmask 7168
          %926 = vst.msk [vmem:[#allocation3] sm:$0xff] %vm925, -inf
          %927 = vst.msk [vmem:[#allocation3 + $0x8] sm:$0xff] %vm925, -inf
          %928 = vst.msk [vmem:[#allocation3 + $0x10] sm:$0xff] %vm925, -inf
          %929 = vst.msk [vmem:[#allocation3 + $0x18] sm:$0xff] %vm925, -inf
          %930 = vst.msk [vmem:[#allocation3 + $0x20] sm:$0xff] %vm925, -inf
          %931 = vst.msk [vmem:[#allocation3 + $0x28] sm:$0xff] %vm925, -inf
          %932 = vst.msk [vmem:[#allocation3 + $0x30] sm:$0xff] %vm925, -inf
          %933 = vst.msk [vmem:[#allocation3 + $0x38] sm:$0xff] %vm925, -inf
          %934 = vst.msk [vmem:[#allocation3 + $0x40] sm:$0xff] %vm925, -inf
          %935 = vst.msk [vmem:[#allocation3 + $0x48] sm:$0xff] %vm925, -inf
          %936 = vst.msk [vmem:[#allocation3 + $0x50] sm:$0xff] %vm925, -inf
          %937 = vst.msk [vmem:[#allocation3 + $0x58] sm:$0xff] %vm925, -inf
          %938 = vst.msk [vmem:[#allocation3 + $0x60] sm:$0xff] %vm925, -inf
          %939 = vst.msk [vmem:[#allocation3 + $0x68] sm:$0xff] %vm925, -inf
          %940 = vst.msk [vmem:[#allocation3 + $0x70] sm:$0xff] %vm925, -inf
          %941 = vst.msk [vmem:[#allocation3 + $0x78] sm:$0xff] %vm925, -inf
          %942 = vst.msk [vmem:[#allocation3 + $0x80] sm:$0xff] %vm925, -inf
          %943 = vst.msk [vmem:[#allocation3 + $0x88] sm:$0xff] %vm925, -inf
          %944 = vst.msk [vmem:[#allocation3 + $0x90] sm:$0xff] %vm925, -inf
          %945 = vst.msk [vmem:[#allocation3 + $0x98] sm:$0xff] %vm925, -inf
          %946 = vst.msk [vmem:[#allocation3 + $0xa0] sm:$0xff] %vm925, -inf
          %947 = vst.msk [vmem:[#allocation3 + $0xa8] sm:$0xff] %vm925, -inf
          %948 = vst.msk [vmem:[#allocation3 + $0xb0] sm:$0xff] %vm925, -inf
          %949 = vst.msk [vmem:[#allocation3 + $0xb8] sm:$0xff] %vm925, -inf
          %950 = vst.msk [vmem:[#allocation3 + $0xc0] sm:$0xff] %vm925, -inf
          %951 = vst.msk [vmem:[#allocation3 + $0xc8] sm:$0xff] %vm925, -inf
          %952 = vst.msk [vmem:[#allocation3 + $0xd0] sm:$0xff] %vm925, -inf
          %953 = vst.msk [vmem:[#allocation3 + $0xd8] sm:$0xff] %vm925, -inf
          %954 = vst.msk [vmem:[#allocation3 + $0xe0] sm:$0xff] %vm925, -inf
          %955 = vst.msk [vmem:[#allocation3 + $0xe8] sm:$0xff] %vm925, -inf
          %956 = vst.msk [vmem:[#allocation3 + $0xf0] sm:$0xff] %vm925, -inf
          %957 = vst.msk [vmem:[#allocation3 + $0xf8] sm:$0xff] %vm925, -inf
          %958 = vst.msk [vmem:[#allocation3 + $0x100] sm:$0xff] %vm925, -inf
          %959 = vst.msk [vmem:[#allocation3 + $0x108] sm:$0xff] %vm925, -inf
          %960 = vst.msk [vmem:[#allocation3 + $0x110] sm:$0xff] %vm925, -inf
          %961 = vst.msk [vmem:[#allocation3 + $0x118] sm:$0xff] %vm925, -inf
          %962 = vst.msk [vmem:[#allocation3 + $0x120] sm:$0xff] %vm925, -inf
          %963 = vst.msk [vmem:[#allocation3 + $0x128] sm:$0xff] %vm925, -inf
          %964 = vst.msk [vmem:[#allocation3 + $0x130] sm:$0xff] %vm925, -inf
          %965 = vst.msk [vmem:[#allocation3 + $0x138] sm:$0xff] %vm925, -inf
          %966 = vst.msk [vmem:[#allocation3 + $0x140] sm:$0xff] %vm925, -inf
          %967 = vst.msk [vmem:[#allocation3 + $0x148] sm:$0xff] %vm925, -inf
          %968 = vst.msk [vmem:[#allocation3 + $0x150] sm:$0xff] %vm925, -inf
          %969 = vst.msk [vmem:[#allocation3 + $0x158] sm:$0xff] %vm925, -inf
          %970 = vst.msk [vmem:[#allocation3 + $0x160] sm:$0xff] %vm925, -inf
          %971 = vst.msk [vmem:[#allocation3 + $0x168] sm:$0xff] %vm925, -inf
          %972 = vst.msk [vmem:[#allocation3 + $0x170] sm:$0xff] %vm925, -inf
          %973 = vst.msk [vmem:[#allocation3 + $0x178] sm:$0xff] %vm925, -inf
          %974 = vst.msk [vmem:[#allocation3 + $0x180] sm:$0xff] %vm925, -inf
          %975 = vst.msk [vmem:[#allocation3 + $0x188] sm:$0xff] %vm925, -inf
          %976 = vst.msk [vmem:[#allocation3 + $0x190] sm:$0xff] %vm925, -inf
          %977 = vst.msk [vmem:[#allocation3 + $0x198] sm:$0xff] %vm925, -inf
          %978 = vst.msk [vmem:[#allocation3 + $0x1a0] sm:$0xff] %vm925, -inf
          %979 = vst.msk [vmem:[#allocation3 + $0x1a8] sm:$0xff] %vm925, -inf
          %980 = vst.msk [vmem:[#allocation3 + $0x1b0] sm:$0xff] %vm925, -inf
          %981 = vst.msk [vmem:[#allocation3 + $0x1b8] sm:$0xff] %vm925, -inf
          %982 = vst.msk [vmem:[#allocation3 + $0x1c0] sm:$0xff] %vm925, -inf
          %983 = vst.msk [vmem:[#allocation3 + $0x1c8] sm:$0xff] %vm925, -inf
          %984 = vst.msk [vmem:[#allocation3 + $0x1d0] sm:$0xff] %vm925, -inf
          %985 = vst.msk [vmem:[#allocation3 + $0x1d8] sm:$0xff] %vm925, -inf
          %986 = vst.msk [vmem:[#allocation3 + $0x1e0] sm:$0xff] %vm925, -inf
          %987 = vst.msk [vmem:[#allocation3 + $0x1e8] sm:$0xff] %vm925, -inf
          %988 = vst.msk [vmem:[#allocation3 + $0x1f0] sm:$0xff] %vm925, -inf
          %989 = vst.msk [vmem:[#allocation3 + $0x1f8] sm:$0xff] %vm925, -inf
          %990 = vst.msk [vmem:[#allocation4] sm:$0xff] %vm925, 0.0
          %991 = vst.msk [vmem:[#allocation4 + $0x8] sm:$0xff] %vm925, 0.0
          %992 = vst.msk [vmem:[#allocation4 + $0x10] sm:$0xff] %vm925, 0.0
          %993 = vst.msk [vmem:[#allocation4 + $0x18] sm:$0xff] %vm925, 0.0
          %994 = vst.msk [vmem:[#allocation4 + $0x20] sm:$0xff] %vm925, 0.0
          %995 = vst.msk [vmem:[#allocation4 + $0x28] sm:$0xff] %vm925, 0.0
          %996 = vst.msk [vmem:[#allocation4 + $0x30] sm:$0xff] %vm925, 0.0
          %997 = vst.msk [vmem:[#allocation4 + $0x38] sm:$0xff] %vm925, 0.0
          %998 = vst.msk [vmem:[#allocation4 + $0x40] sm:$0xff] %vm925, 0.0
          %999 = vst.msk [vmem:[#allocation4 + $0x48] sm:$0xff] %vm925, 0.0
          %1000 = vst.msk [vmem:[#allocation4 + $0x50] sm:$0xff] %vm925, 0.0
          %1001 = vst.msk [vmem:[#allocation4 + $0x58] sm:$0xff] %vm925, 0.0
          %1002 = vst.msk [vmem:[#allocation4 + $0x60] sm:$0xff] %vm925, 0.0
          %1003 = vst.msk [vmem:[#allocation4 + $0x68] sm:$0xff] %vm925, 0.0
          %1004 = vst.msk [vmem:[#allocation4 + $0x70] sm:$0xff] %vm925, 0.0
          %1005 = vst.msk [vmem:[#allocation4 + $0x78] sm:$0xff] %vm925, 0.0
          %1006 = vst.msk [vmem:[#allocation4 + $0x80] sm:$0xff] %vm925, 0.0
          %1007 = vst.msk [vmem:[#allocation4 + $0x88] sm:$0xff] %vm925, 0.0
          %1008 = vst.msk [vmem:[#allocation4 + $0x90] sm:$0xff] %vm925, 0.0
          %1009 = vst.msk [vmem:[#allocation4 + $0x98] sm:$0xff] %vm925, 0.0
          %1010 = vst.msk [vmem:[#allocation4 + $0xa0] sm:$0xff] %vm925, 0.0
          %1011 = vst.msk [vmem:[#allocation4 + $0xa8] sm:$0xff] %vm925, 0.0
          %1012 = vst.msk [vmem:[#allocation4 + $0xb0] sm:$0xff] %vm925, 0.0
          %1013 = vst.msk [vmem:[#allocation4 + $0xb8] sm:$0xff] %vm925, 0.0
          %1014 = vst.msk [vmem:[#allocation4 + $0xc0] sm:$0xff] %vm925, 0.0
          %1015 = vst.msk [vmem:[#allocation4 + $0xc8] sm:$0xff] %vm925, 0.0
          %1016 = vst.msk [vmem:[#allocation4 + $0xd0] sm:$0xff] %vm925, 0.0
          %1017 = vst.msk [vmem:[#allocation4 + $0xd8] sm:$0xff] %vm925, 0.0
          %1018 = vst.msk [vmem:[#allocation4 + $0xe0] sm:$0xff] %vm925, 0.0
          %1019 = vst.msk [vmem:[#allocation4 + $0xe8] sm:$0xff] %vm925, 0.0
          %1020 = vst.msk [vmem:[#allocation4 + $0xf0] sm:$0xff] %vm925, 0.0
          %1021 = vst.msk [vmem:[#allocation4 + $0xf8] sm:$0xff] %vm925, 0.0
          %1022 = vst.msk [vmem:[#allocation4 + $0x100] sm:$0xff] %vm925, 0.0
          %1023 = vst.msk [vmem:[#allocation4 + $0x108] sm:$0xff] %vm925, 0.0
          %1024 = vst.msk [vmem:[#allocation4 + $0x110] sm:$0xff] %vm925, 0.0
          %1025 = vst.msk [vmem:[#allocation4 + $0x118] sm:$0xff] %vm925, 0.0
          %1026 = vst.msk [vmem:[#allocation4 + $0x120] sm:$0xff] %vm925, 0.0
          %1027 = vst.msk [vmem:[#allocation4 + $0x128] sm:$0xff] %vm925, 0.0
          %1028 = vst.msk [vmem:[#allocation4 + $0x130] sm:$0xff] %vm925, 0.0
          %1029 = vst.msk [vmem:[#allocation4 + $0x138] sm:$0xff] %vm925, 0.0
          %1030 = vst.msk [vmem:[#allocation4 + $0x140] sm:$0xff] %vm925, 0.0
          %1031 = vst.msk [vmem:[#allocation4 + $0x148] sm:$0xff] %vm925, 0.0
          %1032 = vst.msk [vmem:[#allocation4 + $0x150] sm:$0xff] %vm925, 0.0
          %1033 = vst.msk [vmem:[#allocation4 + $0x158] sm:$0xff] %vm925, 0.0
          %1034 = vst.msk [vmem:[#allocation4 + $0x160] sm:$0xff] %vm925, 0.0
          %1035 = vst.msk [vmem:[#allocation4 + $0x168] sm:$0xff] %vm925, 0.0
          %1036 = vst.msk [vmem:[#allocation4 + $0x170] sm:$0xff] %vm925, 0.0
          %1037 = vst.msk [vmem:[#allocation4 + $0x178] sm:$0xff] %vm925, 0.0
          %1038 = vst.msk [vmem:[#allocation4 + $0x180] sm:$0xff] %vm925, 0.0
          %1039 = vst.msk [vmem:[#allocation4 + $0x188] sm:$0xff] %vm925, 0.0
          %1040 = vst.msk [vmem:[#allocation4 + $0x190] sm:$0xff] %vm925, 0.0
          %1041 = vst.msk [vmem:[#allocation4 + $0x198] sm:$0xff] %vm925, 0.0
          %1042 = vst.msk [vmem:[#allocation4 + $0x1a0] sm:$0xff] %vm925, 0.0
          %1043 = vst.msk [vmem:[#allocation4 + $0x1a8] sm:$0xff] %vm925, 0.0
          %1044 = vst.msk [vmem:[#allocation4 + $0x1b0] sm:$0xff] %vm925, 0.0
          %1045 = vst.msk [vmem:[#allocation4 + $0x1b8] sm:$0xff] %vm925, 0.0
          %1046 = vst.msk [vmem:[#allocation4 + $0x1c0] sm:$0xff] %vm925, 0.0
          %1047 = vst.msk [vmem:[#allocation4 + $0x1c8] sm:$0xff] %vm925, 0.0
          %1048 = vst.msk [vmem:[#allocation4 + $0x1d0] sm:$0xff] %vm925, 0.0
          %1049 = vst.msk [vmem:[#allocation4 + $0x1d8] sm:$0xff] %vm925, 0.0
          %1050 = vst.msk [vmem:[#allocation4 + $0x1e0] sm:$0xff] %vm925, 0.0
          %1051 = vst.msk [vmem:[#allocation4 + $0x1e8] sm:$0xff] %vm925, 0.0
          %1052 = vst.msk [vmem:[#allocation4 + $0x1f0] sm:$0xff] %vm925, 0.0
          %1053 = vst.msk [vmem:[#allocation4 + $0x1f8] sm:$0xff] %vm925, 0.0
          %1054 = vst [vmem:[#allocation5] sm:$0xff] 0.0
          %1055 = vst [vmem:[#allocation5 + $0x8] sm:$0xff] 0.0
          %1056 = vst [vmem:[#allocation5 + $0x10] sm:$0xff] 0.0
          %1057 = vst [vmem:[#allocation5 + $0x18] sm:$0xff] 0.0
          %1058 = vst [vmem:[#allocation5 + $0x20] sm:$0xff] 0.0
          %1059 = vst [vmem:[#allocation5 + $0x28] sm:$0xff] 0.0
          %1060 = vst [vmem:[#allocation5 + $0x30] sm:$0xff] 0.0
          %1061 = vst [vmem:[#allocation5 + $0x38] sm:$0xff] 0.0
          %1062 = vst [vmem:[#allocation5 + $0x40] sm:$0xff] 0.0
          %1063 = vst [vmem:[#allocation5 + $0x48] sm:$0xff] 0.0
          %1064 = vst [vmem:[#allocation5 + $0x50] sm:$0xff] 0.0
          %1065 = vst [vmem:[#allocation5 + $0x58] sm:$0xff] 0.0
          %1066 = vst [vmem:[#allocation5 + $0x60] sm:$0xff] 0.0
          %1067 = vst [vmem:[#allocation5 + $0x68] sm:$0xff] 0.0
          %1068 = vst [vmem:[#allocation5 + $0x70] sm:$0xff] 0.0
          %1069 = vst [vmem:[#allocation5 + $0x78] sm:$0xff] 0.0
          %1070 = vst [vmem:[#allocation5 + $0x80] sm:$0xff] 0.0
          %1071 = vst [vmem:[#allocation5 + $0x88] sm:$0xff] 0.0
          %1072 = vst [vmem:[#allocation5 + $0x90] sm:$0xff] 0.0
          %1073 = vst [vmem:[#allocation5 + $0x98] sm:$0xff] 0.0
          %1074 = vst [vmem:[#allocation5 + $0xa0] sm:$0xff] 0.0
          %1075 = vst [vmem:[#allocation5 + $0xa8] sm:$0xff] 0.0
          %1076 = vst [vmem:[#allocation5 + $0xb0] sm:$0xff] 0.0
          %1077 = vst [vmem:[#allocation5 + $0xb8] sm:$0xff] 0.0
          %1078 = vst [vmem:[#allocation5 + $0xc0] sm:$0xff] 0.0
          %1079 = vst [vmem:[#allocation5 + $0xc8] sm:$0xff] 0.0
          %1080 = vst [vmem:[#allocation5 + $0xd0] sm:$0xff] 0.0
          %1081 = vst [vmem:[#allocation5 + $0xd8] sm:$0xff] 0.0
          %1082 = vst [vmem:[#allocation5 + $0xe0] sm:$0xff] 0.0
          %1083 = vst [vmem:[#allocation5 + $0xe8] sm:$0xff] 0.0
          %1084 = vst [vmem:[#allocation5 + $0xf0] sm:$0xff] 0.0
          %1085 = vst [vmem:[#allocation5 + $0xf8] sm:$0xff] 0.0
          %1086 = vst [vmem:[#allocation5 + $0x100] sm:$0xff] 0.0
          %1087 = vst [vmem:[#allocation5 + $0x108] sm:$0xff] 0.0
          %1088 = vst [vmem:[#allocation5 + $0x110] sm:$0xff] 0.0
          %1089 = vst [vmem:[#allocation5 + $0x118] sm:$0xff] 0.0
          %1090 = vst [vmem:[#allocation5 + $0x120] sm:$0xff] 0.0
          %1091 = vst [vmem:[#allocation5 + $0x128] sm:$0xff] 0.0
          %1092 = vst [vmem:[#allocation5 + $0x130] sm:$0xff] 0.0
          %1093 = vst [vmem:[#allocation5 + $0x138] sm:$0xff] 0.0
          %1094 = vst [vmem:[#allocation5 + $0x140] sm:$0xff] 0.0
          %1095 = vst [vmem:[#allocation5 + $0x148] sm:$0xff] 0.0
          %1096 = vst [vmem:[#allocation5 + $0x150] sm:$0xff] 0.0
          %1097 = vst [vmem:[#allocation5 + $0x158] sm:$0xff] 0.0
          %1098 = vst [vmem:[#allocation5 + $0x160] sm:$0xff] 0.0
          %1099 = vst [vmem:[#allocation5 + $0x168] sm:$0xff] 0.0
          %1100 = vst [vmem:[#allocation5 + $0x170] sm:$0xff] 0.0
          %1101 = vst [vmem:[#allocation5 + $0x178] sm:$0xff] 0.0
          %1102 = vst [vmem:[#allocation5 + $0x180] sm:$0xff] 0.0
          %1103 = vst [vmem:[#allocation5 + $0x188] sm:$0xff] 0.0
          %1104 = vst [vmem:[#allocation5 + $0x190] sm:$0xff] 0.0
          %1105 = vst [vmem:[#allocation5 + $0x198] sm:$0xff] 0.0
          %1106 = vst [vmem:[#allocation5 + $0x1a0] sm:$0xff] 0.0
          %1107 = vst [vmem:[#allocation5 + $0x1a8] sm:$0xff] 0.0
          %1108 = vst [vmem:[#allocation5 + $0x1b0] sm:$0xff] 0.0
          %1109 = vst [vmem:[#allocation5 + $0x1b8] sm:$0xff] 0.0
          %1110 = vst [vmem:[#allocation5 + $0x1c0] sm:$0xff] 0.0
          %1111 = vst [vmem:[#allocation5 + $0x1c8] sm:$0xff] 0.0
          %1112 = vst [vmem:[#allocation5 + $0x1d0] sm:$0xff] 0.0
          %1113 = vst [vmem:[#allocation5 + $0x1d8] sm:$0xff] 0.0
          %1114 = vst [vmem:[#allocation5 + $0x1e0] sm:$0xff] 0.0
          %1115 = vst [vmem:[#allocation5 + $0x1e8] sm:$0xff] 0.0
          %1116 = vst [vmem:[#allocation5 + $0x1f0] sm:$0xff] 0.0
          %1117 = vst [vmem:[#allocation5 + $0x1f8] sm:$0xff] 0.0
        $region64: #{self_attention.1} parent=43 // pred_fallthru
          _
        %v1118 = vld [vmem:[%s340] sm:$0xff]
        %v1119 = vld [vmem:[%s340 + $0x8] sm:$0xff]
        %v1120 = vld [vmem:[%s340 + $0x10] sm:$0xff]
        %v1121 = vld [vmem:[%s340 + $0x18] sm:$0xff]
        %v1122 = vld [vmem:[%s340 + $0x20] sm:$0xff]
        %v1123 = vld [vmem:[%s340 + $0x28] sm:$0xff]
        %v1124 = vld [vmem:[%s340 + $0x30] sm:$0xff]
        %v1125 = vld [vmem:[%s340 + $0x38] sm:$0xff]
        %v1126 = vld [vmem:[%s340 + $0x40] sm:$0xff]
        %v1127 = vld [vmem:[%s340 + $0x48] sm:$0xff]
        %v1128 = vld [vmem:[%s340 + $0x50] sm:$0xff]
        %v1129 = vld [vmem:[%s340 + $0x58] sm:$0xff]
        %v1130 = vld [vmem:[%s340 + $0x60] sm:$0xff]
        %v1131 = vld [vmem:[%s340 + $0x68] sm:$0xff]
        %v1132 = vld [vmem:[%s340 + $0x70] sm:$0xff]
        %v1133 = vld [vmem:[%s340 + $0x78] sm:$0xff]
        %v1134 = vld [vmem:[%s340 + $0x80] sm:$0xff]
        %v1135 = vld [vmem:[%s340 + $0x88] sm:$0xff]
        %v1136 = vld [vmem:[%s340 + $0x90] sm:$0xff]
        %v1137 = vld [vmem:[%s340 + $0x98] sm:$0xff]
        %v1138 = vld [vmem:[%s340 + $0xa0] sm:$0xff]
        %v1139 = vld [vmem:[%s340 + $0xa8] sm:$0xff]
        %v1140 = vld [vmem:[%s340 + $0xb0] sm:$0xff]
        %v1141 = vld [vmem:[%s340 + $0xb8] sm:$0xff]
        %v1142 = vld [vmem:[%s340 + $0xc0] sm:$0xff]
        %v1143 = vld [vmem:[%s340 + $0xc8] sm:$0xff]
        %v1144 = vld [vmem:[%s340 + $0xd0] sm:$0xff]
        %v1145 = vld [vmem:[%s340 + $0xd8] sm:$0xff]
        %v1146 = vld [vmem:[%s340 + $0xe0] sm:$0xff]
        %v1147 = vld [vmem:[%s340 + $0xe8] sm:$0xff]
        %v1148 = vld [vmem:[%s340 + $0xf0] sm:$0xff]
        %v1149 = vld [vmem:[%s340 + $0xf8] sm:$0xff]
        %v1150 = vld [vmem:[#allocation12] sm:$0xff]
        %v1151 = vld [vmem:[#allocation12 + $0x8] sm:$0xff]
        %v1152 = vld [vmem:[#allocation12 + $0x10] sm:$0xff]
        %v1153 = vld [vmem:[#allocation12 + $0x18] sm:$0xff]
        %v1154 = vld [vmem:[#allocation12 + $0x20] sm:$0xff]
        %v1155 = vld [vmem:[#allocation12 + $0x28] sm:$0xff]
        %v1156 = vld [vmem:[#allocation12 + $0x30] sm:$0xff]
        %v1157 = vld [vmem:[#allocation12 + $0x38] sm:$0xff]
        %v1158 = vld [vmem:[#allocation12 + $0x40] sm:$0xff]
        %v1159 = vld [vmem:[#allocation12 + $0x48] sm:$0xff]
        %v1160 = vld [vmem:[#allocation12 + $0x50] sm:$0xff]
        %v1161 = vld [vmem:[#allocation12 + $0x58] sm:$0xff]
        %v1162 = vld [vmem:[#allocation12 + $0x60] sm:$0xff]
        %v1163 = vld [vmem:[#allocation12 + $0x68] sm:$0xff]
        %v1164 = vld [vmem:[#allocation12 + $0x70] sm:$0xff]
        %v1165 = vld [vmem:[#allocation12 + $0x78] sm:$0xff]
        %v1166 = vld [vmem:[#allocation12 + $0x80] sm:$0xff]
        %v1167 = vld [vmem:[#allocation12 + $0x88] sm:$0xff]
        %v1168 = vld [vmem:[#allocation12 + $0x90] sm:$0xff]
        %v1169 = vld [vmem:[#allocation12 + $0x98] sm:$0xff]
        %v1170 = vld [vmem:[#allocation12 + $0xa0] sm:$0xff]
        %v1171 = vld [vmem:[#allocation12 + $0xa8] sm:$0xff]
        %v1172 = vld [vmem:[#allocation12 + $0xb0] sm:$0xff]
        %v1173 = vld [vmem:[#allocation12 + $0xb8] sm:$0xff]
        %v1174 = vld [vmem:[#allocation12 + $0xc0] sm:$0xff]
        %v1175 = vld [vmem:[#allocation12 + $0xc8] sm:$0xff]
        %v1176 = vld [vmem:[#allocation12 + $0xd0] sm:$0xff]
        %v1177 = vld [vmem:[#allocation12 + $0xd8] sm:$0xff]
        %v1178 = vld [vmem:[#allocation12 + $0xe0] sm:$0xff]
        %v1179 = vld [vmem:[#allocation12 + $0xe8] sm:$0xff]
        %v1180 = vld [vmem:[#allocation12 + $0xf0] sm:$0xff]
        %v1181 = vld [vmem:[#allocation12 + $0xf8] sm:$0xff]
        %v1182 = vld [vmem:[%s5] sm:$0x3]
        %v1184 = vlaneseq
        %v1185 = vshrl.u32 %v1184, 7
        %v1186 = vsub.s32 0, %v1185
        %v1187 = vrot.slane %v1182, %v1186
        %v1188 = vlaneseq
        %v1189 = vshrl.u32 %v1188, 7
        %v1190 = vsub.s32 1, %v1189
        %v1191 = vrot.slane %v1182, %v1190
        %1194 = vmatprep.subr.mxu0 %v1181
        %1195 = vmatpush1.msra.mxu0 %v1180
        %1196 = vmatprep.subr.mxu0 %v1179
        %1197 = vmatpush1.msra.mxu0 %v1178
        %1198 = vmatprep.subr.mxu0 %v1177
        %1199 = vmatpush1.msra.mxu0 %v1176
        %1200 = vmatprep.subr.mxu0 %v1175
        %1201 = vmatpush1.msra.mxu0 %v1174
        %1202 = vmatprep.subr.mxu0 %v1173
        %1203 = vmatpush1.msra.mxu0 %v1172
        %1204 = vmatprep.subr.mxu0 %v1171
        %1205 = vmatpush1.msra.mxu0 %v1170
        %1206 = vmatprep.subr.mxu0 %v1169
        %1207 = vmatpush1.msra.mxu0 %v1168
        %1208 = vmatprep.subr.mxu0 %v1167
        %1209 = vmatpush1.msra.mxu0 %v1166
        %1210 = vmatprep.subr.mxu0 %v1165
        %1211 = vmatpush1.msra.mxu0 %v1164
        %1212 = vmatprep.subr.mxu0 %v1163
        %1213 = vmatpush1.msra.mxu0 %v1162
        %1214 = vmatprep.subr.mxu0 %v1161
        %1215 = vmatpush1.msra.mxu0 %v1160
        %1216 = vmatprep.subr.mxu0 %v1159
        %1217 = vmatpush1.msra.mxu0 %v1158
        %1218 = vmatprep.subr.mxu0 %v1157
        %1219 = vmatpush1.msra.mxu0 %v1156
        %1220 = vmatprep.subr.mxu0 %v1155
        %1221 = vmatpush1.msra.mxu0 %v1154
        %1222 = vmatprep.subr.mxu0 %v1153
        %1223 = vmatpush1.msra.mxu0 %v1152
        %1224 = vmatprep.subr.mxu0 %v1151
        %1225 = vmatpush1.msra.mxu0 %v1150
        %1226 = vmatprep.subr.mxu0 0.0
        %1227 = vmatpush2.msra.mxu0 0.0
        %1228 = vmatprep.subr.mxu0 0.0
        %1229 = vmatpush2.msra.mxu0 0.0
        %1230 = vmatprep.subr.mxu0 0.0
        %1231 = vmatpush2.msra.mxu0 0.0
        %1232 = vmatprep.subr.mxu0 0.0
        %1233 = vmatpush2.msra.mxu0 0.0
        %1234 = vmatprep.subr.mxu0 0.0
        %1235 = vmatpush2.msra.mxu0 0.0
        %1236 = vmatprep.subr.mxu0 0.0
        %1237 = vmatpush2.msra.mxu0 0.0
        %1238 = vmatprep.subr.mxu0 0.0
        %1239 = vmatpush2.msra.mxu0 0.0
        %1240 = vmatprep.subr.mxu0 0.0
        %1241 = vmatpush2.msra.mxu0 0.0
        %1242 = vmatprep.subr.mxu0 0.0
        %1243 = vmatpush2.msra.mxu0 0.0
        %1244 = vmatprep.subr.mxu0 0.0
        %1245 = vmatpush2.msra.mxu0 0.0
        %1246 = vmatprep.subr.mxu0 0.0
        %1247 = vmatpush2.msra.mxu0 0.0
        %1248 = vmatprep.subr.mxu0 0.0
        %1249 = vmatpush2.msra.mxu0 0.0
        %1250 = vmatprep.subr.mxu0 0.0
        %1251 = vmatpush2.msra.mxu0 0.0
        %1252 = vmatprep.subr.mxu0 0.0
        %1253 = vmatpush2.msra.mxu0 0.0
        %1254 = vmatprep.subr.mxu0 0.0
        %1255 = vmatpush2.msra.mxu0 0.0
        %1256 = vmatprep.subr.mxu0 0.0
        %1257 = vmatpush2.msra.mxu0 0.0
        %1258 = vmatprep.mubr.f32.mxu0 0.0
        %1259 = vmatmul.mubr.f32.gmra.mxu0 %v1118
        %v1260 = vpop.f32.mrf.mxu0
        %v1261 = vadd.f32 %v1187, %v1260
        %v1262 = vpop.f32.mrf.mxu0
        %v1263 = vadd.f32 %v1191, %v1262
        %1264 = vmatprep.mubr.f32.mxu0 0.0
        %1265 = vmatmul.mubr.f32.gmra.mxu0 %v1119
        %v1266 = vpop.f32.mrf.mxu0
        %v1267 = vadd.f32 %v1187, %v1266
        %v1268 = vpop.f32.mrf.mxu0
        %v1269 = vadd.f32 %v1191, %v1268
        %1270 = vmatprep.mubr.f32.mxu0 0.0
        %1271 = vmatmul.mubr.f32.gmra.mxu0 %v1120
        %v1272 = vpop.f32.mrf.mxu0
        %v1273 = vadd.f32 %v1187, %v1272
        %v1274 = vpop.f32.mrf.mxu0
        %v1275 = vadd.f32 %v1191, %v1274
        %1276 = vmatprep.mubr.f32.mxu0 0.0
        %1277 = vmatmul.mubr.f32.gmra.mxu0 %v1121
        %v1278 = vpop.f32.mrf.mxu0
        %v1279 = vadd.f32 %v1187, %v1278
        %v1280 = vpop.f32.mrf.mxu0
        %v1281 = vadd.f32 %v1191, %v1280
        %1282 = vmatprep.mubr.f32.mxu0 0.0
        %1283 = vmatmul.mubr.f32.gmra.mxu0 %v1122
        %v1284 = vpop.f32.mrf.mxu0
        %v1285 = vadd.f32 %v1187, %v1284
        %v1286 = vpop.f32.mrf.mxu0
        %v1287 = vadd.f32 %v1191, %v1286
        %1288 = vmatprep.mubr.f32.mxu0 0.0
        %1289 = vmatmul.mubr.f32.gmra.mxu0 %v1123
        %v1290 = vpop.f32.mrf.mxu0
        %v1291 = vadd.f32 %v1187, %v1290
        %v1292 = vpop.f32.mrf.mxu0
        %v1293 = vadd.f32 %v1191, %v1292
        %1294 = vmatprep.mubr.f32.mxu0 0.0
        %1295 = vmatmul.mubr.f32.gmra.mxu0 %v1124
        %v1296 = vpop.f32.mrf.mxu0
        %v1297 = vadd.f32 %v1187, %v1296
        %v1298 = vpop.f32.mrf.mxu0
        %v1299 = vadd.f32 %v1191, %v1298
        %1300 = vmatprep.mubr.f32.mxu0 0.0
        %1301 = vmatmul.mubr.f32.gmra.mxu0 %v1125
        %v1302 = vpop.f32.mrf.mxu0
        %v1303 = vadd.f32 %v1187, %v1302
        %v1304 = vpop.f32.mrf.mxu0
        %v1305 = vadd.f32 %v1191, %v1304
        %1306 = vmatprep.mubr.f32.mxu0 0.0
        %1307 = vmatmul.mubr.f32.gmra.mxu0 %v1126
        %v1308 = vpop.f32.mrf.mxu0
        %v1309 = vadd.f32 %v1187, %v1308
        %v1310 = vpop.f32.mrf.mxu0
        %v1311 = vadd.f32 %v1191, %v1310
        %1312 = vmatprep.mubr.f32.mxu0 0.0
        %1313 = vmatmul.mubr.f32.gmra.mxu0 %v1127
        %v1314 = vpop.f32.mrf.mxu0
        %v1315 = vadd.f32 %v1187, %v1314
        %v1316 = vpop.f32.mrf.mxu0
        %v1317 = vadd.f32 %v1191, %v1316
        %1318 = vmatprep.mubr.f32.mxu0 0.0
        %1319 = vmatmul.mubr.f32.gmra.mxu0 %v1128
        %v1320 = vpop.f32.mrf.mxu0
        %v1321 = vadd.f32 %v1187, %v1320
        %v1322 = vpop.f32.mrf.mxu0
        %v1323 = vadd.f32 %v1191, %v1322
        %1324 = vmatprep.mubr.f32.mxu0 0.0
        %1325 = vmatmul.mubr.f32.gmra.mxu0 %v1129
        %v1326 = vpop.f32.mrf.mxu0
        %v1327 = vadd.f32 %v1187, %v1326
        %v1328 = vpop.f32.mrf.mxu0
        %v1329 = vadd.f32 %v1191, %v1328
        %1330 = vmatprep.mubr.f32.mxu0 0.0
        %1331 = vmatmul.mubr.f32.gmra.mxu0 %v1130
        %v1332 = vpop.f32.mrf.mxu0
        %v1333 = vadd.f32 %v1187, %v1332
        %v1334 = vpop.f32.mrf.mxu0
        %v1335 = vadd.f32 %v1191, %v1334
        %1336 = vmatprep.mubr.f32.mxu0 0.0
        %1337 = vmatmul.mubr.f32.gmra.mxu0 %v1131
        %v1338 = vpop.f32.mrf.mxu0
        %v1339 = vadd.f32 %v1187, %v1338
        %v1340 = vpop.f32.mrf.mxu0
        %v1341 = vadd.f32 %v1191, %v1340
        %1342 = vmatprep.mubr.f32.mxu0 0.0
        %1343 = vmatmul.mubr.f32.gmra.mxu0 %v1132
        %v1344 = vpop.f32.mrf.mxu0
        %v1345 = vadd.f32 %v1187, %v1344
        %v1346 = vpop.f32.mrf.mxu0
        %v1347 = vadd.f32 %v1191, %v1346
        %1348 = vmatprep.mubr.f32.mxu0 0.0
        %1349 = vmatmul.mubr.f32.gmra.mxu0 %v1133
        %v1350 = vpop.f32.mrf.mxu0
        %v1351 = vadd.f32 %v1187, %v1350
        %v1352 = vpop.f32.mrf.mxu0
        %v1353 = vadd.f32 %v1191, %v1352
        %1354 = vmatprep.mubr.f32.mxu0 0.0
        %1355 = vmatmul.mubr.f32.gmra.mxu0 %v1134
        %v1356 = vpop.f32.mrf.mxu0
        %v1357 = vadd.f32 %v1187, %v1356
        %v1358 = vpop.f32.mrf.mxu0
        %v1359 = vadd.f32 %v1191, %v1358
        %1360 = vmatprep.mubr.f32.mxu0 0.0
        %1361 = vmatmul.mubr.f32.gmra.mxu0 %v1135
        %v1362 = vpop.f32.mrf.mxu0
        %v1363 = vadd.f32 %v1187, %v1362
        %v1364 = vpop.f32.mrf.mxu0
        %v1365 = vadd.f32 %v1191, %v1364
        %1366 = vmatprep.mubr.f32.mxu0 0.0
        %1367 = vmatmul.mubr.f32.gmra.mxu0 %v1136
        %v1368 = vpop.f32.mrf.mxu0
        %v1369 = vadd.f32 %v1187, %v1368
        %v1370 = vpop.f32.mrf.mxu0
        %v1371 = vadd.f32 %v1191, %v1370
        %1372 = vmatprep.mubr.f32.mxu0 0.0
        %1373 = vmatmul.mubr.f32.gmra.mxu0 %v1137
        %v1374 = vpop.f32.mrf.mxu0
        %v1375 = vadd.f32 %v1187, %v1374
        %v1376 = vpop.f32.mrf.mxu0
        %v1377 = vadd.f32 %v1191, %v1376
        %1378 = vmatprep.mubr.f32.mxu0 0.0
        %1379 = vmatmul.mubr.f32.gmra.mxu0 %v1138
        %v1380 = vpop.f32.mrf.mxu0
        %v1381 = vadd.f32 %v1187, %v1380
        %v1382 = vpop.f32.mrf.mxu0
        %v1383 = vadd.f32 %v1191, %v1382
        %1384 = vmatprep.mubr.f32.mxu0 0.0
        %1385 = vmatmul.mubr.f32.gmra.mxu0 %v1139
        %v1386 = vpop.f32.mrf.mxu0
        %v1387 = vadd.f32 %v1187, %v1386
        %v1388 = vpop.f32.mrf.mxu0
        %v1389 = vadd.f32 %v1191, %v1388
        %1390 = vmatprep.mubr.f32.mxu0 0.0
        %1391 = vmatmul.mubr.f32.gmra.mxu0 %v1140
        %v1392 = vpop.f32.mrf.mxu0
        %v1393 = vadd.f32 %v1187, %v1392
        %v1394 = vpop.f32.mrf.mxu0
        %v1395 = vadd.f32 %v1191, %v1394
        %1396 = vmatprep.mubr.f32.mxu0 0.0
        %1397 = vmatmul.mubr.f32.gmra.mxu0 %v1141
        %v1398 = vpop.f32.mrf.mxu0
        %v1399 = vadd.f32 %v1187, %v1398
        %v1400 = vpop.f32.mrf.mxu0
        %v1401 = vadd.f32 %v1191, %v1400
        %1402 = vmatprep.mubr.f32.mxu0 0.0
        %1403 = vmatmul.mubr.f32.gmra.mxu0 %v1142
        %v1404 = vpop.f32.mrf.mxu0
        %v1405 = vadd.f32 %v1187, %v1404
        %v1406 = vpop.f32.mrf.mxu0
        %v1407 = vadd.f32 %v1191, %v1406
        %1408 = vmatprep.mubr.f32.mxu0 0.0
        %1409 = vmatmul.mubr.f32.gmra.mxu0 %v1143
        %v1410 = vpop.f32.mrf.mxu0
        %v1411 = vadd.f32 %v1187, %v1410
        %v1412 = vpop.f32.mrf.mxu0
        %v1413 = vadd.f32 %v1191, %v1412
        %1414 = vmatprep.mubr.f32.mxu0 0.0
        %1415 = vmatmul.mubr.f32.gmra.mxu0 %v1144
        %v1416 = vpop.f32.mrf.mxu0
        %v1417 = vadd.f32 %v1187, %v1416
        %v1418 = vpop.f32.mrf.mxu0
        %v1419 = vadd.f32 %v1191, %v1418
        %1420 = vmatprep.mubr.f32.mxu0 0.0
        %1421 = vmatmul.mubr.f32.gmra.mxu0 %v1145
        %v1422 = vpop.f32.mrf.mxu0
        %v1423 = vadd.f32 %v1187, %v1422
        %v1424 = vpop.f32.mrf.mxu0
        %v1425 = vadd.f32 %v1191, %v1424
        %1426 = vmatprep.mubr.f32.mxu0 0.0
        %1427 = vmatmul.mubr.f32.gmra.mxu0 %v1146
        %v1428 = vpop.f32.mrf.mxu0
        %v1429 = vadd.f32 %v1187, %v1428
        %v1430 = vpop.f32.mrf.mxu0
        %v1431 = vadd.f32 %v1191, %v1430
        %1432 = vmatprep.mubr.f32.mxu0 0.0
        %1433 = vmatmul.mubr.f32.gmra.mxu0 %v1147
        %v1434 = vpop.f32.mrf.mxu0
        %v1435 = vadd.f32 %v1187, %v1434
        %v1436 = vpop.f32.mrf.mxu0
        %v1437 = vadd.f32 %v1191, %v1436
        %1438 = vmatprep.mubr.f32.mxu0 0.0
        %1439 = vmatmul.mubr.f32.gmra.mxu0 %v1148
        %v1440 = vpop.f32.mrf.mxu0
        %v1441 = vadd.f32 %v1187, %v1440
        %v1442 = vpop.f32.mrf.mxu0
        %v1443 = vadd.f32 %v1191, %v1442
        %1444 = vmatprep.mubr.f32.mxu0 0.0
        %1445 = vmatmul.mubr.f32.gmra.mxu0 %v1149
        %v1446 = vpop.f32.mrf.mxu0
        %v1447 = vadd.f32 %v1187, %v1446
        %v1448 = vpop.f32.mrf.mxu0
        %v1449 = vadd.f32 %v1191, %v1448
        %1450 = vdwg.mxu0
        %v1451 = vld [vmem:[#allocation2] sm:$0xff]
        %v1452 = vld [vmem:[#allocation2 + $0x8] sm:$0xff]
        %v1453 = vld [vmem:[#allocation2 + $0x10] sm:$0xff]
        %v1454 = vld [vmem:[#allocation2 + $0x18] sm:$0xff]
        %v1455 = vld [vmem:[#allocation2 + $0x20] sm:$0xff]
        %v1456 = vld [vmem:[#allocation2 + $0x28] sm:$0xff]
        %v1457 = vld [vmem:[#allocation2 + $0x30] sm:$0xff]
        %v1458 = vld [vmem:[#allocation2 + $0x38] sm:$0xff]
        %v1459 = vld [vmem:[#allocation2 + $0x40] sm:$0xff]
        %v1460 = vld [vmem:[#allocation2 + $0x48] sm:$0xff]
        %v1461 = vld [vmem:[#allocation2 + $0x50] sm:$0xff]
        %v1462 = vld [vmem:[#allocation2 + $0x58] sm:$0xff]
        %v1463 = vld [vmem:[#allocation2 + $0x60] sm:$0xff]
        %v1464 = vld [vmem:[#allocation2 + $0x68] sm:$0xff]
        %v1465 = vld [vmem:[#allocation2 + $0x70] sm:$0xff]
        %v1466 = vld [vmem:[#allocation2 + $0x78] sm:$0xff]
        %v1467 = vld [vmem:[#allocation2 + $0x80] sm:$0xff]
        %v1468 = vld [vmem:[#allocation2 + $0x88] sm:$0xff]
        %v1469 = vld [vmem:[#allocation2 + $0x90] sm:$0xff]
        %v1470 = vld [vmem:[#allocation2 + $0x98] sm:$0xff]
        %v1471 = vld [vmem:[#allocation2 + $0xa0] sm:$0xff]
        %v1472 = vld [vmem:[#allocation2 + $0xa8] sm:$0xff]
        %v1473 = vld [vmem:[#allocation2 + $0xb0] sm:$0xff]
        %v1474 = vld [vmem:[#allocation2 + $0xb8] sm:$0xff]
        %v1475 = vld [vmem:[#allocation2 + $0xc0] sm:$0xff]
        %v1476 = vld [vmem:[#allocation2 + $0xc8] sm:$0xff]
        %v1477 = vld [vmem:[#allocation2 + $0xd0] sm:$0xff]
        %v1478 = vld [vmem:[#allocation2 + $0xd8] sm:$0xff]
        %v1479 = vld [vmem:[#allocation2 + $0xe0] sm:$0xff]
        %v1480 = vld [vmem:[#allocation2 + $0xe8] sm:$0xff]
        %v1481 = vld [vmem:[#allocation2 + $0xf0] sm:$0xff]
        %v1482 = vld [vmem:[#allocation2 + $0xf8] sm:$0xff]
        %v1483 = vld [vmem:[#allocation2 + $0x100] sm:$0xff]
        %v1484 = vld [vmem:[#allocation2 + $0x108] sm:$0xff]
        %v1485 = vld [vmem:[#allocation2 + $0x110] sm:$0xff]
        %v1486 = vld [vmem:[#allocation2 + $0x118] sm:$0xff]
        %v1487 = vld [vmem:[#allocation2 + $0x120] sm:$0xff]
        %v1488 = vld [vmem:[#allocation2 + $0x128] sm:$0xff]
        %v1489 = vld [vmem:[#allocation2 + $0x130] sm:$0xff]
        %v1490 = vld [vmem:[#allocation2 + $0x138] sm:$0xff]
        %v1491 = vld [vmem:[#allocation2 + $0x140] sm:$0xff]
        %v1492 = vld [vmem:[#allocation2 + $0x148] sm:$0xff]
        %v1493 = vld [vmem:[#allocation2 + $0x150] sm:$0xff]
        %v1494 = vld [vmem:[#allocation2 + $0x158] sm:$0xff]
        %v1495 = vld [vmem:[#allocation2 + $0x160] sm:$0xff]
        %v1496 = vld [vmem:[#allocation2 + $0x168] sm:$0xff]
        %v1497 = vld [vmem:[#allocation2 + $0x170] sm:$0xff]
        %v1498 = vld [vmem:[#allocation2 + $0x178] sm:$0xff]
        %v1499 = vld [vmem:[#allocation2 + $0x180] sm:$0xff]
        %v1500 = vld [vmem:[#allocation2 + $0x188] sm:$0xff]
        %v1501 = vld [vmem:[#allocation2 + $0x190] sm:$0xff]
        %v1502 = vld [vmem:[#allocation2 + $0x198] sm:$0xff]
        %v1503 = vld [vmem:[#allocation2 + $0x1a0] sm:$0xff]
        %v1504 = vld [vmem:[#allocation2 + $0x1a8] sm:$0xff]
        %v1505 = vld [vmem:[#allocation2 + $0x1b0] sm:$0xff]
        %v1506 = vld [vmem:[#allocation2 + $0x1b8] sm:$0xff]
        %v1507 = vld [vmem:[#allocation2 + $0x1c0] sm:$0xff]
        %v1508 = vld [vmem:[#allocation2 + $0x1c8] sm:$0xff]
        %v1509 = vld [vmem:[#allocation2 + $0x1d0] sm:$0xff]
        %v1510 = vld [vmem:[#allocation2 + $0x1d8] sm:$0xff]
        %v1511 = vld [vmem:[#allocation2 + $0x1e0] sm:$0xff]
        %v1512 = vld [vmem:[#allocation2 + $0x1e8] sm:$0xff]
        %v1513 = vld [vmem:[#allocation2 + $0x1f0] sm:$0xff]
        %v1514 = vld [vmem:[#allocation2 + $0x1f8] sm:$0xff]
        %1515 = vmatprep.subr.mxu0 0.0
        %1516 = vmatpush1.xpose.msra.mxu0 0.0
        %1517 = vmatprep.subr.mxu0 0.0
        %1518 = vmatpush1.xpose.msra.mxu0 0.0
        %1519 = vmatprep.subr.mxu0 0.0
        %1520 = vmatpush1.xpose.msra.mxu0 0.0
        %1521 = vmatprep.subr.mxu0 0.0
        %1522 = vmatpush1.xpose.msra.mxu0 0.0
        %1523 = vmatprep.subr.mxu0 0.0
        %1524 = vmatpush1.xpose.msra.mxu0 0.0
        %1525 = vmatprep.subr.mxu0 0.0
        %1526 = vmatpush1.xpose.msra.mxu0 0.0
        %1527 = vmatprep.subr.mxu0 0.0
        %1528 = vmatpush1.xpose.msra.mxu0 0.0
        %1529 = vmatprep.subr.mxu0 0.0
        %1530 = vmatpush1.xpose.msra.mxu0 0.0
        %1531 = vmatprep.subr.mxu0 0.0
        %1532 = vmatpush1.xpose.msra.mxu0 0.0
        %1533 = vmatprep.subr.mxu0 0.0
        %1534 = vmatpush1.xpose.msra.mxu0 0.0
        %1535 = vmatprep.subr.mxu0 0.0
        %1536 = vmatpush1.xpose.msra.mxu0 0.0
        %1537 = vmatprep.subr.mxu0 0.0
        %1538 = vmatpush1.xpose.msra.mxu0 0.0
        %1539 = vmatprep.subr.mxu0 0.0
        %1540 = vmatpush1.xpose.msra.mxu0 %v1279
        %1541 = vmatprep.subr.mxu0 0.0
        %1542 = vmatpush1.xpose.msra.mxu0 %v1273
        %1543 = vmatprep.subr.mxu0 0.0
        %1544 = vmatpush1.xpose.msra.mxu0 %v1267
        %1545 = vmatprep.subr.mxu0 0.0
        %1546 = vmatpush1.xpose.msra.mxu0 %v1261
        %1547 = vmatprep.subr.mxu0 0.0
        %1548 = vmatpush2.xpose.msra.mxu0 0.0
        %1549 = vmatprep.subr.mxu0 0.0
        %1550 = vmatpush2.xpose.msra.mxu0 0.0
        %1551 = vmatprep.subr.mxu0 0.0
        %1552 = vmatpush2.xpose.msra.mxu0 0.0
        %1553 = vmatprep.subr.mxu0 0.0
        %1554 = vmatpush2.xpose.msra.mxu0 0.0
        %1555 = vmatprep.subr.mxu0 0.0
        %1556 = vmatpush2.xpose.msra.mxu0 0.0
        %1557 = vmatprep.subr.mxu0 0.0
        %1558 = vmatpush2.xpose.msra.mxu0 0.0
        %1559 = vmatprep.subr.mxu0 0.0
        %1560 = vmatpush2.xpose.msra.mxu0 0.0
        %1561 = vmatprep.subr.mxu0 0.0
        %1562 = vmatpush2.xpose.msra.mxu0 0.0
        %1563 = vmatprep.subr.mxu0 0.0
        %1564 = vmatpush2.xpose.msra.mxu0 0.0
        %1565 = vmatprep.subr.mxu0 0.0
        %1566 = vmatpush2.xpose.msra.mxu0 0.0
        %1567 = vmatprep.subr.mxu0 0.0
        %1568 = vmatpush2.xpose.msra.mxu0 0.0
        %1569 = vmatprep.subr.mxu0 0.0
        %1570 = vmatpush2.xpose.msra.mxu0 0.0
        %1571 = vmatprep.subr.mxu0 0.0
        %1572 = vmatpush2.xpose.msra.mxu0 0.0
        %1573 = vmatprep.subr.mxu0 0.0
        %1574 = vmatpush2.xpose.msra.mxu0 0.0
        %1575 = vmatprep.subr.mxu0 0.0
        %1576 = vmatpush2.xpose.msra.mxu0 0.0
        %1577 = vmatprep.subr.mxu0 0.0
        %1578 = vmatpush2.xpose.msra.mxu0 0.0
        %1579 = vmatprep.mubr.f32.mxu0 0.0
        %1580 = vmatmul.mubr.f32.gmra.mxu0 %v1451
        %v1581 = vpop.f32.mrf.mxu0
        %v1582 = vadd.f32 0.0, %v1581
        %v1583 = vpop.f32.mrf.mxu0
        %1584 = vmatprep.mubr.f32.mxu0 0.0
        %1585 = vmatmul.mubr.f32.gmra.mxu0 %v1452
        %v1586 = vpop.f32.mrf.mxu0
        %v1587 = vadd.f32 0.0, %v1586
        %v1588 = vpop.f32.mrf.mxu0
        %1589 = vmatprep.mubr.f32.mxu0 0.0
        %1590 = vmatmul.mubr.f32.gmra.mxu0 %v1453
        %v1591 = vpop.f32.mrf.mxu0
        %v1592 = vadd.f32 0.0, %v1591
        %v1593 = vpop.f32.mrf.mxu0
        %1594 = vmatprep.mubr.f32.mxu0 0.0
        %1595 = vmatmul.mubr.f32.gmra.mxu0 %v1454
        %v1596 = vpop.f32.mrf.mxu0
        %v1597 = vadd.f32 0.0, %v1596
        %v1598 = vpop.f32.mrf.mxu0
        %1599 = vmatprep.mubr.f32.mxu0 0.0
        %1600 = vmatmul.mubr.f32.gmra.mxu0 %v1455
        %v1601 = vpop.f32.mrf.mxu0
        %v1602 = vadd.f32 0.0, %v1601
        %v1603 = vpop.f32.mrf.mxu0
        %1604 = vmatprep.mubr.f32.mxu0 0.0
        %1605 = vmatmul.mubr.f32.gmra.mxu0 %v1456
        %v1606 = vpop.f32.mrf.mxu0
        %v1607 = vadd.f32 0.0, %v1606
        %v1608 = vpop.f32.mrf.mxu0
        %1609 = vmatprep.mubr.f32.mxu0 0.0
        %1610 = vmatmul.mubr.f32.gmra.mxu0 %v1457
        %v1611 = vpop.f32.mrf.mxu0
        %v1612 = vadd.f32 0.0, %v1611
        %v1613 = vpop.f32.mrf.mxu0
        %1614 = vmatprep.mubr.f32.mxu0 0.0
        %1615 = vmatmul.mubr.f32.gmra.mxu0 %v1458
        %v1616 = vpop.f32.mrf.mxu0
        %v1617 = vadd.f32 0.0, %v1616
        %v1618 = vpop.f32.mrf.mxu0
        %1619 = vdwg.mxu0
        %1620 = vmatprep.subr.mxu0 0.0
        %1621 = vmatpush1.xpose.msra.mxu0 0.0
        %1622 = vmatprep.subr.mxu0 0.0
        %1623 = vmatpush1.xpose.msra.mxu0 0.0
        %1624 = vmatprep.subr.mxu0 0.0
        %1625 = vmatpush1.xpose.msra.mxu0 0.0
        %1626 = vmatprep.subr.mxu0 0.0
        %1627 = vmatpush1.xpose.msra.mxu0 0.0
        %1628 = vmatprep.subr.mxu0 0.0
        %1629 = vmatpush1.xpose.msra.mxu0 0.0
        %1630 = vmatprep.subr.mxu0 0.0
        %1631 = vmatpush1.xpose.msra.mxu0 0.0
        %1632 = vmatprep.subr.mxu0 0.0
        %1633 = vmatpush1.xpose.msra.mxu0 0.0
        %1634 = vmatprep.subr.mxu0 0.0
        %1635 = vmatpush1.xpose.msra.mxu0 0.0
        %1636 = vmatprep.subr.mxu0 0.0
        %1637 = vmatpush1.xpose.msra.mxu0 0.0
        %1638 = vmatprep.subr.mxu0 0.0
        %1639 = vmatpush1.xpose.msra.mxu0 0.0
        %1640 = vmatprep.subr.mxu0 0.0
        %1641 = vmatpush1.xpose.msra.mxu0 0.0
        %1642 = vmatprep.subr.mxu0 0.0
        %1643 = vmatpush1.xpose.msra.mxu0 0.0
        %1644 = vmatprep.subr.mxu0 0.0
        %1645 = vmatpush1.xpose.msra.mxu0 %v1303
        %1646 = vmatprep.subr.mxu0 0.0
        %1647 = vmatpush1.xpose.msra.mxu0 %v1297
        %1648 = vmatprep.subr.mxu0 0.0
        %1649 = vmatpush1.xpose.msra.mxu0 %v1291
        %1650 = vmatprep.subr.mxu0 0.0
        %1651 = vmatpush1.xpose.msra.mxu0 %v1285
        %1652 = vmatprep.subr.mxu0 0.0
        %1653 = vmatpush2.xpose.msra.mxu0 0.0
        %1654 = vmatprep.subr.mxu0 0.0
        %1655 = vmatpush2.xpose.msra.mxu0 0.0
        %1656 = vmatprep.subr.mxu0 0.0
        %1657 = vmatpush2.xpose.msra.mxu0 0.0
        %1658 = vmatprep.subr.mxu0 0.0
        %1659 = vmatpush2.xpose.msra.mxu0 0.0
        %1660 = vmatprep.subr.mxu0 0.0
        %1661 = vmatpush2.xpose.msra.mxu0 0.0
        %1662 = vmatprep.subr.mxu0 0.0
        %1663 = vmatpush2.xpose.msra.mxu0 0.0
        %1664 = vmatprep.subr.mxu0 0.0
        %1665 = vmatpush2.xpose.msra.mxu0 0.0
        %1666 = vmatprep.subr.mxu0 0.0
        %1667 = vmatpush2.xpose.msra.mxu0 0.0
        %1668 = vmatprep.subr.mxu0 0.0
        %1669 = vmatpush2.xpose.msra.mxu0 0.0
        %1670 = vmatprep.subr.mxu0 0.0
        %1671 = vmatpush2.xpose.msra.mxu0 0.0
        %1672 = vmatprep.subr.mxu0 0.0
        %1673 = vmatpush2.xpose.msra.mxu0 0.0
        %1674 = vmatprep.subr.mxu0 0.0
        %1675 = vmatpush2.xpose.msra.mxu0 0.0
        %1676 = vmatprep.subr.mxu0 0.0
        %1677 = vmatpush2.xpose.msra.mxu0 0.0
        %1678 = vmatprep.subr.mxu0 0.0
        %1679 = vmatpush2.xpose.msra.mxu0 0.0
        %1680 = vmatprep.subr.mxu0 0.0
        %1681 = vmatpush2.xpose.msra.mxu0 0.0
        %1682 = vmatprep.subr.mxu0 0.0
        %1683 = vmatpush2.xpose.msra.mxu0 0.0
        %1684 = vmatprep.mubr.f32.mxu0 0.0
        %1685 = vmatmul.mubr.f32.gmra.mxu0 %v1459
        %v1686 = vpop.f32.mrf.mxu0
        %v1687 = vadd.f32 0.0, %v1686
        %v1688 = vpop.f32.mrf.mxu0
        %1689 = vmatprep.mubr.f32.mxu0 0.0
        %1690 = vmatmul.mubr.f32.gmra.mxu0 %v1460
        %v1691 = vpop.f32.mrf.mxu0
        %v1692 = vadd.f32 0.0, %v1691
        %v1693 = vpop.f32.mrf.mxu0
        %1694 = vmatprep.mubr.f32.mxu0 0.0
        %1695 = vmatmul.mubr.f32.gmra.mxu0 %v1461
        %v1696 = vpop.f32.mrf.mxu0
        %v1697 = vadd.f32 0.0, %v1696
        %v1698 = vpop.f32.mrf.mxu0
        %1699 = vmatprep.mubr.f32.mxu0 0.0
        %1700 = vmatmul.mubr.f32.gmra.mxu0 %v1462
        %v1701 = vpop.f32.mrf.mxu0
        %v1702 = vadd.f32 0.0, %v1701
        %v1703 = vpop.f32.mrf.mxu0
        %1704 = vmatprep.mubr.f32.mxu0 0.0
        %1705 = vmatmul.mubr.f32.gmra.mxu0 %v1463
        %v1706 = vpop.f32.mrf.mxu0
        %v1707 = vadd.f32 0.0, %v1706
        %v1708 = vpop.f32.mrf.mxu0
        %1709 = vmatprep.mubr.f32.mxu0 0.0
        %1710 = vmatmul.mubr.f32.gmra.mxu0 %v1464
        %v1711 = vpop.f32.mrf.mxu0
        %v1712 = vadd.f32 0.0, %v1711
        %v1713 = vpop.f32.mrf.mxu0
        %1714 = vmatprep.mubr.f32.mxu0 0.0
        %1715 = vmatmul.mubr.f32.gmra.mxu0 %v1465
        %v1716 = vpop.f32.mrf.mxu0
        %v1717 = vadd.f32 0.0, %v1716
        %v1718 = vpop.f32.mrf.mxu0
        %1719 = vmatprep.mubr.f32.mxu0 0.0
        %1720 = vmatmul.mubr.f32.gmra.mxu0 %v1466
        %v1721 = vpop.f32.mrf.mxu0
        %v1722 = vadd.f32 0.0, %v1721
        %v1723 = vpop.f32.mrf.mxu0
        %1724 = vdwg.mxu0
        %1725 = vmatprep.subr.mxu0 0.0
        %1726 = vmatpush1.xpose.msra.mxu0 0.0
        %1727 = vmatprep.subr.mxu0 0.0
        %1728 = vmatpush1.xpose.msra.mxu0 0.0
        %1729 = vmatprep.subr.mxu0 0.0
        %1730 = vmatpush1.xpose.msra.mxu0 0.0
        %1731 = vmatprep.subr.mxu0 0.0
        %1732 = vmatpush1.xpose.msra.mxu0 0.0
        %1733 = vmatprep.subr.mxu0 0.0
        %1734 = vmatpush1.xpose.msra.mxu0 0.0
        %1735 = vmatprep.subr.mxu0 0.0
        %1736 = vmatpush1.xpose.msra.mxu0 0.0
        %1737 = vmatprep.subr.mxu0 0.0
        %1738 = vmatpush1.xpose.msra.mxu0 0.0
        %1739 = vmatprep.subr.mxu0 0.0
        %1740 = vmatpush1.xpose.msra.mxu0 0.0
        %1741 = vmatprep.subr.mxu0 0.0
        %1742 = vmatpush1.xpose.msra.mxu0 0.0
        %1743 = vmatprep.subr.mxu0 0.0
        %1744 = vmatpush1.xpose.msra.mxu0 0.0
        %1745 = vmatprep.subr.mxu0 0.0
        %1746 = vmatpush1.xpose.msra.mxu0 0.0
        %1747 = vmatprep.subr.mxu0 0.0
        %1748 = vmatpush1.xpose.msra.mxu0 0.0
        %1749 = vmatprep.subr.mxu0 0.0
        %1750 = vmatpush1.xpose.msra.mxu0 %v1327
        %1751 = vmatprep.subr.mxu0 0.0
        %1752 = vmatpush1.xpose.msra.mxu0 %v1321
        %1753 = vmatprep.subr.mxu0 0.0
        %1754 = vmatpush1.xpose.msra.mxu0 %v1315
        %1755 = vmatprep.subr.mxu0 0.0
        %1756 = vmatpush1.xpose.msra.mxu0 %v1309
        %1757 = vmatprep.subr.mxu0 0.0
        %1758 = vmatpush2.xpose.msra.mxu0 0.0
        %1759 = vmatprep.subr.mxu0 0.0
        %1760 = vmatpush2.xpose.msra.mxu0 0.0
        %1761 = vmatprep.subr.mxu0 0.0
        %1762 = vmatpush2.xpose.msra.mxu0 0.0
        %1763 = vmatprep.subr.mxu0 0.0
        %1764 = vmatpush2.xpose.msra.mxu0 0.0
        %1765 = vmatprep.subr.mxu0 0.0
        %1766 = vmatpush2.xpose.msra.mxu0 0.0
        %1767 = vmatprep.subr.mxu0 0.0
        %1768 = vmatpush2.xpose.msra.mxu0 0.0
        %1769 = vmatprep.subr.mxu0 0.0
        %1770 = vmatpush2.xpose.msra.mxu0 0.0
        %1771 = vmatprep.subr.mxu0 0.0
        %1772 = vmatpush2.xpose.msra.mxu0 0.0
        %1773 = vmatprep.subr.mxu0 0.0
        %1774 = vmatpush2.xpose.msra.mxu0 0.0
        %1775 = vmatprep.subr.mxu0 0.0
        %1776 = vmatpush2.xpose.msra.mxu0 0.0
        %1777 = vmatprep.subr.mxu0 0.0
        %1778 = vmatpush2.xpose.msra.mxu0 0.0
        %1779 = vmatprep.subr.mxu0 0.0
        %1780 = vmatpush2.xpose.msra.mxu0 0.0
        %1781 = vmatprep.subr.mxu0 0.0
        %1782 = vmatpush2.xpose.msra.mxu0 0.0
        %1783 = vmatprep.subr.mxu0 0.0
        %1784 = vmatpush2.xpose.msra.mxu0 0.0
        %1785 = vmatprep.subr.mxu0 0.0
        %1786 = vmatpush2.xpose.msra.mxu0 0.0
        %1787 = vmatprep.subr.mxu0 0.0
        %1788 = vmatpush2.xpose.msra.mxu0 0.0
        %1789 = vmatprep.mubr.f32.mxu0 0.0
        %1790 = vmatmul.mubr.f32.gmra.mxu0 %v1467
        %v1791 = vpop.f32.mrf.mxu0
        %v1792 = vadd.f32 0.0, %v1791
        %v1793 = vpop.f32.mrf.mxu0
        %1794 = vmatprep.mubr.f32.mxu0 0.0
        %1795 = vmatmul.mubr.f32.gmra.mxu0 %v1468
        %v1796 = vpop.f32.mrf.mxu0
        %v1797 = vadd.f32 0.0, %v1796
        %v1798 = vpop.f32.mrf.mxu0
        %1799 = vmatprep.mubr.f32.mxu0 0.0
        %1800 = vmatmul.mubr.f32.gmra.mxu0 %v1469
        %v1801 = vpop.f32.mrf.mxu0
        %v1802 = vadd.f32 0.0, %v1801
        %v1803 = vpop.f32.mrf.mxu0
        %1804 = vmatprep.mubr.f32.mxu0 0.0
        %1805 = vmatmul.mubr.f32.gmra.mxu0 %v1470
        %v1806 = vpop.f32.mrf.mxu0
        %v1807 = vadd.f32 0.0, %v1806
        %v1808 = vpop.f32.mrf.mxu0
        %1809 = vmatprep.mubr.f32.mxu0 0.0
        %1810 = vmatmul.mubr.f32.gmra.mxu0 %v1471
        %v1811 = vpop.f32.mrf.mxu0
        %v1812 = vadd.f32 0.0, %v1811
        %v1813 = vpop.f32.mrf.mxu0
        %1814 = vmatprep.mubr.f32.mxu0 0.0
        %1815 = vmatmul.mubr.f32.gmra.mxu0 %v1472
        %v1816 = vpop.f32.mrf.mxu0
        %v1817 = vadd.f32 0.0, %v1816
        %v1818 = vpop.f32.mrf.mxu0
        %1819 = vmatprep.mubr.f32.mxu0 0.0
        %1820 = vmatmul.mubr.f32.gmra.mxu0 %v1473
        %v1821 = vpop.f32.mrf.mxu0
        %v1822 = vadd.f32 0.0, %v1821
        %v1823 = vpop.f32.mrf.mxu0
        %1824 = vmatprep.mubr.f32.mxu0 0.0
        %1825 = vmatmul.mubr.f32.gmra.mxu0 %v1474
        %v1826 = vpop.f32.mrf.mxu0
        %v1827 = vadd.f32 0.0, %v1826
        %v1828 = vpop.f32.mrf.mxu0
        %1829 = vdwg.mxu0
        %1830 = vmatprep.subr.mxu0 0.0
        %1831 = vmatpush1.xpose.msra.mxu0 0.0
        %1832 = vmatprep.subr.mxu0 0.0
        %1833 = vmatpush1.xpose.msra.mxu0 0.0
        %1834 = vmatprep.subr.mxu0 0.0
        %1835 = vmatpush1.xpose.msra.mxu0 0.0
        %1836 = vmatprep.subr.mxu0 0.0
        %1837 = vmatpush1.xpose.msra.mxu0 0.0
        %1838 = vmatprep.subr.mxu0 0.0
        %1839 = vmatpush1.xpose.msra.mxu0 0.0
        %1840 = vmatprep.subr.mxu0 0.0
        %1841 = vmatpush1.xpose.msra.mxu0 0.0
        %1842 = vmatprep.subr.mxu0 0.0
        %1843 = vmatpush1.xpose.msra.mxu0 0.0
        %1844 = vmatprep.subr.mxu0 0.0
        %1845 = vmatpush1.xpose.msra.mxu0 0.0
        %1846 = vmatprep.subr.mxu0 0.0
        %1847 = vmatpush1.xpose.msra.mxu0 0.0
        %1848 = vmatprep.subr.mxu0 0.0
        %1849 = vmatpush1.xpose.msra.mxu0 0.0
        %1850 = vmatprep.subr.mxu0 0.0
        %1851 = vmatpush1.xpose.msra.mxu0 0.0
        %1852 = vmatprep.subr.mxu0 0.0
        %1853 = vmatpush1.xpose.msra.mxu0 0.0
        %1854 = vmatprep.subr.mxu0 0.0
        %1855 = vmatpush1.xpose.msra.mxu0 %v1351
        %1856 = vmatprep.subr.mxu0 0.0
        %1857 = vmatpush1.xpose.msra.mxu0 %v1345
        %1858 = vmatprep.subr.mxu0 0.0
        %1859 = vmatpush1.xpose.msra.mxu0 %v1339
        %1860 = vmatprep.subr.mxu0 0.0
        %1861 = vmatpush1.xpose.msra.mxu0 %v1333
        %1862 = vmatprep.subr.mxu0 0.0
        %1863 = vmatpush2.xpose.msra.mxu0 0.0
        %1864 = vmatprep.subr.mxu0 0.0
        %1865 = vmatpush2.xpose.msra.mxu0 0.0
        %1866 = vmatprep.subr.mxu0 0.0
        %1867 = vmatpush2.xpose.msra.mxu0 0.0
        %1868 = vmatprep.subr.mxu0 0.0
        %1869 = vmatpush2.xpose.msra.mxu0 0.0
        %1870 = vmatprep.subr.mxu0 0.0
        %1871 = vmatpush2.xpose.msra.mxu0 0.0
        %1872 = vmatprep.subr.mxu0 0.0
        %1873 = vmatpush2.xpose.msra.mxu0 0.0
        %1874 = vmatprep.subr.mxu0 0.0
        %1875 = vmatpush2.xpose.msra.mxu0 0.0
        %1876 = vmatprep.subr.mxu0 0.0
        %1877 = vmatpush2.xpose.msra.mxu0 0.0
        %1878 = vmatprep.subr.mxu0 0.0
        %1879 = vmatpush2.xpose.msra.mxu0 0.0
        %1880 = vmatprep.subr.mxu0 0.0
        %1881 = vmatpush2.xpose.msra.mxu0 0.0
        %1882 = vmatprep.subr.mxu0 0.0
        %1883 = vmatpush2.xpose.msra.mxu0 0.0
        %1884 = vmatprep.subr.mxu0 0.0
        %1885 = vmatpush2.xpose.msra.mxu0 0.0
        %1886 = vmatprep.subr.mxu0 0.0
        %1887 = vmatpush2.xpose.msra.mxu0 0.0
        %1888 = vmatprep.subr.mxu0 0.0
        %1889 = vmatpush2.xpose.msra.mxu0 0.0
        %1890 = vmatprep.subr.mxu0 0.0
        %1891 = vmatpush2.xpose.msra.mxu0 0.0
        %1892 = vmatprep.subr.mxu0 0.0
        %1893 = vmatpush2.xpose.msra.mxu0 0.0
        %1894 = vmatprep.mubr.f32.mxu0 0.0
        %1895 = vmatmul.mubr.f32.gmra.mxu0 %v1475
        %v1896 = vpop.f32.mrf.mxu0
        %v1897 = vadd.f32 0.0, %v1896
        %v1898 = vpop.f32.mrf.mxu0
        %1899 = vmatprep.mubr.f32.mxu0 0.0
        %1900 = vmatmul.mubr.f32.gmra.mxu0 %v1476
        %v1901 = vpop.f32.mrf.mxu0
        %v1902 = vadd.f32 0.0, %v1901
        %v1903 = vpop.f32.mrf.mxu0
        %1904 = vmatprep.mubr.f32.mxu0 0.0
        %1905 = vmatmul.mubr.f32.gmra.mxu0 %v1477
        %v1906 = vpop.f32.mrf.mxu0
        %v1907 = vadd.f32 0.0, %v1906
        %v1908 = vpop.f32.mrf.mxu0
        %1909 = vmatprep.mubr.f32.mxu0 0.0
        %1910 = vmatmul.mubr.f32.gmra.mxu0 %v1478
        %v1911 = vpop.f32.mrf.mxu0
        %v1912 = vadd.f32 0.0, %v1911
        %v1913 = vpop.f32.mrf.mxu0
        %1914 = vmatprep.mubr.f32.mxu0 0.0
        %1915 = vmatmul.mubr.f32.gmra.mxu0 %v1479
        %v1916 = vpop.f32.mrf.mxu0
        %v1917 = vadd.f32 0.0, %v1916
        %v1918 = vpop.f32.mrf.mxu0
        %1919 = vmatprep.mubr.f32.mxu0 0.0
        %1920 = vmatmul.mubr.f32.gmra.mxu0 %v1480
        %v1921 = vpop.f32.mrf.mxu0
        %v1922 = vadd.f32 0.0, %v1921
        %v1923 = vpop.f32.mrf.mxu0
        %1924 = vmatprep.mubr.f32.mxu0 0.0
        %1925 = vmatmul.mubr.f32.gmra.mxu0 %v1481
        %v1926 = vpop.f32.mrf.mxu0
        %v1927 = vadd.f32 0.0, %v1926
        %v1928 = vpop.f32.mrf.mxu0
        %1929 = vmatprep.mubr.f32.mxu0 0.0
        %1930 = vmatmul.mubr.f32.gmra.mxu0 %v1482
        %v1931 = vpop.f32.mrf.mxu0
        %v1932 = vadd.f32 0.0, %v1931
        %v1933 = vpop.f32.mrf.mxu0
        %1934 = vdwg.mxu0
        %1935 = vmatprep.subr.mxu0 0.0
        %1936 = vmatpush1.xpose.msra.mxu0 0.0
        %1937 = vmatprep.subr.mxu0 0.0
        %1938 = vmatpush1.xpose.msra.mxu0 0.0
        %1939 = vmatprep.subr.mxu0 0.0
        %1940 = vmatpush1.xpose.msra.mxu0 0.0
        %1941 = vmatprep.subr.mxu0 0.0
        %1942 = vmatpush1.xpose.msra.mxu0 0.0
        %1943 = vmatprep.subr.mxu0 0.0
        %1944 = vmatpush1.xpose.msra.mxu0 0.0
        %1945 = vmatprep.subr.mxu0 0.0
        %1946 = vmatpush1.xpose.msra.mxu0 0.0
        %1947 = vmatprep.subr.mxu0 0.0
        %1948 = vmatpush1.xpose.msra.mxu0 0.0
        %1949 = vmatprep.subr.mxu0 0.0
        %1950 = vmatpush1.xpose.msra.mxu0 0.0
        %1951 = vmatprep.subr.mxu0 0.0
        %1952 = vmatpush1.xpose.msra.mxu0 0.0
        %1953 = vmatprep.subr.mxu0 0.0
        %1954 = vmatpush1.xpose.msra.mxu0 0.0
        %1955 = vmatprep.subr.mxu0 0.0
        %1956 = vmatpush1.xpose.msra.mxu0 0.0
        %1957 = vmatprep.subr.mxu0 0.0
        %1958 = vmatpush1.xpose.msra.mxu0 0.0
        %1959 = vmatprep.subr.mxu0 0.0
        %1960 = vmatpush1.xpose.msra.mxu0 %v1375
        %1961 = vmatprep.subr.mxu0 0.0
        %1962 = vmatpush1.xpose.msra.mxu0 %v1369
        %1963 = vmatprep.subr.mxu0 0.0
        %1964 = vmatpush1.xpose.msra.mxu0 %v1363
        %1965 = vmatprep.subr.mxu0 0.0
        %1966 = vmatpush1.xpose.msra.mxu0 %v1357
        %1967 = vmatprep.subr.mxu0 0.0
        %1968 = vmatpush2.xpose.msra.mxu0 0.0
        %1969 = vmatprep.subr.mxu0 0.0
        %1970 = vmatpush2.xpose.msra.mxu0 0.0
        %1971 = vmatprep.subr.mxu0 0.0
        %1972 = vmatpush2.xpose.msra.mxu0 0.0
        %1973 = vmatprep.subr.mxu0 0.0
        %1974 = vmatpush2.xpose.msra.mxu0 0.0
        %1975 = vmatprep.subr.mxu0 0.0
        %1976 = vmatpush2.xpose.msra.mxu0 0.0
        %1977 = vmatprep.subr.mxu0 0.0
        %1978 = vmatpush2.xpose.msra.mxu0 0.0
        %1979 = vmatprep.subr.mxu0 0.0
        %1980 = vmatpush2.xpose.msra.mxu0 0.0
        %1981 = vmatprep.subr.mxu0 0.0
        %1982 = vmatpush2.xpose.msra.mxu0 0.0
        %1983 = vmatprep.subr.mxu0 0.0
        %1984 = vmatpush2.xpose.msra.mxu0 0.0
        %1985 = vmatprep.subr.mxu0 0.0
        %1986 = vmatpush2.xpose.msra.mxu0 0.0
        %1987 = vmatprep.subr.mxu0 0.0
        %1988 = vmatpush2.xpose.msra.mxu0 0.0
        %1989 = vmatprep.subr.mxu0 0.0
        %1990 = vmatpush2.xpose.msra.mxu0 0.0
        %1991 = vmatprep.subr.mxu0 0.0
        %1992 = vmatpush2.xpose.msra.mxu0 0.0
        %1993 = vmatprep.subr.mxu0 0.0
        %1994 = vmatpush2.xpose.msra.mxu0 0.0
        %1995 = vmatprep.subr.mxu0 0.0
        %1996 = vmatpush2.xpose.msra.mxu0 0.0
        %1997 = vmatprep.subr.mxu0 0.0
        %1998 = vmatpush2.xpose.msra.mxu0 0.0
        %1999 = vmatprep.mubr.f32.mxu0 0.0
        %2000 = vmatmul.mubr.f32.gmra.mxu0 %v1483
        %v2001 = vpop.f32.mrf.mxu0
        %v2002 = vadd.f32 0.0, %v2001
        %v2003 = vpop.f32.mrf.mxu0
        %2004 = vmatprep.mubr.f32.mxu0 0.0
        %2005 = vmatmul.mubr.f32.gmra.mxu0 %v1484
        %v2006 = vpop.f32.mrf.mxu0
        %v2007 = vadd.f32 0.0, %v2006
        %v2008 = vpop.f32.mrf.mxu0
        %2009 = vmatprep.mubr.f32.mxu0 0.0
        %2010 = vmatmul.mubr.f32.gmra.mxu0 %v1485
        %v2011 = vpop.f32.mrf.mxu0
        %v2012 = vadd.f32 0.0, %v2011
        %v2013 = vpop.f32.mrf.mxu0
        %2014 = vmatprep.mubr.f32.mxu0 0.0
        %2015 = vmatmul.mubr.f32.gmra.mxu0 %v1486
        %v2016 = vpop.f32.mrf.mxu0
        %v2017 = vadd.f32 0.0, %v2016
        %v2018 = vpop.f32.mrf.mxu0
        %2019 = vmatprep.mubr.f32.mxu0 0.0
        %2020 = vmatmul.mubr.f32.gmra.mxu0 %v1487
        %v2021 = vpop.f32.mrf.mxu0
        %v2022 = vadd.f32 0.0, %v2021
        %v2023 = vpop.f32.mrf.mxu0
        %2024 = vmatprep.mubr.f32.mxu0 0.0
        %2025 = vmatmul.mubr.f32.gmra.mxu0 %v1488
        %v2026 = vpop.f32.mrf.mxu0
        %v2027 = vadd.f32 0.0, %v2026
        %v2028 = vpop.f32.mrf.mxu0
        %2029 = vmatprep.mubr.f32.mxu0 0.0
        %2030 = vmatmul.mubr.f32.gmra.mxu0 %v1489
        %v2031 = vpop.f32.mrf.mxu0
        %v2032 = vadd.f32 0.0, %v2031
        %v2033 = vpop.f32.mrf.mxu0
        %2034 = vmatprep.mubr.f32.mxu0 0.0
        %2035 = vmatmul.mubr.f32.gmra.mxu0 %v1490
        %v2036 = vpop.f32.mrf.mxu0
        %v2037 = vadd.f32 0.0, %v2036
        %v2038 = vpop.f32.mrf.mxu0
        %2039 = vdwg.mxu0
        %2040 = vmatprep.subr.mxu0 0.0
        %2041 = vmatpush1.xpose.msra.mxu0 0.0
        %2042 = vmatprep.subr.mxu0 0.0
        %2043 = vmatpush1.xpose.msra.mxu0 0.0
        %2044 = vmatprep.subr.mxu0 0.0
        %2045 = vmatpush1.xpose.msra.mxu0 0.0
        %2046 = vmatprep.subr.mxu0 0.0
        %2047 = vmatpush1.xpose.msra.mxu0 0.0
        %2048 = vmatprep.subr.mxu0 0.0
        %2049 = vmatpush1.xpose.msra.mxu0 0.0
        %2050 = vmatprep.subr.mxu0 0.0
        %2051 = vmatpush1.xpose.msra.mxu0 0.0
        %2052 = vmatprep.subr.mxu0 0.0
        %2053 = vmatpush1.xpose.msra.mxu0 0.0
        %2054 = vmatprep.subr.mxu0 0.0
        %2055 = vmatpush1.xpose.msra.mxu0 0.0
        %2056 = vmatprep.subr.mxu0 0.0
        %2057 = vmatpush1.xpose.msra.mxu0 0.0
        %2058 = vmatprep.subr.mxu0 0.0
        %2059 = vmatpush1.xpose.msra.mxu0 0.0
        %2060 = vmatprep.subr.mxu0 0.0
        %2061 = vmatpush1.xpose.msra.mxu0 0.0
        %2062 = vmatprep.subr.mxu0 0.0
        %2063 = vmatpush1.xpose.msra.mxu0 0.0
        %2064 = vmatprep.subr.mxu0 0.0
        %2065 = vmatpush1.xpose.msra.mxu0 %v1399
        %2066 = vmatprep.subr.mxu0 0.0
        %2067 = vmatpush1.xpose.msra.mxu0 %v1393
        %2068 = vmatprep.subr.mxu0 0.0
        %2069 = vmatpush1.xpose.msra.mxu0 %v1387
        %2070 = vmatprep.subr.mxu0 0.0
        %2071 = vmatpush1.xpose.msra.mxu0 %v1381
        %2072 = vmatprep.subr.mxu0 0.0
        %2073 = vmatpush2.xpose.msra.mxu0 0.0
        %2074 = vmatprep.subr.mxu0 0.0
        %2075 = vmatpush2.xpose.msra.mxu0 0.0
        %2076 = vmatprep.subr.mxu0 0.0
        %2077 = vmatpush2.xpose.msra.mxu0 0.0
        %2078 = vmatprep.subr.mxu0 0.0
        %2079 = vmatpush2.xpose.msra.mxu0 0.0
        %2080 = vmatprep.subr.mxu0 0.0
        %2081 = vmatpush2.xpose.msra.mxu0 0.0
        %2082 = vmatprep.subr.mxu0 0.0
        %2083 = vmatpush2.xpose.msra.mxu0 0.0
        %2084 = vmatprep.subr.mxu0 0.0
        %2085 = vmatpush2.xpose.msra.mxu0 0.0
        %2086 = vmatprep.subr.mxu0 0.0
        %2087 = vmatpush2.xpose.msra.mxu0 0.0
        %2088 = vmatprep.subr.mxu0 0.0
        %2089 = vmatpush2.xpose.msra.mxu0 0.0
        %2090 = vmatprep.subr.mxu0 0.0
        %2091 = vmatpush2.xpose.msra.mxu0 0.0
        %2092 = vmatprep.subr.mxu0 0.0
        %2093 = vmatpush2.xpose.msra.mxu0 0.0
        %2094 = vmatprep.subr.mxu0 0.0
        %2095 = vmatpush2.xpose.msra.mxu0 0.0
        %2096 = vmatprep.subr.mxu0 0.0
        %2097 = vmatpush2.xpose.msra.mxu0 0.0
        %2098 = vmatprep.subr.mxu0 0.0
        %2099 = vmatpush2.xpose.msra.mxu0 0.0
        %2100 = vmatprep.subr.mxu0 0.0
        %2101 = vmatpush2.xpose.msra.mxu0 0.0
        %2102 = vmatprep.subr.mxu0 0.0
        %2103 = vmatpush2.xpose.msra.mxu0 0.0
        %2104 = vmatprep.mubr.f32.mxu0 0.0
        %2105 = vmatmul.mubr.f32.gmra.mxu0 %v1491
        %v2106 = vpop.f32.mrf.mxu0
        %v2107 = vadd.f32 0.0, %v2106
        %v2108 = vpop.f32.mrf.mxu0
        %2109 = vmatprep.mubr.f32.mxu0 0.0
        %2110 = vmatmul.mubr.f32.gmra.mxu0 %v1492
        %v2111 = vpop.f32.mrf.mxu0
        %v2112 = vadd.f32 0.0, %v2111
        %v2113 = vpop.f32.mrf.mxu0
        %2114 = vmatprep.mubr.f32.mxu0 0.0
        %2115 = vmatmul.mubr.f32.gmra.mxu0 %v1493
        %v2116 = vpop.f32.mrf.mxu0
        %v2117 = vadd.f32 0.0, %v2116
        %v2118 = vpop.f32.mrf.mxu0
        %2119 = vmatprep.mubr.f32.mxu0 0.0
        %2120 = vmatmul.mubr.f32.gmra.mxu0 %v1494
        %v2121 = vpop.f32.mrf.mxu0
        %v2122 = vadd.f32 0.0, %v2121
        %v2123 = vpop.f32.mrf.mxu0
        %2124 = vmatprep.mubr.f32.mxu0 0.0
        %2125 = vmatmul.mubr.f32.gmra.mxu0 %v1495
        %v2126 = vpop.f32.mrf.mxu0
        %v2127 = vadd.f32 0.0, %v2126
        %v2128 = vpop.f32.mrf.mxu0
        %2129 = vmatprep.mubr.f32.mxu0 0.0
        %2130 = vmatmul.mubr.f32.gmra.mxu0 %v1496
        %v2131 = vpop.f32.mrf.mxu0
        %v2132 = vadd.f32 0.0, %v2131
        %v2133 = vpop.f32.mrf.mxu0
        %2134 = vmatprep.mubr.f32.mxu0 0.0
        %2135 = vmatmul.mubr.f32.gmra.mxu0 %v1497
        %v2136 = vpop.f32.mrf.mxu0
        %v2137 = vadd.f32 0.0, %v2136
        %v2138 = vpop.f32.mrf.mxu0
        %2139 = vmatprep.mubr.f32.mxu0 0.0
        %2140 = vmatmul.mubr.f32.gmra.mxu0 %v1498
        %v2141 = vpop.f32.mrf.mxu0
        %v2142 = vadd.f32 0.0, %v2141
        %v2143 = vpop.f32.mrf.mxu0
        %2144 = vdwg.mxu0
        %2145 = vmatprep.subr.mxu0 0.0
        %2146 = vmatpush1.xpose.msra.mxu0 0.0
        %2147 = vmatprep.subr.mxu0 0.0
        %2148 = vmatpush1.xpose.msra.mxu0 0.0
        %2149 = vmatprep.subr.mxu0 0.0
        %2150 = vmatpush1.xpose.msra.mxu0 0.0
        %2151 = vmatprep.subr.mxu0 0.0
        %2152 = vmatpush1.xpose.msra.mxu0 0.0
        %2153 = vmatprep.subr.mxu0 0.0
        %2154 = vmatpush1.xpose.msra.mxu0 0.0
        %2155 = vmatprep.subr.mxu0 0.0
        %2156 = vmatpush1.xpose.msra.mxu0 0.0
        %2157 = vmatprep.subr.mxu0 0.0
        %2158 = vmatpush1.xpose.msra.mxu0 0.0
        %2159 = vmatprep.subr.mxu0 0.0
        %2160 = vmatpush1.xpose.msra.mxu0 0.0
        %2161 = vmatprep.subr.mxu0 0.0
        %2162 = vmatpush1.xpose.msra.mxu0 0.0
        %2163 = vmatprep.subr.mxu0 0.0
        %2164 = vmatpush1.xpose.msra.mxu0 0.0
        %2165 = vmatprep.subr.mxu0 0.0
        %2166 = vmatpush1.xpose.msra.mxu0 0.0
        %2167 = vmatprep.subr.mxu0 0.0
        %2168 = vmatpush1.xpose.msra.mxu0 0.0
        %2169 = vmatprep.subr.mxu0 0.0
        %2170 = vmatpush1.xpose.msra.mxu0 %v1423
        %2171 = vmatprep.subr.mxu0 0.0
        %2172 = vmatpush1.xpose.msra.mxu0 %v1417
        %2173 = vmatprep.subr.mxu0 0.0
        %2174 = vmatpush1.xpose.msra.mxu0 %v1411
        %2175 = vmatprep.subr.mxu0 0.0
        %2176 = vmatpush1.xpose.msra.mxu0 %v1405
        %2177 = vmatprep.subr.mxu0 0.0
        %2178 = vmatpush2.xpose.msra.mxu0 0.0
        %2179 = vmatprep.subr.mxu0 0.0
        %2180 = vmatpush2.xpose.msra.mxu0 0.0
        %2181 = vmatprep.subr.mxu0 0.0
        %2182 = vmatpush2.xpose.msra.mxu0 0.0
        %2183 = vmatprep.subr.mxu0 0.0
        %2184 = vmatpush2.xpose.msra.mxu0 0.0
        %2185 = vmatprep.subr.mxu0 0.0
        %2186 = vmatpush2.xpose.msra.mxu0 0.0
        %2187 = vmatprep.subr.mxu0 0.0
        %2188 = vmatpush2.xpose.msra.mxu0 0.0
        %2189 = vmatprep.subr.mxu0 0.0
        %2190 = vmatpush2.xpose.msra.mxu0 0.0
        %2191 = vmatprep.subr.mxu0 0.0
        %2192 = vmatpush2.xpose.msra.mxu0 0.0
        %2193 = vmatprep.subr.mxu0 0.0
        %2194 = vmatpush2.xpose.msra.mxu0 0.0
        %2195 = vmatprep.subr.mxu0 0.0
        %2196 = vmatpush2.xpose.msra.mxu0 0.0
        %2197 = vmatprep.subr.mxu0 0.0
        %2198 = vmatpush2.xpose.msra.mxu0 0.0
        %2199 = vmatprep.subr.mxu0 0.0
        %2200 = vmatpush2.xpose.msra.mxu0 0.0
        %2201 = vmatprep.subr.mxu0 0.0
        %2202 = vmatpush2.xpose.msra.mxu0 0.0
        %2203 = vmatprep.subr.mxu0 0.0
        %2204 = vmatpush2.xpose.msra.mxu0 0.0
        %2205 = vmatprep.subr.mxu0 0.0
        %2206 = vmatpush2.xpose.msra.mxu0 0.0
        %2207 = vmatprep.subr.mxu0 0.0
        %2208 = vmatpush2.xpose.msra.mxu0 0.0
        %2209 = vmatprep.mubr.f32.mxu0 0.0
        %2210 = vmatmul.mubr.f32.gmra.mxu0 %v1499
        %v2211 = vpop.f32.mrf.mxu0
        %v2212 = vadd.f32 0.0, %v2211
        %v2213 = vpop.f32.mrf.mxu0
        %2214 = vmatprep.mubr.f32.mxu0 0.0
        %2215 = vmatmul.mubr.f32.gmra.mxu0 %v1500
        %v2216 = vpop.f32.mrf.mxu0
        %v2217 = vadd.f32 0.0, %v2216
        %v2218 = vpop.f32.mrf.mxu0
        %2219 = vmatprep.mubr.f32.mxu0 0.0
        %2220 = vmatmul.mubr.f32.gmra.mxu0 %v1501
        %v2221 = vpop.f32.mrf.mxu0
        %v2222 = vadd.f32 0.0, %v2221
        %v2223 = vpop.f32.mrf.mxu0
        %2224 = vmatprep.mubr.f32.mxu0 0.0
        %2225 = vmatmul.mubr.f32.gmra.mxu0 %v1502
        %v2226 = vpop.f32.mrf.mxu0
        %v2227 = vadd.f32 0.0, %v2226
        %v2228 = vpop.f32.mrf.mxu0
        %2229 = vmatprep.mubr.f32.mxu0 0.0
        %2230 = vmatmul.mubr.f32.gmra.mxu0 %v1503
        %v2231 = vpop.f32.mrf.mxu0
        %v2232 = vadd.f32 0.0, %v2231
        %v2233 = vpop.f32.mrf.mxu0
        %2234 = vmatprep.mubr.f32.mxu0 0.0
        %2235 = vmatmul.mubr.f32.gmra.mxu0 %v1504
        %v2236 = vpop.f32.mrf.mxu0
        %v2237 = vadd.f32 0.0, %v2236
        %v2238 = vpop.f32.mrf.mxu0
        %2239 = vmatprep.mubr.f32.mxu0 0.0
        %2240 = vmatmul.mubr.f32.gmra.mxu0 %v1505
        %v2241 = vpop.f32.mrf.mxu0
        %v2242 = vadd.f32 0.0, %v2241
        %v2243 = vpop.f32.mrf.mxu0
        %2244 = vmatprep.mubr.f32.mxu0 0.0
        %2245 = vmatmul.mubr.f32.gmra.mxu0 %v1506
        %v2246 = vpop.f32.mrf.mxu0
        %v2247 = vadd.f32 0.0, %v2246
        %v2248 = vpop.f32.mrf.mxu0
        %2249 = vdwg.mxu0
        %2250 = vmatprep.subr.mxu0 0.0
        %2251 = vmatpush1.xpose.msra.mxu0 0.0
        %2252 = vmatprep.subr.mxu0 0.0
        %2253 = vmatpush1.xpose.msra.mxu0 0.0
        %2254 = vmatprep.subr.mxu0 0.0
        %2255 = vmatpush1.xpose.msra.mxu0 0.0
        %2256 = vmatprep.subr.mxu0 0.0
        %2257 = vmatpush1.xpose.msra.mxu0 0.0
        %2258 = vmatprep.subr.mxu0 0.0
        %2259 = vmatpush1.xpose.msra.mxu0 0.0
        %2260 = vmatprep.subr.mxu0 0.0
        %2261 = vmatpush1.xpose.msra.mxu0 0.0
        %2262 = vmatprep.subr.mxu0 0.0
        %2263 = vmatpush1.xpose.msra.mxu0 0.0
        %2264 = vmatprep.subr.mxu0 0.0
        %2265 = vmatpush1.xpose.msra.mxu0 0.0
        %2266 = vmatprep.subr.mxu0 0.0
        %2267 = vmatpush1.xpose.msra.mxu0 0.0
        %2268 = vmatprep.subr.mxu0 0.0
        %2269 = vmatpush1.xpose.msra.mxu0 0.0
        %2270 = vmatprep.subr.mxu0 0.0
        %2271 = vmatpush1.xpose.msra.mxu0 0.0
        %2272 = vmatprep.subr.mxu0 0.0
        %2273 = vmatpush1.xpose.msra.mxu0 0.0
        %2274 = vmatprep.subr.mxu0 0.0
        %2275 = vmatpush1.xpose.msra.mxu0 %v1447
        %2276 = vmatprep.subr.mxu0 0.0
        %2277 = vmatpush1.xpose.msra.mxu0 %v1441
        %2278 = vmatprep.subr.mxu0 0.0
        %2279 = vmatpush1.xpose.msra.mxu0 %v1435
        %2280 = vmatprep.subr.mxu0 0.0
        %2281 = vmatpush1.xpose.msra.mxu0 %v1429
        %2282 = vmatprep.subr.mxu0 0.0
        %2283 = vmatpush2.xpose.msra.mxu0 0.0
        %2284 = vmatprep.subr.mxu0 0.0
        %2285 = vmatpush2.xpose.msra.mxu0 0.0
        %2286 = vmatprep.subr.mxu0 0.0
        %2287 = vmatpush2.xpose.msra.mxu0 0.0
        %2288 = vmatprep.subr.mxu0 0.0
        %2289 = vmatpush2.xpose.msra.mxu0 0.0
        %2290 = vmatprep.subr.mxu0 0.0
        %2291 = vmatpush2.xpose.msra.mxu0 0.0
        %2292 = vmatprep.subr.mxu0 0.0
        %2293 = vmatpush2.xpose.msra.mxu0 0.0
        %2294 = vmatprep.subr.mxu0 0.0
        %2295 = vmatpush2.xpose.msra.mxu0 0.0
        %2296 = vmatprep.subr.mxu0 0.0
        %2297 = vmatpush2.xpose.msra.mxu0 0.0
        %2298 = vmatprep.subr.mxu0 0.0
        %2299 = vmatpush2.xpose.msra.mxu0 0.0
        %2300 = vmatprep.subr.mxu0 0.0
        %2301 = vmatpush2.xpose.msra.mxu0 0.0
        %2302 = vmatprep.subr.mxu0 0.0
        %2303 = vmatpush2.xpose.msra.mxu0 0.0
        %2304 = vmatprep.subr.mxu0 0.0
        %2305 = vmatpush2.xpose.msra.mxu0 0.0
        %2306 = vmatprep.subr.mxu0 0.0
        %2307 = vmatpush2.xpose.msra.mxu0 0.0
        %2308 = vmatprep.subr.mxu0 0.0
        %2309 = vmatpush2.xpose.msra.mxu0 0.0
        %2310 = vmatprep.subr.mxu0 0.0
        %2311 = vmatpush2.xpose.msra.mxu0 0.0
        %2312 = vmatprep.subr.mxu0 0.0
        %2313 = vmatpush2.xpose.msra.mxu0 0.0
        %2314 = vmatprep.mubr.f32.mxu0 0.0
        %2315 = vmatmul.mubr.f32.gmra.mxu0 %v1507
        %v2316 = vpop.f32.mrf.mxu0
        %v2317 = vadd.f32 0.0, %v2316
        %v2318 = vpop.f32.mrf.mxu0
        %2319 = vmatprep.mubr.f32.mxu0 0.0
        %2320 = vmatmul.mubr.f32.gmra.mxu0 %v1508
        %v2321 = vpop.f32.mrf.mxu0
        %v2322 = vadd.f32 0.0, %v2321
        %v2323 = vpop.f32.mrf.mxu0
        %2324 = vmatprep.mubr.f32.mxu0 0.0
        %2325 = vmatmul.mubr.f32.gmra.mxu0 %v1509
        %v2326 = vpop.f32.mrf.mxu0
        %v2327 = vadd.f32 0.0, %v2326
        %v2328 = vpop.f32.mrf.mxu0
        %2329 = vmatprep.mubr.f32.mxu0 0.0
        %2330 = vmatmul.mubr.f32.gmra.mxu0 %v1510
        %v2331 = vpop.f32.mrf.mxu0
        %v2332 = vadd.f32 0.0, %v2331
        %v2333 = vpop.f32.mrf.mxu0
        %2334 = vmatprep.mubr.f32.mxu0 0.0
        %2335 = vmatmul.mubr.f32.gmra.mxu0 %v1511
        %v2336 = vpop.f32.mrf.mxu0
        %v2337 = vadd.f32 0.0, %v2336
        %v2338 = vpop.f32.mrf.mxu0
        %2339 = vmatprep.mubr.f32.mxu0 0.0
        %2340 = vmatmul.mubr.f32.gmra.mxu0 %v1512
        %v2341 = vpop.f32.mrf.mxu0
        %v2342 = vadd.f32 0.0, %v2341
        %v2343 = vpop.f32.mrf.mxu0
        %2344 = vmatprep.mubr.f32.mxu0 0.0
        %2345 = vmatmul.mubr.f32.gmra.mxu0 %v1513
        %v2346 = vpop.f32.mrf.mxu0
        %v2347 = vadd.f32 0.0, %v2346
        %v2348 = vpop.f32.mrf.mxu0
        %2349 = vmatprep.mubr.f32.mxu0 0.0
        %2350 = vmatmul.mubr.f32.gmra.mxu0 %v1514
        %v2351 = vpop.f32.mrf.mxu0
        %v2352 = vadd.f32 0.0, %v2351
        %v2353 = vpop.f32.mrf.mxu0
        %2354 = vdwg.mxu0
        %v2355 = vld [vmem:[#allocation3] sm:$0xff]
        %v2356 = vld [vmem:[#allocation3 + $0x8] sm:$0xff]
        %v2357 = vld [vmem:[#allocation3 + $0x10] sm:$0xff]
        %v2358 = vld [vmem:[#allocation3 + $0x18] sm:$0xff]
        %v2359 = vld [vmem:[#allocation3 + $0x20] sm:$0xff]
        %v2360 = vld [vmem:[#allocation3 + $0x28] sm:$0xff]
        %v2361 = vld [vmem:[#allocation3 + $0x30] sm:$0xff]
        %v2362 = vld [vmem:[#allocation3 + $0x38] sm:$0xff]
        %v2363 = vld [vmem:[#allocation3 + $0x40] sm:$0xff]
        %v2364 = vld [vmem:[#allocation3 + $0x48] sm:$0xff]
        %v2365 = vld [vmem:[#allocation3 + $0x50] sm:$0xff]
        %v2366 = vld [vmem:[#allocation3 + $0x58] sm:$0xff]
        %v2367 = vld [vmem:[#allocation3 + $0x60] sm:$0xff]
        %v2368 = vld [vmem:[#allocation3 + $0x68] sm:$0xff]
        %v2369 = vld [vmem:[#allocation3 + $0x70] sm:$0xff]
        %v2370 = vld [vmem:[#allocation3 + $0x78] sm:$0xff]
        %v2371 = vld [vmem:[#allocation3 + $0x80] sm:$0xff]
        %v2372 = vld [vmem:[#allocation3 + $0x88] sm:$0xff]
        %v2373 = vld [vmem:[#allocation3 + $0x90] sm:$0xff]
        %v2374 = vld [vmem:[#allocation3 + $0x98] sm:$0xff]
        %v2375 = vld [vmem:[#allocation3 + $0xa0] sm:$0xff]
        %v2376 = vld [vmem:[#allocation3 + $0xa8] sm:$0xff]
        %v2377 = vld [vmem:[#allocation3 + $0xb0] sm:$0xff]
        %v2378 = vld [vmem:[#allocation3 + $0xb8] sm:$0xff]
        %v2379 = vld [vmem:[#allocation3 + $0xc0] sm:$0xff]
        %v2380 = vld [vmem:[#allocation3 + $0xc8] sm:$0xff]
        %v2381 = vld [vmem:[#allocation3 + $0xd0] sm:$0xff]
        %v2382 = vld [vmem:[#allocation3 + $0xd8] sm:$0xff]
        %v2383 = vld [vmem:[#allocation3 + $0xe0] sm:$0xff]
        %v2384 = vld [vmem:[#allocation3 + $0xe8] sm:$0xff]
        %v2385 = vld [vmem:[#allocation3 + $0xf0] sm:$0xff]
        %v2386 = vld [vmem:[#allocation3 + $0xf8] sm:$0xff]
        %v2387 = vld [vmem:[#allocation3 + $0x100] sm:$0xff]
        %v2388 = vld [vmem:[#allocation3 + $0x108] sm:$0xff]
        %v2389 = vld [vmem:[#allocation3 + $0x110] sm:$0xff]
        %v2390 = vld [vmem:[#allocation3 + $0x118] sm:$0xff]
        %v2391 = vld [vmem:[#allocation3 + $0x120] sm:$0xff]
        %v2392 = vld [vmem:[#allocation3 + $0x128] sm:$0xff]
        %v2393 = vld [vmem:[#allocation3 + $0x130] sm:$0xff]
        %v2394 = vld [vmem:[#allocation3 + $0x138] sm:$0xff]
        %v2395 = vld [vmem:[#allocation3 + $0x140] sm:$0xff]
        %v2396 = vld [vmem:[#allocation3 + $0x148] sm:$0xff]
        %v2397 = vld [vmem:[#allocation3 + $0x150] sm:$0xff]
        %v2398 = vld [vmem:[#allocation3 + $0x158] sm:$0xff]
        %v2399 = vld [vmem:[#allocation3 + $0x160] sm:$0xff]
        %v2400 = vld [vmem:[#allocation3 + $0x168] sm:$0xff]
        %v2401 = vld [vmem:[#allocation3 + $0x170] sm:$0xff]
        %v2402 = vld [vmem:[#allocation3 + $0x178] sm:$0xff]
        %v2403 = vld [vmem:[#allocation3 + $0x180] sm:$0xff]
        %v2404 = vld [vmem:[#allocation3 + $0x188] sm:$0xff]
        %v2405 = vld [vmem:[#allocation3 + $0x190] sm:$0xff]
        %v2406 = vld [vmem:[#allocation3 + $0x198] sm:$0xff]
        %v2407 = vld [vmem:[#allocation3 + $0x1a0] sm:$0xff]
        %v2408 = vld [vmem:[#allocation3 + $0x1a8] sm:$0xff]
        %v2409 = vld [vmem:[#allocation3 + $0x1b0] sm:$0xff]
        %v2410 = vld [vmem:[#allocation3 + $0x1b8] sm:$0xff]
        %v2411 = vld [vmem:[#allocation3 + $0x1c0] sm:$0xff]
        %v2412 = vld [vmem:[#allocation3 + $0x1c8] sm:$0xff]
        %v2413 = vld [vmem:[#allocation3 + $0x1d0] sm:$0xff]
        %v2414 = vld [vmem:[#allocation3 + $0x1d8] sm:$0xff]
        %v2415 = vld [vmem:[#allocation3 + $0x1e0] sm:$0xff]
        %v2416 = vld [vmem:[#allocation3 + $0x1e8] sm:$0xff]
        %v2417 = vld [vmem:[#allocation3 + $0x1f0] sm:$0xff]
        %v2418 = vld [vmem:[#allocation3 + $0x1f8] sm:$0xff]
        %vm2419 = vcmask 261120
        %v2420 = vsel %vm2419, %v1582, -inf
        %2421 = vmax.xlane.f32.xlu0 %v2420
        %v2422 = vpop.xlane.xlu0 %2421
        %v2423 = vsel %vm2419, %v1587, -inf
        %2424 = vmax.xlane.f32.xlu0 %v2423
        %v2425 = vpop.xlane.xlu0 %2424
        %v2426 = vsel %vm2419, %v1592, -inf
        %2427 = vmax.xlane.f32.xlu0 %v2426
        %v2428 = vpop.xlane.xlu0 %2427
        %v2429 = vsel %vm2419, %v1597, -inf
        %2430 = vmax.xlane.f32.xlu0 %v2429
        %v2431 = vpop.xlane.xlu0 %2430
        %v2432 = vsel %vm2419, %v1602, -inf
        %2433 = vmax.xlane.f32.xlu0 %v2432
        %v2434 = vpop.xlane.xlu0 %2433
        %v2435 = vsel %vm2419, %v1607, -inf
        %2436 = vmax.xlane.f32.xlu0 %v2435
        %v2437 = vpop.xlane.xlu0 %2436
        %v2438 = vsel %vm2419, %v1612, -inf
        %2439 = vmax.xlane.f32.xlu0 %v2438
        %v2440 = vpop.xlane.xlu0 %2439
        %v2441 = vsel %vm2419, %v1617, -inf
        %2442 = vmax.xlane.f32.xlu0 %v2441
        %v2443 = vpop.xlane.xlu0 %2442
        %v2444 = vsel %vm2419, %v1687, -inf
        %2445 = vmax.xlane.f32.xlu0 %v2444
        %v2446 = vpop.xlane.xlu0 %2445
        %v2447 = vsel %vm2419, %v1692, -inf
        %2448 = vmax.xlane.f32.xlu0 %v2447
        %v2449 = vpop.xlane.xlu0 %2448
        %v2450 = vsel %vm2419, %v1697, -inf
        %2451 = vmax.xlane.f32.xlu0 %v2450
        %v2452 = vpop.xlane.xlu0 %2451
        %v2453 = vsel %vm2419, %v1702, -inf
        %2454 = vmax.xlane.f32.xlu0 %v2453
        %v2455 = vpop.xlane.xlu0 %2454
        %v2456 = vsel %vm2419, %v1707, -inf
        %2457 = vmax.xlane.f32.xlu0 %v2456
        %v2458 = vpop.xlane.xlu0 %2457
        %v2459 = vsel %vm2419, %v1712, -inf
        %2460 = vmax.xlane.f32.xlu0 %v2459
        %v2461 = vpop.xlane.xlu0 %2460
        %v2462 = vsel %vm2419, %v1717, -inf
        %2463 = vmax.xlane.f32.xlu0 %v2462
        %v2464 = vpop.xlane.xlu0 %2463
        %v2465 = vsel %vm2419, %v1722, -inf
        %2466 = vmax.xlane.f32.xlu0 %v2465
        %v2467 = vpop.xlane.xlu0 %2466
        %v2468 = vsel %vm2419, %v1792, -inf
        %2469 = vmax.xlane.f32.xlu0 %v2468
        %v2470 = vpop.xlane.xlu0 %2469
        %v2471 = vsel %vm2419, %v1797, -inf
        %2472 = vmax.xlane.f32.xlu0 %v2471
        %v2473 = vpop.xlane.xlu0 %2472
        %v2474 = vsel %vm2419, %v1802, -inf
        %2475 = vmax.xlane.f32.xlu0 %v2474
        %v2476 = vpop.xlane.xlu0 %2475
        %v2477 = vsel %vm2419, %v1807, -inf
        %2478 = vmax.xlane.f32.xlu0 %v2477
        %v2479 = vpop.xlane.xlu0 %2478
        %v2480 = vsel %vm2419, %v1812, -inf
        %2481 = vmax.xlane.f32.xlu0 %v2480
        %v2482 = vpop.xlane.xlu0 %2481
        %v2483 = vsel %vm2419, %v1817, -inf
        %2484 = vmax.xlane.f32.xlu0 %v2483
        %v2485 = vpop.xlane.xlu0 %2484
        %v2486 = vsel %vm2419, %v1822, -inf
        %2487 = vmax.xlane.f32.xlu0 %v2486
        %v2488 = vpop.xlane.xlu0 %2487
        %v2489 = vsel %vm2419, %v1827, -inf
        %2490 = vmax.xlane.f32.xlu0 %v2489
        %v2491 = vpop.xlane.xlu0 %2490
        %v2492 = vsel %vm2419, %v1897, -inf
        %2493 = vmax.xlane.f32.xlu0 %v2492
        %v2494 = vpop.xlane.xlu0 %2493
        %v2495 = vsel %vm2419, %v1902, -inf
        %2496 = vmax.xlane.f32.xlu0 %v2495
        %v2497 = vpop.xlane.xlu0 %2496
        %v2498 = vsel %vm2419, %v1907, -inf
        %2499 = vmax.xlane.f32.xlu0 %v2498
        %v2500 = vpop.xlane.xlu0 %2499
        %v2501 = vsel %vm2419, %v1912, -inf
        %2502 = vmax.xlane.f32.xlu0 %v2501
        %v2503 = vpop.xlane.xlu0 %2502
        %v2504 = vsel %vm2419, %v1917, -inf
        %2505 = vmax.xlane.f32.xlu0 %v2504
        %v2506 = vpop.xlane.xlu0 %2505
        %v2507 = vsel %vm2419, %v1922, -inf
        %2508 = vmax.xlane.f32.xlu0 %v2507
        %v2509 = vpop.xlane.xlu0 %2508
        %v2510 = vsel %vm2419, %v1927, -inf
        %2511 = vmax.xlane.f32.xlu0 %v2510
        %v2512 = vpop.xlane.xlu0 %2511
        %v2513 = vsel %vm2419, %v1932, -inf
        %2514 = vmax.xlane.f32.xlu0 %v2513
        %v2515 = vpop.xlane.xlu0 %2514
        %v2516 = vsel %vm2419, %v2002, -inf
        %2517 = vmax.xlane.f32.xlu0 %v2516
        %v2518 = vpop.xlane.xlu0 %2517
        %v2519 = vsel %vm2419, %v2007, -inf
        %2520 = vmax.xlane.f32.xlu0 %v2519
        %v2521 = vpop.xlane.xlu0 %2520
        %v2522 = vsel %vm2419, %v2012, -inf
        %2523 = vmax.xlane.f32.xlu0 %v2522
        %v2524 = vpop.xlane.xlu0 %2523
        %v2525 = vsel %vm2419, %v2017, -inf
        %2526 = vmax.xlane.f32.xlu0 %v2525
        %v2527 = vpop.xlane.xlu0 %2526
        %v2528 = vsel %vm2419, %v2022, -inf
        %2529 = vmax.xlane.f32.xlu0 %v2528
        %v2530 = vpop.xlane.xlu0 %2529
        %v2531 = vsel %vm2419, %v2027, -inf
        %2532 = vmax.xlane.f32.xlu0 %v2531
        %v2533 = vpop.xlane.xlu0 %2532
        %v2534 = vsel %vm2419, %v2032, -inf
        %2535 = vmax.xlane.f32.xlu0 %v2534
        %v2536 = vpop.xlane.xlu0 %2535
        %v2537 = vsel %vm2419, %v2037, -inf
        %2538 = vmax.xlane.f32.xlu0 %v2537
        %v2539 = vpop.xlane.xlu0 %2538
        %v2540 = vsel %vm2419, %v2107, -inf
        %2541 = vmax.xlane.f32.xlu0 %v2540
        %v2542 = vpop.xlane.xlu0 %2541
        %v2543 = vsel %vm2419, %v2112, -inf
        %2544 = vmax.xlane.f32.xlu0 %v2543
        %v2545 = vpop.xlane.xlu0 %2544
        %v2546 = vsel %vm2419, %v2117, -inf
        %2547 = vmax.xlane.f32.xlu0 %v2546
        %v2548 = vpop.xlane.xlu0 %2547
        %v2549 = vsel %vm2419, %v2122, -inf
        %2550 = vmax.xlane.f32.xlu0 %v2549
        %v2551 = vpop.xlane.xlu0 %2550
        %v2552 = vsel %vm2419, %v2127, -inf
        %2553 = vmax.xlane.f32.xlu0 %v2552
        %v2554 = vpop.xlane.xlu0 %2553
        %v2555 = vsel %vm2419, %v2132, -inf
        %2556 = vmax.xlane.f32.xlu0 %v2555
        %v2557 = vpop.xlane.xlu0 %2556
        %v2558 = vsel %vm2419, %v2137, -inf
        %2559 = vmax.xlane.f32.xlu0 %v2558
        %v2560 = vpop.xlane.xlu0 %2559
        %v2561 = vsel %vm2419, %v2142, -inf
        %2562 = vmax.xlane.f32.xlu0 %v2561
        %v2563 = vpop.xlane.xlu0 %2562
        %v2564 = vsel %vm2419, %v2212, -inf
        %2565 = vmax.xlane.f32.xlu0 %v2564
        %v2566 = vpop.xlane.xlu0 %2565
        %v2567 = vsel %vm2419, %v2217, -inf
        %2568 = vmax.xlane.f32.xlu0 %v2567
        %v2569 = vpop.xlane.xlu0 %2568
        %v2570 = vsel %vm2419, %v2222, -inf
        %2571 = vmax.xlane.f32.xlu0 %v2570
        %v2572 = vpop.xlane.xlu0 %2571
        %v2573 = vsel %vm2419, %v2227, -inf
        %2574 = vmax.xlane.f32.xlu0 %v2573
        %v2575 = vpop.xlane.xlu0 %2574
        %v2576 = vsel %vm2419, %v2232, -inf
        %2577 = vmax.xlane.f32.xlu0 %v2576
        %v2578 = vpop.xlane.xlu0 %2577
        %v2579 = vsel %vm2419, %v2237, -inf
        %2580 = vmax.xlane.f32.xlu0 %v2579
        %v2581 = vpop.xlane.xlu0 %2580
        %v2582 = vsel %vm2419, %v2242, -inf
        %2583 = vmax.xlane.f32.xlu0 %v2582
        %v2584 = vpop.xlane.xlu0 %2583
        %v2585 = vsel %vm2419, %v2247, -inf
        %2586 = vmax.xlane.f32.xlu0 %v2585
        %v2587 = vpop.xlane.xlu0 %2586
        %v2588 = vsel %vm2419, %v2317, -inf
        %2589 = vmax.xlane.f32.xlu0 %v2588
        %v2590 = vpop.xlane.xlu0 %2589
        %v2591 = vsel %vm2419, %v2322, -inf
        %2592 = vmax.xlane.f32.xlu0 %v2591
        %v2593 = vpop.xlane.xlu0 %2592
        %v2594 = vsel %vm2419, %v2327, -inf
        %2595 = vmax.xlane.f32.xlu0 %v2594
        %v2596 = vpop.xlane.xlu0 %2595
        %v2597 = vsel %vm2419, %v2332, -inf
        %2598 = vmax.xlane.f32.xlu0 %v2597
        %v2599 = vpop.xlane.xlu0 %2598
        %v2600 = vsel %vm2419, %v2337, -inf
        %2601 = vmax.xlane.f32.xlu0 %v2600
        %v2602 = vpop.xlane.xlu0 %2601
        %v2603 = vsel %vm2419, %v2342, -inf
        %2604 = vmax.xlane.f32.xlu0 %v2603
        %v2605 = vpop.xlane.xlu0 %2604
        %v2606 = vsel %vm2419, %v2347, -inf
        %2607 = vmax.xlane.f32.xlu0 %v2606
        %v2608 = vpop.xlane.xlu0 %2607
        %v2609 = vsel %vm2419, %v2352, -inf
        %2610 = vmax.xlane.f32.xlu0 %v2609
        %v2611 = vpop.xlane.xlu0 %2610
        %v2612 = vmax.f32 %v2355, %v2422
        %v2613 = vmax.f32 %v2356, %v2425
        %v2614 = vmax.f32 %v2357, %v2428
        %v2615 = vmax.f32 %v2358, %v2431
        %v2616 = vmax.f32 %v2359, %v2434
        %v2617 = vmax.f32 %v2360, %v2437
        %v2618 = vmax.f32 %v2361, %v2440
        %v2619 = vmax.f32 %v2362, %v2443
        %v2620 = vmax.f32 %v2363, %v2446
        %v2621 = vmax.f32 %v2364, %v2449
        %v2622 = vmax.f32 %v2365, %v2452
        %v2623 = vmax.f32 %v2366, %v2455
        %v2624 = vmax.f32 %v2367, %v2458
        %v2625 = vmax.f32 %v2368, %v2461
        %v2626 = vmax.f32 %v2369, %v2464
        %v2627 = vmax.f32 %v2370, %v2467
        %v2628 = vmax.f32 %v2371, %v2470
        %v2629 = vmax.f32 %v2372, %v2473
        %v2630 = vmax.f32 %v2373, %v2476
        %v2631 = vmax.f32 %v2374, %v2479
        %v2632 = vmax.f32 %v2375, %v2482
        %v2633 = vmax.f32 %v2376, %v2485
        %v2634 = vmax.f32 %v2377, %v2488
        %v2635 = vmax.f32 %v2378, %v2491
        %v2636 = vmax.f32 %v2379, %v2494
        %v2637 = vmax.f32 %v2380, %v2497
        %v2638 = vmax.f32 %v2381, %v2500
        %v2639 = vmax.f32 %v2382, %v2503
        %v2640 = vmax.f32 %v2383, %v2506
        %v2641 = vmax.f32 %v2384, %v2509
        %v2642 = vmax.f32 %v2385, %v2512
        %v2643 = vmax.f32 %v2386, %v2515
        %v2644 = vmax.f32 %v2387, %v2518
        %v2645 = vmax.f32 %v2388, %v2521
        %v2646 = vmax.f32 %v2389, %v2524
        %v2647 = vmax.f32 %v2390, %v2527
        %v2648 = vmax.f32 %v2391, %v2530
        %v2649 = vmax.f32 %v2392, %v2533
        %v2650 = vmax.f32 %v2393, %v2536
        %v2651 = vmax.f32 %v2394, %v2539
        %v2652 = vmax.f32 %v2395, %v2542
        %v2653 = vmax.f32 %v2396, %v2545
        %v2654 = vmax.f32 %v2397, %v2548
        %v2655 = vmax.f32 %v2398, %v2551
        %v2656 = vmax.f32 %v2399, %v2554
        %v2657 = vmax.f32 %v2400, %v2557
        %v2658 = vmax.f32 %v2401, %v2560
        %v2659 = vmax.f32 %v2402, %v2563
        %v2660 = vmax.f32 %v2403, %v2566
        %v2661 = vmax.f32 %v2404, %v2569
        %v2662 = vmax.f32 %v2405, %v2572
        %v2663 = vmax.f32 %v2406, %v2575
        %v2664 = vmax.f32 %v2407, %v2578
        %v2665 = vmax.f32 %v2408, %v2581
        %v2666 = vmax.f32 %v2409, %v2584
        %v2667 = vmax.f32 %v2410, %v2587
        %v2668 = vmax.f32 %v2411, %v2590
        %v2669 = vmax.f32 %v2412, %v2593
        %v2670 = vmax.f32 %v2413, %v2596
        %v2671 = vmax.f32 %v2414, %v2599
        %v2672 = vmax.f32 %v2415, %v2602
        %v2673 = vmax.f32 %v2416, %v2605
        %v2674 = vmax.f32 %v2417, %v2608
        %v2675 = vmax.f32 %v2418, %v2611
        %v2676 = vsub.f32 %v2355, %v2612
        %v2677 = vsub.f32 %v2356, %v2613
        %v2678 = vsub.f32 %v2357, %v2614
        %v2679 = vsub.f32 %v2358, %v2615
        %v2680 = vsub.f32 %v2359, %v2616
        %v2681 = vsub.f32 %v2360, %v2617
        %v2682 = vsub.f32 %v2361, %v2618
        %v2683 = vsub.f32 %v2362, %v2619
        %v2684 = vsub.f32 %v2363, %v2620
        %v2685 = vsub.f32 %v2364, %v2621
        %v2686 = vsub.f32 %v2365, %v2622
        %v2687 = vsub.f32 %v2366, %v2623
        %v2688 = vsub.f32 %v2367, %v2624
        %v2689 = vsub.f32 %v2368, %v2625
        %v2690 = vsub.f32 %v2369, %v2626
        %v2691 = vsub.f32 %v2370, %v2627
        %v2692 = vsub.f32 %v2371, %v2628
        %v2693 = vsub.f32 %v2372, %v2629
        %v2694 = vsub.f32 %v2373, %v2630
        %v2695 = vsub.f32 %v2374, %v2631
        %v2696 = vsub.f32 %v2375, %v2632
        %v2697 = vsub.f32 %v2376, %v2633
        %v2698 = vsub.f32 %v2377, %v2634
        %v2699 = vsub.f32 %v2378, %v2635
        %v2700 = vsub.f32 %v2379, %v2636
        %v2701 = vsub.f32 %v2380, %v2637
        %v2702 = vsub.f32 %v2381, %v2638
        %v2703 = vsub.f32 %v2382, %v2639
        %v2704 = vsub.f32 %v2383, %v2640
        %v2705 = vsub.f32 %v2384, %v2641
        %v2706 = vsub.f32 %v2385, %v2642
        %v2707 = vsub.f32 %v2386, %v2643
        %v2708 = vsub.f32 %v2387, %v2644
        %v2709 = vsub.f32 %v2388, %v2645
        %v2710 = vsub.f32 %v2389, %v2646
        %v2711 = vsub.f32 %v2390, %v2647
        %v2712 = vsub.f32 %v2391, %v2648
        %v2713 = vsub.f32 %v2392, %v2649
        %v2714 = vsub.f32 %v2393, %v2650
        %v2715 = vsub.f32 %v2394, %v2651
        %v2716 = vsub.f32 %v2395, %v2652
        %v2717 = vsub.f32 %v2396, %v2653
        %v2718 = vsub.f32 %v2397, %v2654
        %v2719 = vsub.f32 %v2398, %v2655
        %v2720 = vsub.f32 %v2399, %v2656
        %v2721 = vsub.f32 %v2400, %v2657
        %v2722 = vsub.f32 %v2401, %v2658
        %v2723 = vsub.f32 %v2402, %v2659
        %v2724 = vsub.f32 %v2403, %v2660
        %v2725 = vsub.f32 %v2404, %v2661
        %v2726 = vsub.f32 %v2405, %v2662
        %v2727 = vsub.f32 %v2406, %v2663
        %v2728 = vsub.f32 %v2407, %v2664
        %v2729 = vsub.f32 %v2408, %v2665
        %v2730 = vsub.f32 %v2409, %v2666
        %v2731 = vsub.f32 %v2410, %v2667
        %v2732 = vsub.f32 %v2411, %v2668
        %v2733 = vsub.f32 %v2412, %v2669
        %v2734 = vsub.f32 %v2413, %v2670
        %v2735 = vsub.f32 %v2414, %v2671
        %v2736 = vsub.f32 %v2415, %v2672
        %v2737 = vsub.f32 %v2416, %v2673
        %v2738 = vsub.f32 %v2417, %v2674
        %v2739 = vsub.f32 %v2418, %v2675
        %v2740 = vmul.f32 %v2676, 1.442695
        %v2741 = vpow.pop %v2740
        %v2742 = vmul.f32 %v2677, 1.442695
        %v2743 = vpow.pop %v2742
        %v2744 = vmul.f32 %v2678, 1.442695
        %v2745 = vpow.pop %v2744
        %v2746 = vmul.f32 %v2679, 1.442695
        %v2747 = vpow.pop %v2746
        %v2748 = vmul.f32 %v2680, 1.442695
        %v2749 = vpow.pop %v2748
        %v2750 = vmul.f32 %v2681, 1.442695
        %v2751 = vpow.pop %v2750
        %v2752 = vmul.f32 %v2682, 1.442695
        %v2753 = vpow.pop %v2752
        %v2754 = vmul.f32 %v2683, 1.442695
        %v2755 = vpow.pop %v2754
        %v2756 = vmul.f32 %v2684, 1.442695
        %v2757 = vpow.pop %v2756
        %v2758 = vmul.f32 %v2685, 1.442695
        %v2759 = vpow.pop %v2758
        %v2760 = vmul.f32 %v2686, 1.442695
        %v2761 = vpow.pop %v2760
        %v2762 = vmul.f32 %v2687, 1.442695
        %v2763 = vpow.pop %v2762
        %v2764 = vmul.f32 %v2688, 1.442695
        %v2765 = vpow.pop %v2764
        %v2766 = vmul.f32 %v2689, 1.442695
        %v2767 = vpow.pop %v2766
        %v2768 = vmul.f32 %v2690, 1.442695
        %v2769 = vpow.pop %v2768
        %v2770 = vmul.f32 %v2691, 1.442695
        %v2771 = vpow.pop %v2770
        %v2772 = vmul.f32 %v2692, 1.442695
        %v2773 = vpow.pop %v2772
        %v2774 = vmul.f32 %v2693, 1.442695
        %v2775 = vpow.pop %v2774
        %v2776 = vmul.f32 %v2694, 1.442695
        %v2777 = vpow.pop %v2776
        %v2778 = vmul.f32 %v2695, 1.442695
        %v2779 = vpow.pop %v2778
        %v2780 = vmul.f32 %v2696, 1.442695
        %v2781 = vpow.pop %v2780
        %v2782 = vmul.f32 %v2697, 1.442695
        %v2783 = vpow.pop %v2782
        %v2784 = vmul.f32 %v2698, 1.442695
        %v2785 = vpow.pop %v2784
        %v2786 = vmul.f32 %v2699, 1.442695
        %v2787 = vpow.pop %v2786
        %v2788 = vmul.f32 %v2700, 1.442695
        %v2789 = vpow.pop %v2788
        %v2790 = vmul.f32 %v2701, 1.442695
        %v2791 = vpow.pop %v2790
        %v2792 = vmul.f32 %v2702, 1.442695
        %v2793 = vpow.pop %v2792
        %v2794 = vmul.f32 %v2703, 1.442695
        %v2795 = vpow.pop %v2794
        %v2796 = vmul.f32 %v2704, 1.442695
        %v2797 = vpow.pop %v2796
        %v2798 = vmul.f32 %v2705, 1.442695
        %v2799 = vpow.pop %v2798
        %v2800 = vmul.f32 %v2706, 1.442695
        %v2801 = vpow.pop %v2800
        %v2802 = vmul.f32 %v2707, 1.442695
        %v2803 = vpow.pop %v2802
        %v2804 = vmul.f32 %v2708, 1.442695
        %v2805 = vpow.pop %v2804
        %v2806 = vmul.f32 %v2709, 1.442695
        %v2807 = vpow.pop %v2806
        %v2808 = vmul.f32 %v2710, 1.442695
        %v2809 = vpow.pop %v2808
        %v2810 = vmul.f32 %v2711, 1.442695
        %v2811 = vpow.pop %v2810
        %v2812 = vmul.f32 %v2712, 1.442695
        %v2813 = vpow.pop %v2812
        %v2814 = vmul.f32 %v2713, 1.442695
        %v2815 = vpow.pop %v2814
        %v2816 = vmul.f32 %v2714, 1.442695
        %v2817 = vpow.pop %v2816
        %v2818 = vmul.f32 %v2715, 1.442695
        %v2819 = vpow.pop %v2818
        %v2820 = vmul.f32 %v2716, 1.442695
        %v2821 = vpow.pop %v2820
        %v2822 = vmul.f32 %v2717, 1.442695
        %v2823 = vpow.pop %v2822
        %v2824 = vmul.f32 %v2718, 1.442695
        %v2825 = vpow.pop %v2824
        %v2826 = vmul.f32 %v2719, 1.442695
        %v2827 = vpow.pop %v2826
        %v2828 = vmul.f32 %v2720, 1.442695
        %v2829 = vpow.pop %v2828
        %v2830 = vmul.f32 %v2721, 1.442695
        %v2831 = vpow.pop %v2830
        %v2832 = vmul.f32 %v2722, 1.442695
        %v2833 = vpow.pop %v2832
        %v2834 = vmul.f32 %v2723, 1.442695
        %v2835 = vpow.pop %v2834
        %v2836 = vmul.f32 %v2724, 1.442695
        %v2837 = vpow.pop %v2836
        %v2838 = vmul.f32 %v2725, 1.442695
        %v2839 = vpow.pop %v2838
        %v2840 = vmul.f32 %v2726, 1.442695
        %v2841 = vpow.pop %v2840
        %v2842 = vmul.f32 %v2727, 1.442695
        %v2843 = vpow.pop %v2842
        %v2844 = vmul.f32 %v2728, 1.442695
        %v2845 = vpow.pop %v2844
        %v2846 = vmul.f32 %v2729, 1.442695
        %v2847 = vpow.pop %v2846
        %v2848 = vmul.f32 %v2730, 1.442695
        %v2849 = vpow.pop %v2848
        %v2850 = vmul.f32 %v2731, 1.442695
        %v2851 = vpow.pop %v2850
        %v2852 = vmul.f32 %v2732, 1.442695
        %v2853 = vpow.pop %v2852
        %v2854 = vmul.f32 %v2733, 1.442695
        %v2855 = vpow.pop %v2854
        %v2856 = vmul.f32 %v2734, 1.442695
        %v2857 = vpow.pop %v2856
        %v2858 = vmul.f32 %v2735, 1.442695
        %v2859 = vpow.pop %v2858
        %v2860 = vmul.f32 %v2736, 1.442695
        %v2861 = vpow.pop %v2860
        %v2862 = vmul.f32 %v2737, 1.442695
        %v2863 = vpow.pop %v2862
        %v2864 = vmul.f32 %v2738, 1.442695
        %v2865 = vpow.pop %v2864
        %v2866 = vmul.f32 %v2739, 1.442695
        %v2867 = vpow.pop %v2866
        %2869 = vset.pattern.permute.xlu0 0
        %2870 = vperm.xlu0 %2869, %v2612
        %v2871 = vpop.permute.xlu0 %2870
        %2874 = vset.pattern.permute.xlu0 0
        %2875 = vperm.xlu0 %2874, %v2613
        %v2876 = vpop.permute.xlu0 %2875
        %2879 = vset.pattern.permute.xlu0 0
        %2880 = vperm.xlu0 %2879, %v2614
        %v2881 = vpop.permute.xlu0 %2880
        %2884 = vset.pattern.permute.xlu0 0
        %2885 = vperm.xlu0 %2884, %v2615
        %v2886 = vpop.permute.xlu0 %2885
        %2889 = vset.pattern.permute.xlu0 0
        %2890 = vperm.xlu0 %2889, %v2616
        %v2891 = vpop.permute.xlu0 %2890
        %2894 = vset.pattern.permute.xlu0 0
        %2895 = vperm.xlu0 %2894, %v2617
        %v2896 = vpop.permute.xlu0 %2895
        %2899 = vset.pattern.permute.xlu0 0
        %2900 = vperm.xlu0 %2899, %v2618
        %v2901 = vpop.permute.xlu0 %2900
        %2904 = vset.pattern.permute.xlu0 0
        %2905 = vperm.xlu0 %2904, %v2619
        %v2906 = vpop.permute.xlu0 %2905
        %2909 = vset.pattern.permute.xlu0 0
        %2910 = vperm.xlu0 %2909, %v2620
        %v2911 = vpop.permute.xlu0 %2910
        %2914 = vset.pattern.permute.xlu0 0
        %2915 = vperm.xlu0 %2914, %v2621
        %v2916 = vpop.permute.xlu0 %2915
        %2919 = vset.pattern.permute.xlu0 0
        %2920 = vperm.xlu0 %2919, %v2622
        %v2921 = vpop.permute.xlu0 %2920
        %2924 = vset.pattern.permute.xlu0 0
        %2925 = vperm.xlu0 %2924, %v2623
        %v2926 = vpop.permute.xlu0 %2925
        %2929 = vset.pattern.permute.xlu0 0
        %2930 = vperm.xlu0 %2929, %v2624
        %v2931 = vpop.permute.xlu0 %2930
        %2934 = vset.pattern.permute.xlu0 0
        %2935 = vperm.xlu0 %2934, %v2625
        %v2936 = vpop.permute.xlu0 %2935
        %2939 = vset.pattern.permute.xlu0 0
        %2940 = vperm.xlu0 %2939, %v2626
        %v2941 = vpop.permute.xlu0 %2940
        %2944 = vset.pattern.permute.xlu0 0
        %2945 = vperm.xlu0 %2944, %v2627
        %v2946 = vpop.permute.xlu0 %2945
        %2949 = vset.pattern.permute.xlu0 0
        %2950 = vperm.xlu0 %2949, %v2628
        %v2951 = vpop.permute.xlu0 %2950
        %2954 = vset.pattern.permute.xlu0 0
        %2955 = vperm.xlu0 %2954, %v2629
        %v2956 = vpop.permute.xlu0 %2955
        %2959 = vset.pattern.permute.xlu0 0
        %2960 = vperm.xlu0 %2959, %v2630
        %v2961 = vpop.permute.xlu0 %2960
        %2964 = vset.pattern.permute.xlu0 0
        %2965 = vperm.xlu0 %2964, %v2631
        %v2966 = vpop.permute.xlu0 %2965
        %2969 = vset.pattern.permute.xlu0 0
        %2970 = vperm.xlu0 %2969, %v2632
        %v2971 = vpop.permute.xlu0 %2970
        %2974 = vset.pattern.permute.xlu0 0
        %2975 = vperm.xlu0 %2974, %v2633
        %v2976 = vpop.permute.xlu0 %2975
        %2979 = vset.pattern.permute.xlu0 0
        %2980 = vperm.xlu0 %2979, %v2634
        %v2981 = vpop.permute.xlu0 %2980
        %2984 = vset.pattern.permute.xlu0 0
        %2985 = vperm.xlu0 %2984, %v2635
        %v2986 = vpop.permute.xlu0 %2985
        %2989 = vset.pattern.permute.xlu0 0
        %2990 = vperm.xlu0 %2989, %v2636
        %v2991 = vpop.permute.xlu0 %2990
        %2994 = vset.pattern.permute.xlu0 0
        %2995 = vperm.xlu0 %2994, %v2637
        %v2996 = vpop.permute.xlu0 %2995
        %2999 = vset.pattern.permute.xlu0 0
        %3000 = vperm.xlu0 %2999, %v2638
        %v3001 = vpop.permute.xlu0 %3000
        %3004 = vset.pattern.permute.xlu0 0
        %3005 = vperm.xlu0 %3004, %v2639
        %v3006 = vpop.permute.xlu0 %3005
        %3009 = vset.pattern.permute.xlu0 0
        %3010 = vperm.xlu0 %3009, %v2640
        %v3011 = vpop.permute.xlu0 %3010
        %3014 = vset.pattern.permute.xlu0 0
        %3015 = vperm.xlu0 %3014, %v2641
        %v3016 = vpop.permute.xlu0 %3015
        %3019 = vset.pattern.permute.xlu0 0
        %3020 = vperm.xlu0 %3019, %v2642
        %v3021 = vpop.permute.xlu0 %3020
        %3024 = vset.pattern.permute.xlu0 0
        %3025 = vperm.xlu0 %3024, %v2643
        %v3026 = vpop.permute.xlu0 %3025
        %3029 = vset.pattern.permute.xlu0 0
        %3030 = vperm.xlu0 %3029, %v2644
        %v3031 = vpop.permute.xlu0 %3030
        %3034 = vset.pattern.permute.xlu0 0
        %3035 = vperm.xlu0 %3034, %v2645
        %v3036 = vpop.permute.xlu0 %3035
        %3039 = vset.pattern.permute.xlu0 0
        %3040 = vperm.xlu0 %3039, %v2646
        %v3041 = vpop.permute.xlu0 %3040
        %3044 = vset.pattern.permute.xlu0 0
        %3045 = vperm.xlu0 %3044, %v2647
        %v3046 = vpop.permute.xlu0 %3045
        %3049 = vset.pattern.permute.xlu0 0
        %3050 = vperm.xlu0 %3049, %v2648
        %v3051 = vpop.permute.xlu0 %3050
        %3054 = vset.pattern.permute.xlu0 0
        %3055 = vperm.xlu0 %3054, %v2649
        %v3056 = vpop.permute.xlu0 %3055
        %3059 = vset.pattern.permute.xlu0 0
        %3060 = vperm.xlu0 %3059, %v2650
        %v3061 = vpop.permute.xlu0 %3060
        %3064 = vset.pattern.permute.xlu0 0
        %3065 = vperm.xlu0 %3064, %v2651
        %v3066 = vpop.permute.xlu0 %3065
        %3069 = vset.pattern.permute.xlu0 0
        %3070 = vperm.xlu0 %3069, %v2652
        %v3071 = vpop.permute.xlu0 %3070
        %3074 = vset.pattern.permute.xlu0 0
        %3075 = vperm.xlu0 %3074, %v2653
        %v3076 = vpop.permute.xlu0 %3075
        %3079 = vset.pattern.permute.xlu0 0
        %3080 = vperm.xlu0 %3079, %v2654
        %v3081 = vpop.permute.xlu0 %3080
        %3084 = vset.pattern.permute.xlu0 0
        %3085 = vperm.xlu0 %3084, %v2655
        %v3086 = vpop.permute.xlu0 %3085
        %3089 = vset.pattern.permute.xlu0 0
        %3090 = vperm.xlu0 %3089, %v2656
        %v3091 = vpop.permute.xlu0 %3090
        %3094 = vset.pattern.permute.xlu0 0
        %3095 = vperm.xlu0 %3094, %v2657
        %v3096 = vpop.permute.xlu0 %3095
        %3099 = vset.pattern.permute.xlu0 0
        %3100 = vperm.xlu0 %3099, %v2658
        %v3101 = vpop.permute.xlu0 %3100
        %3104 = vset.pattern.permute.xlu0 0
        %3105 = vperm.xlu0 %3104, %v2659
        %v3106 = vpop.permute.xlu0 %3105
        %3109 = vset.pattern.permute.xlu0 0
        %3110 = vperm.xlu0 %3109, %v2660
        %v3111 = vpop.permute.xlu0 %3110
        %3114 = vset.pattern.permute.xlu0 0
        %3115 = vperm.xlu0 %3114, %v2661
        %v3116 = vpop.permute.xlu0 %3115
        %3119 = vset.pattern.permute.xlu0 0
        %3120 = vperm.xlu0 %3119, %v2662
        %v3121 = vpop.permute.xlu0 %3120
        %3124 = vset.pattern.permute.xlu0 0
        %3125 = vperm.xlu0 %3124, %v2663
        %v3126 = vpop.permute.xlu0 %3125
        %3129 = vset.pattern.permute.xlu0 0
        %3130 = vperm.xlu0 %3129, %v2664
        %v3131 = vpop.permute.xlu0 %3130
        %3134 = vset.pattern.permute.xlu0 0
        %3135 = vperm.xlu0 %3134, %v2665
        %v3136 = vpop.permute.xlu0 %3135
        %3139 = vset.pattern.permute.xlu0 0
        %3140 = vperm.xlu0 %3139, %v2666
        %v3141 = vpop.permute.xlu0 %3140
        %3144 = vset.pattern.permute.xlu0 0
        %3145 = vperm.xlu0 %3144, %v2667
        %v3146 = vpop.permute.xlu0 %3145
        %3149 = vset.pattern.permute.xlu0 0
        %3150 = vperm.xlu0 %3149, %v2668
        %v3151 = vpop.permute.xlu0 %3150
        %3154 = vset.pattern.permute.xlu0 0
        %3155 = vperm.xlu0 %3154, %v2669
        %v3156 = vpop.permute.xlu0 %3155
        %3159 = vset.pattern.permute.xlu0 0
        %3160 = vperm.xlu0 %3159, %v2670
        %v3161 = vpop.permute.xlu0 %3160
        %3164 = vset.pattern.permute.xlu0 0
        %3165 = vperm.xlu0 %3164, %v2671
        %v3166 = vpop.permute.xlu0 %3165
        %3169 = vset.pattern.permute.xlu0 0
        %3170 = vperm.xlu0 %3169, %v2672
        %v3171 = vpop.permute.xlu0 %3170
        %3174 = vset.pattern.permute.xlu0 0
        %3175 = vperm.xlu0 %3174, %v2673
        %v3176 = vpop.permute.xlu0 %3175
        %3179 = vset.pattern.permute.xlu0 0
        %3180 = vperm.xlu0 %3179, %v2674
        %v3181 = vpop.permute.xlu0 %3180
        %3184 = vset.pattern.permute.xlu0 0
        %3185 = vperm.xlu0 %3184, %v2675
        %v3186 = vpop.permute.xlu0 %3185
        %v3188 = vsub.f32 %v1582, %v2871
        %v3189 = vsub.f32 %v1587, %v2876
        %v3190 = vsub.f32 %v1592, %v2881
        %v3191 = vsub.f32 %v1597, %v2886
        %v3192 = vsub.f32 %v1602, %v2891
        %v3193 = vsub.f32 %v1607, %v2896
        %v3194 = vsub.f32 %v1612, %v2901
        %v3195 = vsub.f32 %v1617, %v2906
        %v3196 = vsub.f32 %v1687, %v2911
        %v3197 = vsub.f32 %v1692, %v2916
        %v3198 = vsub.f32 %v1697, %v2921
        %v3199 = vsub.f32 %v1702, %v2926
        %v3200 = vsub.f32 %v1707, %v2931
        %v3201 = vsub.f32 %v1712, %v2936
        %v3202 = vsub.f32 %v1717, %v2941
        %v3203 = vsub.f32 %v1722, %v2946
        %v3204 = vsub.f32 %v1792, %v2951
        %v3205 = vsub.f32 %v1797, %v2956
        %v3206 = vsub.f32 %v1802, %v2961
        %v3207 = vsub.f32 %v1807, %v2966
        %v3208 = vsub.f32 %v1812, %v2971
        %v3209 = vsub.f32 %v1817, %v2976
        %v3210 = vsub.f32 %v1822, %v2981
        %v3211 = vsub.f32 %v1827, %v2986
        %v3212 = vsub.f32 %v1897, %v2991
        %v3213 = vsub.f32 %v1902, %v2996
        %v3214 = vsub.f32 %v1907, %v3001
        %v3215 = vsub.f32 %v1912, %v3006
        %v3216 = vsub.f32 %v1917, %v3011
        %v3217 = vsub.f32 %v1922, %v3016
        %v3218 = vsub.f32 %v1927, %v3021
        %v3219 = vsub.f32 %v1932, %v3026
        %v3220 = vsub.f32 %v2002, %v3031
        %v3221 = vsub.f32 %v2007, %v3036
        %v3222 = vsub.f32 %v2012, %v3041
        %v3223 = vsub.f32 %v2017, %v3046
        %v3224 = vsub.f32 %v2022, %v3051
        %v3225 = vsub.f32 %v2027, %v3056
        %v3226 = vsub.f32 %v2032, %v3061
        %v3227 = vsub.f32 %v2037, %v3066
        %v3228 = vsub.f32 %v2107, %v3071
        %v3229 = vsub.f32 %v2112, %v3076
        %v3230 = vsub.f32 %v2117, %v3081
        %v3231 = vsub.f32 %v2122, %v3086
        %v3232 = vsub.f32 %v2127, %v3091
        %v3233 = vsub.f32 %v2132, %v3096
        %v3234 = vsub.f32 %v2137, %v3101
        %v3235 = vsub.f32 %v2142, %v3106
        %v3236 = vsub.f32 %v2212, %v3111
        %v3237 = vsub.f32 %v2217, %v3116
        %v3238 = vsub.f32 %v2222, %v3121
        %v3239 = vsub.f32 %v2227, %v3126
        %v3240 = vsub.f32 %v2232, %v3131
        %v3241 = vsub.f32 %v2237, %v3136
        %v3242 = vsub.f32 %v2242, %v3141
        %v3243 = vsub.f32 %v2247, %v3146
        %v3244 = vsub.f32 %v2317, %v3151
        %v3245 = vsub.f32 %v2322, %v3156
        %v3246 = vsub.f32 %v2327, %v3161
        %v3247 = vsub.f32 %v2332, %v3166
        %v3248 = vsub.f32 %v2337, %v3171
        %v3249 = vsub.f32 %v2342, %v3176
        %v3250 = vsub.f32 %v2347, %v3181
        %v3251 = vsub.f32 %v2352, %v3186
        %v3252 = vmul.f32 %v3188, 1.442695
        %v3253 = vpow.pop %v3252
        %v3254 = vmul.f32 %v3189, 1.442695
        %v3255 = vpow.pop %v3254
        %v3256 = vmul.f32 %v3190, 1.442695
        %v3257 = vpow.pop %v3256
        %v3258 = vmul.f32 %v3191, 1.442695
        %v3259 = vpow.pop %v3258
        %v3260 = vmul.f32 %v3192, 1.442695
        %v3261 = vpow.pop %v3260
        %v3262 = vmul.f32 %v3193, 1.442695
        %v3263 = vpow.pop %v3262
        %v3264 = vmul.f32 %v3194, 1.442695
        %v3265 = vpow.pop %v3264
        %v3266 = vmul.f32 %v3195, 1.442695
        %v3267 = vpow.pop %v3266
        %v3268 = vmul.f32 %v3196, 1.442695
        %v3269 = vpow.pop %v3268
        %v3270 = vmul.f32 %v3197, 1.442695
        %v3271 = vpow.pop %v3270
        %v3272 = vmul.f32 %v3198, 1.442695
        %v3273 = vpow.pop %v3272
        %v3274 = vmul.f32 %v3199, 1.442695
        %v3275 = vpow.pop %v3274
        %v3276 = vmul.f32 %v3200, 1.442695
        %v3277 = vpow.pop %v3276
        %v3278 = vmul.f32 %v3201, 1.442695
        %v3279 = vpow.pop %v3278
        %v3280 = vmul.f32 %v3202, 1.442695
        %v3281 = vpow.pop %v3280
        %v3282 = vmul.f32 %v3203, 1.442695
        %v3283 = vpow.pop %v3282
        %v3284 = vmul.f32 %v3204, 1.442695
        %v3285 = vpow.pop %v3284
        %v3286 = vmul.f32 %v3205, 1.442695
        %v3287 = vpow.pop %v3286
        %v3288 = vmul.f32 %v3206, 1.442695
        %v3289 = vpow.pop %v3288
        %v3290 = vmul.f32 %v3207, 1.442695
        %v3291 = vpow.pop %v3290
        %v3292 = vmul.f32 %v3208, 1.442695
        %v3293 = vpow.pop %v3292
        %v3294 = vmul.f32 %v3209, 1.442695
        %v3295 = vpow.pop %v3294
        %v3296 = vmul.f32 %v3210, 1.442695
        %v3297 = vpow.pop %v3296
        %v3298 = vmul.f32 %v3211, 1.442695
        %v3299 = vpow.pop %v3298
        %v3300 = vmul.f32 %v3212, 1.442695
        %v3301 = vpow.pop %v3300
        %v3302 = vmul.f32 %v3213, 1.442695
        %v3303 = vpow.pop %v3302
        %v3304 = vmul.f32 %v3214, 1.442695
        %v3305 = vpow.pop %v3304
        %v3306 = vmul.f32 %v3215, 1.442695
        %v3307 = vpow.pop %v3306
        %v3308 = vmul.f32 %v3216, 1.442695
        %v3309 = vpow.pop %v3308
        %v3310 = vmul.f32 %v3217, 1.442695
        %v3311 = vpow.pop %v3310
        %v3312 = vmul.f32 %v3218, 1.442695
        %v3313 = vpow.pop %v3312
        %v3314 = vmul.f32 %v3219, 1.442695
        %v3315 = vpow.pop %v3314
        %v3316 = vmul.f32 %v3220, 1.442695
        %v3317 = vpow.pop %v3316
        %v3318 = vmul.f32 %v3221, 1.442695
        %v3319 = vpow.pop %v3318
        %v3320 = vmul.f32 %v3222, 1.442695
        %v3321 = vpow.pop %v3320
        %v3322 = vmul.f32 %v3223, 1.442695
        %v3323 = vpow.pop %v3322
        %v3324 = vmul.f32 %v3224, 1.442695
        %v3325 = vpow.pop %v3324
        %v3326 = vmul.f32 %v3225, 1.442695
        %v3327 = vpow.pop %v3326
        %v3328 = vmul.f32 %v3226, 1.442695
        %v3329 = vpow.pop %v3328
        %v3330 = vmul.f32 %v3227, 1.442695
        %v3331 = vpow.pop %v3330
        %v3332 = vmul.f32 %v3228, 1.442695
        %v3333 = vpow.pop %v3332
        %v3334 = vmul.f32 %v3229, 1.442695
        %v3335 = vpow.pop %v3334
        %v3336 = vmul.f32 %v3230, 1.442695
        %v3337 = vpow.pop %v3336
        %v3338 = vmul.f32 %v3231, 1.442695
        %v3339 = vpow.pop %v3338
        %v3340 = vmul.f32 %v3232, 1.442695
        %v3341 = vpow.pop %v3340
        %v3342 = vmul.f32 %v3233, 1.442695
        %v3343 = vpow.pop %v3342
        %v3344 = vmul.f32 %v3234, 1.442695
        %v3345 = vpow.pop %v3344
        %v3346 = vmul.f32 %v3235, 1.442695
        %v3347 = vpow.pop %v3346
        %v3348 = vmul.f32 %v3236, 1.442695
        %v3349 = vpow.pop %v3348
        %v3350 = vmul.f32 %v3237, 1.442695
        %v3351 = vpow.pop %v3350
        %v3352 = vmul.f32 %v3238, 1.442695
        %v3353 = vpow.pop %v3352
        %v3354 = vmul.f32 %v3239, 1.442695
        %v3355 = vpow.pop %v3354
        %v3356 = vmul.f32 %v3240, 1.442695
        %v3357 = vpow.pop %v3356
        %v3358 = vmul.f32 %v3241, 1.442695
        %v3359 = vpow.pop %v3358
        %v3360 = vmul.f32 %v3242, 1.442695
        %v3361 = vpow.pop %v3360
        %v3362 = vmul.f32 %v3243, 1.442695
        %v3363 = vpow.pop %v3362
        %v3364 = vmul.f32 %v3244, 1.442695
        %v3365 = vpow.pop %v3364
        %v3366 = vmul.f32 %v3245, 1.442695
        %v3367 = vpow.pop %v3366
        %v3368 = vmul.f32 %v3246, 1.442695
        %v3369 = vpow.pop %v3368
        %v3370 = vmul.f32 %v3247, 1.442695
        %v3371 = vpow.pop %v3370
        %v3372 = vmul.f32 %v3248, 1.442695
        %v3373 = vpow.pop %v3372
        %v3374 = vmul.f32 %v3249, 1.442695
        %v3375 = vpow.pop %v3374
        %v3376 = vmul.f32 %v3250, 1.442695
        %v3377 = vpow.pop %v3376
        %v3378 = vmul.f32 %v3251, 1.442695
        %v3379 = vpow.pop %v3378
        %v3380 = vld [vmem:[#allocation4] sm:$0xff]
        %v3381 = vld [vmem:[#allocation4 + $0x8] sm:$0xff]
        %v3382 = vld [vmem:[#allocation4 + $0x10] sm:$0xff]
        %v3383 = vld [vmem:[#allocation4 + $0x18] sm:$0xff]
        %v3384 = vld [vmem:[#allocation4 + $0x20] sm:$0xff]
        %v3385 = vld [vmem:[#allocation4 + $0x28] sm:$0xff]
        %v3386 = vld [vmem:[#allocation4 + $0x30] sm:$0xff]
        %v3387 = vld [vmem:[#allocation4 + $0x38] sm:$0xff]
        %v3388 = vld [vmem:[#allocation4 + $0x40] sm:$0xff]
        %v3389 = vld [vmem:[#allocation4 + $0x48] sm:$0xff]
        %v3390 = vld [vmem:[#allocation4 + $0x50] sm:$0xff]
        %v3391 = vld [vmem:[#allocation4 + $0x58] sm:$0xff]
        %v3392 = vld [vmem:[#allocation4 + $0x60] sm:$0xff]
        %v3393 = vld [vmem:[#allocation4 + $0x68] sm:$0xff]
        %v3394 = vld [vmem:[#allocation4 + $0x70] sm:$0xff]
        %v3395 = vld [vmem:[#allocation4 + $0x78] sm:$0xff]
        %v3396 = vld [vmem:[#allocation4 + $0x80] sm:$0xff]
        %v3397 = vld [vmem:[#allocation4 + $0x88] sm:$0xff]
        %v3398 = vld [vmem:[#allocation4 + $0x90] sm:$0xff]
        %v3399 = vld [vmem:[#allocation4 + $0x98] sm:$0xff]
        %v3400 = vld [vmem:[#allocation4 + $0xa0] sm:$0xff]
        %v3401 = vld [vmem:[#allocation4 + $0xa8] sm:$0xff]
        %v3402 = vld [vmem:[#allocation4 + $0xb0] sm:$0xff]
        %v3403 = vld [vmem:[#allocation4 + $0xb8] sm:$0xff]
        %v3404 = vld [vmem:[#allocation4 + $0xc0] sm:$0xff]
        %v3405 = vld [vmem:[#allocation4 + $0xc8] sm:$0xff]
        %v3406 = vld [vmem:[#allocation4 + $0xd0] sm:$0xff]
        %v3407 = vld [vmem:[#allocation4 + $0xd8] sm:$0xff]
        %v3408 = vld [vmem:[#allocation4 + $0xe0] sm:$0xff]
        %v3409 = vld [vmem:[#allocation4 + $0xe8] sm:$0xff]
        %v3410 = vld [vmem:[#allocation4 + $0xf0] sm:$0xff]
        %v3411 = vld [vmem:[#allocation4 + $0xf8] sm:$0xff]
        %v3412 = vld [vmem:[#allocation4 + $0x100] sm:$0xff]
        %v3413 = vld [vmem:[#allocation4 + $0x108] sm:$0xff]
        %v3414 = vld [vmem:[#allocation4 + $0x110] sm:$0xff]
        %v3415 = vld [vmem:[#allocation4 + $0x118] sm:$0xff]
        %v3416 = vld [vmem:[#allocation4 + $0x120] sm:$0xff]
        %v3417 = vld [vmem:[#allocation4 + $0x128] sm:$0xff]
        %v3418 = vld [vmem:[#allocation4 + $0x130] sm:$0xff]
        %v3419 = vld [vmem:[#allocation4 + $0x138] sm:$0xff]
        %v3420 = vld [vmem:[#allocation4 + $0x140] sm:$0xff]
        %v3421 = vld [vmem:[#allocation4 + $0x148] sm:$0xff]
        %v3422 = vld [vmem:[#allocation4 + $0x150] sm:$0xff]
        %v3423 = vld [vmem:[#allocation4 + $0x158] sm:$0xff]
        %v3424 = vld [vmem:[#allocation4 + $0x160] sm:$0xff]
        %v3425 = vld [vmem:[#allocation4 + $0x168] sm:$0xff]
        %v3426 = vld [vmem:[#allocation4 + $0x170] sm:$0xff]
        %v3427 = vld [vmem:[#allocation4 + $0x178] sm:$0xff]
        %v3428 = vld [vmem:[#allocation4 + $0x180] sm:$0xff]
        %v3429 = vld [vmem:[#allocation4 + $0x188] sm:$0xff]
        %v3430 = vld [vmem:[#allocation4 + $0x190] sm:$0xff]
        %v3431 = vld [vmem:[#allocation4 + $0x198] sm:$0xff]
        %v3432 = vld [vmem:[#allocation4 + $0x1a0] sm:$0xff]
        %v3433 = vld [vmem:[#allocation4 + $0x1a8] sm:$0xff]
        %v3434 = vld [vmem:[#allocation4 + $0x1b0] sm:$0xff]
        %v3435 = vld [vmem:[#allocation4 + $0x1b8] sm:$0xff]
        %v3436 = vld [vmem:[#allocation4 + $0x1c0] sm:$0xff]
        %v3437 = vld [vmem:[#allocation4 + $0x1c8] sm:$0xff]
        %v3438 = vld [vmem:[#allocation4 + $0x1d0] sm:$0xff]
        %v3439 = vld [vmem:[#allocation4 + $0x1d8] sm:$0xff]
        %v3440 = vld [vmem:[#allocation4 + $0x1e0] sm:$0xff]
        %v3441 = vld [vmem:[#allocation4 + $0x1e8] sm:$0xff]
        %v3442 = vld [vmem:[#allocation4 + $0x1f0] sm:$0xff]
        %v3443 = vld [vmem:[#allocation4 + $0x1f8] sm:$0xff]
        %v3444 = vmul.f32 %v2741, %v3380
        %v3445 = vmul.f32 %v2743, %v3381
        %v3446 = vmul.f32 %v2745, %v3382
        %v3447 = vmul.f32 %v2747, %v3383
        %v3448 = vmul.f32 %v2749, %v3384
        %v3449 = vmul.f32 %v2751, %v3385
        %v3450 = vmul.f32 %v2753, %v3386
        %v3451 = vmul.f32 %v2755, %v3387
        %v3452 = vmul.f32 %v2757, %v3388
        %v3453 = vmul.f32 %v2759, %v3389
        %v3454 = vmul.f32 %v2761, %v3390
        %v3455 = vmul.f32 %v2763, %v3391
        %v3456 = vmul.f32 %v2765, %v3392
        %v3457 = vmul.f32 %v2767, %v3393
        %v3458 = vmul.f32 %v2769, %v3394
        %v3459 = vmul.f32 %v2771, %v3395
        %v3460 = vmul.f32 %v2773, %v3396
        %v3461 = vmul.f32 %v2775, %v3397
        %v3462 = vmul.f32 %v2777, %v3398
        %v3463 = vmul.f32 %v2779, %v3399
        %v3464 = vmul.f32 %v2781, %v3400
        %v3465 = vmul.f32 %v2783, %v3401
        %v3466 = vmul.f32 %v2785, %v3402
        %v3467 = vmul.f32 %v2787, %v3403
        %v3468 = vmul.f32 %v2789, %v3404
        %v3469 = vmul.f32 %v2791, %v3405
        %v3470 = vmul.f32 %v2793, %v3406
        %v3471 = vmul.f32 %v2795, %v3407
        %v3472 = vmul.f32 %v2797, %v3408
        %v3473 = vmul.f32 %v2799, %v3409
        %v3474 = vmul.f32 %v2801, %v3410
        %v3475 = vmul.f32 %v2803, %v3411
        %v3476 = vmul.f32 %v2805, %v3412
        %v3477 = vmul.f32 %v2807, %v3413
        %v3478 = vmul.f32 %v2809, %v3414
        %v3479 = vmul.f32 %v2811, %v3415
        %v3480 = vmul.f32 %v2813, %v3416
        %v3481 = vmul.f32 %v2815, %v3417
        %v3482 = vmul.f32 %v2817, %v3418
        %v3483 = vmul.f32 %v2819, %v3419
        %v3484 = vmul.f32 %v2821, %v3420
        %v3485 = vmul.f32 %v2823, %v3421
        %v3486 = vmul.f32 %v2825, %v3422
        %v3487 = vmul.f32 %v2827, %v3423
        %v3488 = vmul.f32 %v2829, %v3424
        %v3489 = vmul.f32 %v2831, %v3425
        %v3490 = vmul.f32 %v2833, %v3426
        %v3491 = vmul.f32 %v2835, %v3427
        %v3492 = vmul.f32 %v2837, %v3428
        %v3493 = vmul.f32 %v2839, %v3429
        %v3494 = vmul.f32 %v2841, %v3430
        %v3495 = vmul.f32 %v2843, %v3431
        %v3496 = vmul.f32 %v2845, %v3432
        %v3497 = vmul.f32 %v2847, %v3433
        %v3498 = vmul.f32 %v2849, %v3434
        %v3499 = vmul.f32 %v2851, %v3435
        %v3500 = vmul.f32 %v2853, %v3436
        %v3501 = vmul.f32 %v2855, %v3437
        %v3502 = vmul.f32 %v2857, %v3438
        %v3503 = vmul.f32 %v2859, %v3439
        %v3504 = vmul.f32 %v2861, %v3440
        %v3505 = vmul.f32 %v2863, %v3441
        %v3506 = vmul.f32 %v2865, %v3442
        %v3507 = vmul.f32 %v2867, %v3443
        %v3508 = vsel %vm2419, %v3253, 0.0
        %3509 = vadd.xlane.f32.xlu0 %v3508
        %v3510 = vpop.xlane.xlu0 %3509
        %v3511 = vsel %vm2419, %v3255, 0.0
        %3512 = vadd.xlane.f32.xlu0 %v3511
        %v3513 = vpop.xlane.xlu0 %3512
        %v3514 = vsel %vm2419, %v3257, 0.0
        %3515 = vadd.xlane.f32.xlu0 %v3514
        %v3516 = vpop.xlane.xlu0 %3515
        %v3517 = vsel %vm2419, %v3259, 0.0
        %3518 = vadd.xlane.f32.xlu0 %v3517
        %v3519 = vpop.xlane.xlu0 %3518
        %v3520 = vsel %vm2419, %v3261, 0.0
        %3521 = vadd.xlane.f32.xlu0 %v3520
        %v3522 = vpop.xlane.xlu0 %3521
        %v3523 = vsel %vm2419, %v3263, 0.0
        %3524 = vadd.xlane.f32.xlu0 %v3523
        %v3525 = vpop.xlane.xlu0 %3524
        %v3526 = vsel %vm2419, %v3265, 0.0
        %3527 = vadd.xlane.f32.xlu0 %v3526
        %v3528 = vpop.xlane.xlu0 %3527
        %v3529 = vsel %vm2419, %v3267, 0.0
        %3530 = vadd.xlane.f32.xlu0 %v3529
        %v3531 = vpop.xlane.xlu0 %3530
        %v3532 = vsel %vm2419, %v3269, 0.0
        %3533 = vadd.xlane.f32.xlu0 %v3532
        %v3534 = vpop.xlane.xlu0 %3533
        %v3535 = vsel %vm2419, %v3271, 0.0
        %3536 = vadd.xlane.f32.xlu0 %v3535
        %v3537 = vpop.xlane.xlu0 %3536
        %v3538 = vsel %vm2419, %v3273, 0.0
        %3539 = vadd.xlane.f32.xlu0 %v3538
        %v3540 = vpop.xlane.xlu0 %3539
        %v3541 = vsel %vm2419, %v3275, 0.0
        %3542 = vadd.xlane.f32.xlu0 %v3541
        %v3543 = vpop.xlane.xlu0 %3542
        %v3544 = vsel %vm2419, %v3277, 0.0
        %3545 = vadd.xlane.f32.xlu0 %v3544
        %v3546 = vpop.xlane.xlu0 %3545
        %v3547 = vsel %vm2419, %v3279, 0.0
        %3548 = vadd.xlane.f32.xlu0 %v3547
        %v3549 = vpop.xlane.xlu0 %3548
        %v3550 = vsel %vm2419, %v3281, 0.0
        %3551 = vadd.xlane.f32.xlu0 %v3550
        %v3552 = vpop.xlane.xlu0 %3551
        %v3553 = vsel %vm2419, %v3283, 0.0
        %3554 = vadd.xlane.f32.xlu0 %v3553
        %v3555 = vpop.xlane.xlu0 %3554
        %v3556 = vsel %vm2419, %v3285, 0.0
        %3557 = vadd.xlane.f32.xlu0 %v3556
        %v3558 = vpop.xlane.xlu0 %3557
        %v3559 = vsel %vm2419, %v3287, 0.0
        %3560 = vadd.xlane.f32.xlu0 %v3559
        %v3561 = vpop.xlane.xlu0 %3560
        %v3562 = vsel %vm2419, %v3289, 0.0
        %3563 = vadd.xlane.f32.xlu0 %v3562
        %v3564 = vpop.xlane.xlu0 %3563
        %v3565 = vsel %vm2419, %v3291, 0.0
        %3566 = vadd.xlane.f32.xlu0 %v3565
        %v3567 = vpop.xlane.xlu0 %3566
        %v3568 = vsel %vm2419, %v3293, 0.0
        %3569 = vadd.xlane.f32.xlu0 %v3568
        %v3570 = vpop.xlane.xlu0 %3569
        %v3571 = vsel %vm2419, %v3295, 0.0
        %3572 = vadd.xlane.f32.xlu0 %v3571
        %v3573 = vpop.xlane.xlu0 %3572
        %v3574 = vsel %vm2419, %v3297, 0.0
        %3575 = vadd.xlane.f32.xlu0 %v3574
        %v3576 = vpop.xlane.xlu0 %3575
        %v3577 = vsel %vm2419, %v3299, 0.0
        %3578 = vadd.xlane.f32.xlu0 %v3577
        %v3579 = vpop.xlane.xlu0 %3578
        %v3580 = vsel %vm2419, %v3301, 0.0
        %3581 = vadd.xlane.f32.xlu0 %v3580
        %v3582 = vpop.xlane.xlu0 %3581
        %v3583 = vsel %vm2419, %v3303, 0.0
        %3584 = vadd.xlane.f32.xlu0 %v3583
        %v3585 = vpop.xlane.xlu0 %3584
        %v3586 = vsel %vm2419, %v3305, 0.0
        %3587 = vadd.xlane.f32.xlu0 %v3586
        %v3588 = vpop.xlane.xlu0 %3587
        %v3589 = vsel %vm2419, %v3307, 0.0
        %3590 = vadd.xlane.f32.xlu0 %v3589
        %v3591 = vpop.xlane.xlu0 %3590
        %v3592 = vsel %vm2419, %v3309, 0.0
        %3593 = vadd.xlane.f32.xlu0 %v3592
        %v3594 = vpop.xlane.xlu0 %3593
        %v3595 = vsel %vm2419, %v3311, 0.0
        %3596 = vadd.xlane.f32.xlu0 %v3595
        %v3597 = vpop.xlane.xlu0 %3596
        %v3598 = vsel %vm2419, %v3313, 0.0
        %3599 = vadd.xlane.f32.xlu0 %v3598
        %v3600 = vpop.xlane.xlu0 %3599
        %v3601 = vsel %vm2419, %v3315, 0.0
        %3602 = vadd.xlane.f32.xlu0 %v3601
        %v3603 = vpop.xlane.xlu0 %3602
        %v3604 = vsel %vm2419, %v3317, 0.0
        %3605 = vadd.xlane.f32.xlu0 %v3604
        %v3606 = vpop.xlane.xlu0 %3605
        %v3607 = vsel %vm2419, %v3319, 0.0
        %3608 = vadd.xlane.f32.xlu0 %v3607
        %v3609 = vpop.xlane.xlu0 %3608
        %v3610 = vsel %vm2419, %v3321, 0.0
        %3611 = vadd.xlane.f32.xlu0 %v3610
        %v3612 = vpop.xlane.xlu0 %3611
        %v3613 = vsel %vm2419, %v3323, 0.0
        %3614 = vadd.xlane.f32.xlu0 %v3613
        %v3615 = vpop.xlane.xlu0 %3614
        %v3616 = vsel %vm2419, %v3325, 0.0
        %3617 = vadd.xlane.f32.xlu0 %v3616
        %v3618 = vpop.xlane.xlu0 %3617
        %v3619 = vsel %vm2419, %v3327, 0.0
        %3620 = vadd.xlane.f32.xlu0 %v3619
        %v3621 = vpop.xlane.xlu0 %3620
        %v3622 = vsel %vm2419, %v3329, 0.0
        %3623 = vadd.xlane.f32.xlu0 %v3622
        %v3624 = vpop.xlane.xlu0 %3623
        %v3625 = vsel %vm2419, %v3331, 0.0
        %3626 = vadd.xlane.f32.xlu0 %v3625
        %v3627 = vpop.xlane.xlu0 %3626
        %v3628 = vsel %vm2419, %v3333, 0.0
        %3629 = vadd.xlane.f32.xlu0 %v3628
        %v3630 = vpop.xlane.xlu0 %3629
        %v3631 = vsel %vm2419, %v3335, 0.0
        %3632 = vadd.xlane.f32.xlu0 %v3631
        %v3633 = vpop.xlane.xlu0 %3632
        %v3634 = vsel %vm2419, %v3337, 0.0
        %3635 = vadd.xlane.f32.xlu0 %v3634
        %v3636 = vpop.xlane.xlu0 %3635
        %v3637 = vsel %vm2419, %v3339, 0.0
        %3638 = vadd.xlane.f32.xlu0 %v3637
        %v3639 = vpop.xlane.xlu0 %3638
        %v3640 = vsel %vm2419, %v3341, 0.0
        %3641 = vadd.xlane.f32.xlu0 %v3640
        %v3642 = vpop.xlane.xlu0 %3641
        %v3643 = vsel %vm2419, %v3343, 0.0
        %3644 = vadd.xlane.f32.xlu0 %v3643
        %v3645 = vpop.xlane.xlu0 %3644
        %v3646 = vsel %vm2419, %v3345, 0.0
        %3647 = vadd.xlane.f32.xlu0 %v3646
        %v3648 = vpop.xlane.xlu0 %3647
        %v3649 = vsel %vm2419, %v3347, 0.0
        %3650 = vadd.xlane.f32.xlu0 %v3649
        %v3651 = vpop.xlane.xlu0 %3650
        %v3652 = vsel %vm2419, %v3349, 0.0
        %3653 = vadd.xlane.f32.xlu0 %v3652
        %v3654 = vpop.xlane.xlu0 %3653
        %v3655 = vsel %vm2419, %v3351, 0.0
        %3656 = vadd.xlane.f32.xlu0 %v3655
        %v3657 = vpop.xlane.xlu0 %3656
        %v3658 = vsel %vm2419, %v3353, 0.0
        %3659 = vadd.xlane.f32.xlu0 %v3658
        %v3660 = vpop.xlane.xlu0 %3659
        %v3661 = vsel %vm2419, %v3355, 0.0
        %3662 = vadd.xlane.f32.xlu0 %v3661
        %v3663 = vpop.xlane.xlu0 %3662
        %v3664 = vsel %vm2419, %v3357, 0.0
        %3665 = vadd.xlane.f32.xlu0 %v3664
        %v3666 = vpop.xlane.xlu0 %3665
        %v3667 = vsel %vm2419, %v3359, 0.0
        %3668 = vadd.xlane.f32.xlu0 %v3667
        %v3669 = vpop.xlane.xlu0 %3668
        %v3670 = vsel %vm2419, %v3361, 0.0
        %3671 = vadd.xlane.f32.xlu0 %v3670
        %v3672 = vpop.xlane.xlu0 %3671
        %v3673 = vsel %vm2419, %v3363, 0.0
        %3674 = vadd.xlane.f32.xlu0 %v3673
        %v3675 = vpop.xlane.xlu0 %3674
        %v3676 = vsel %vm2419, %v3365, 0.0
        %3677 = vadd.xlane.f32.xlu0 %v3676
        %v3678 = vpop.xlane.xlu0 %3677
        %v3679 = vsel %vm2419, %v3367, 0.0
        %3680 = vadd.xlane.f32.xlu0 %v3679
        %v3681 = vpop.xlane.xlu0 %3680
        %v3682 = vsel %vm2419, %v3369, 0.0
        %3683 = vadd.xlane.f32.xlu0 %v3682
        %v3684 = vpop.xlane.xlu0 %3683
        %v3685 = vsel %vm2419, %v3371, 0.0
        %3686 = vadd.xlane.f32.xlu0 %v3685
        %v3687 = vpop.xlane.xlu0 %3686
        %v3688 = vsel %vm2419, %v3373, 0.0
        %3689 = vadd.xlane.f32.xlu0 %v3688
        %v3690 = vpop.xlane.xlu0 %3689
        %v3691 = vsel %vm2419, %v3375, 0.0
        %3692 = vadd.xlane.f32.xlu0 %v3691
        %v3693 = vpop.xlane.xlu0 %3692
        %v3694 = vsel %vm2419, %v3377, 0.0
        %3695 = vadd.xlane.f32.xlu0 %v3694
        %v3696 = vpop.xlane.xlu0 %3695
        %v3697 = vsel %vm2419, %v3379, 0.0
        %3698 = vadd.xlane.f32.xlu0 %v3697
        %v3699 = vpop.xlane.xlu0 %3698
        %v3700 = vadd.f32 %v3444, %v3510
        %v3701 = vadd.f32 %v3445, %v3513
        %v3702 = vadd.f32 %v3446, %v3516
        %v3703 = vadd.f32 %v3447, %v3519
        %v3704 = vadd.f32 %v3448, %v3522
        %v3705 = vadd.f32 %v3449, %v3525
        %v3706 = vadd.f32 %v3450, %v3528
        %v3707 = vadd.f32 %v3451, %v3531
        %v3708 = vadd.f32 %v3452, %v3534
        %v3709 = vadd.f32 %v3453, %v3537
        %v3710 = vadd.f32 %v3454, %v3540
        %v3711 = vadd.f32 %v3455, %v3543
        %v3712 = vadd.f32 %v3456, %v3546
        %v3713 = vadd.f32 %v3457, %v3549
        %v3714 = vadd.f32 %v3458, %v3552
        %v3715 = vadd.f32 %v3459, %v3555
        %v3716 = vadd.f32 %v3460, %v3558
        %v3717 = vadd.f32 %v3461, %v3561
        %v3718 = vadd.f32 %v3462, %v3564
        %v3719 = vadd.f32 %v3463, %v3567
        %v3720 = vadd.f32 %v3464, %v3570
        %v3721 = vadd.f32 %v3465, %v3573
        %v3722 = vadd.f32 %v3466, %v3576
        %v3723 = vadd.f32 %v3467, %v3579
        %v3724 = vadd.f32 %v3468, %v3582
        %v3725 = vadd.f32 %v3469, %v3585
        %v3726 = vadd.f32 %v3470, %v3588
        %v3727 = vadd.f32 %v3471, %v3591
        %v3728 = vadd.f32 %v3472, %v3594
        %v3729 = vadd.f32 %v3473, %v3597
        %v3730 = vadd.f32 %v3474, %v3600
        %v3731 = vadd.f32 %v3475, %v3603
        %v3732 = vadd.f32 %v3476, %v3606
        %v3733 = vadd.f32 %v3477, %v3609
        %v3734 = vadd.f32 %v3478, %v3612
        %v3735 = vadd.f32 %v3479, %v3615
        %v3736 = vadd.f32 %v3480, %v3618
        %v3737 = vadd.f32 %v3481, %v3621
        %v3738 = vadd.f32 %v3482, %v3624
        %v3739 = vadd.f32 %v3483, %v3627
        %v3740 = vadd.f32 %v3484, %v3630
        %v3741 = vadd.f32 %v3485, %v3633
        %v3742 = vadd.f32 %v3486, %v3636
        %v3743 = vadd.f32 %v3487, %v3639
        %v3744 = vadd.f32 %v3488, %v3642
        %v3745 = vadd.f32 %v3489, %v3645
        %v3746 = vadd.f32 %v3490, %v3648
        %v3747 = vadd.f32 %v3491, %v3651
        %v3748 = vadd.f32 %v3492, %v3654
        %v3749 = vadd.f32 %v3493, %v3657
        %v3750 = vadd.f32 %v3494, %v3660
        %v3751 = vadd.f32 %v3495, %v3663
        %v3752 = vadd.f32 %v3496, %v3666
        %v3753 = vadd.f32 %v3497, %v3669
        %v3754 = vadd.f32 %v3498, %v3672
        %v3755 = vadd.f32 %v3499, %v3675
        %v3756 = vadd.f32 %v3500, %v3678
        %v3757 = vadd.f32 %v3501, %v3681
        %v3758 = vadd.f32 %v3502, %v3684
        %v3759 = vadd.f32 %v3503, %v3687
        %v3760 = vadd.f32 %v3504, %v3690
        %v3761 = vadd.f32 %v3505, %v3693
        %v3762 = vadd.f32 %v3506, %v3696
        %v3763 = vadd.f32 %v3507, %v3699
        %vm3764 = vcmask 7168
        %3765 = vst.msk [vmem:[#allocation4] sm:$0xff] %vm3764, %v3700
        %3766 = vst.msk [vmem:[#allocation4 + $0x8] sm:$0xff] %vm3764, %v3701
        %3767 = vst.msk [vmem:[#allocation4 + $0x10] sm:$0xff] %vm3764, %v3702
        %3768 = vst.msk [vmem:[#allocation4 + $0x18] sm:$0xff] %vm3764, %v3703
        %3769 = vst.msk [vmem:[#allocation4 + $0x20] sm:$0xff] %vm3764, %v3704
        %3770 = vst.msk [vmem:[#allocation4 + $0x28] sm:$0xff] %vm3764, %v3705
        %3771 = vst.msk [vmem:[#allocation4 + $0x30] sm:$0xff] %vm3764, %v3706
        %3772 = vst.msk [vmem:[#allocation4 + $0x38] sm:$0xff] %vm3764, %v3707
        %3773 = vst.msk [vmem:[#allocation4 + $0x40] sm:$0xff] %vm3764, %v3708
        %3774 = vst.msk [vmem:[#allocation4 + $0x48] sm:$0xff] %vm3764, %v3709
        %3775 = vst.msk [vmem:[#allocation4 + $0x50] sm:$0xff] %vm3764, %v3710
        %3776 = vst.msk [vmem:[#allocation4 + $0x58] sm:$0xff] %vm3764, %v3711
        %3777 = vst.msk [vmem:[#allocation4 + $0x60] sm:$0xff] %vm3764, %v3712
        %3778 = vst.msk [vmem:[#allocation4 + $0x68] sm:$0xff] %vm3764, %v3713
        %3779 = vst.msk [vmem:[#allocation4 + $0x70] sm:$0xff] %vm3764, %v3714
        %3780 = vst.msk [vmem:[#allocation4 + $0x78] sm:$0xff] %vm3764, %v3715
        %3781 = vst.msk [vmem:[#allocation4 + $0x80] sm:$0xff] %vm3764, %v3716
        %3782 = vst.msk [vmem:[#allocation4 + $0x88] sm:$0xff] %vm3764, %v3717
        %3783 = vst.msk [vmem:[#allocation4 + $0x90] sm:$0xff] %vm3764, %v3718
        %3784 = vst.msk [vmem:[#allocation4 + $0x98] sm:$0xff] %vm3764, %v3719
        %3785 = vst.msk [vmem:[#allocation4 + $0xa0] sm:$0xff] %vm3764, %v3720
        %3786 = vst.msk [vmem:[#allocation4 + $0xa8] sm:$0xff] %vm3764, %v3721
        %3787 = vst.msk [vmem:[#allocation4 + $0xb0] sm:$0xff] %vm3764, %v3722
        %3788 = vst.msk [vmem:[#allocation4 + $0xb8] sm:$0xff] %vm3764, %v3723
        %3789 = vst.msk [vmem:[#allocation4 + $0xc0] sm:$0xff] %vm3764, %v3724
        %3790 = vst.msk [vmem:[#allocation4 + $0xc8] sm:$0xff] %vm3764, %v3725
        %3791 = vst.msk [vmem:[#allocation4 + $0xd0] sm:$0xff] %vm3764, %v3726
        %3792 = vst.msk [vmem:[#allocation4 + $0xd8] sm:$0xff] %vm3764, %v3727
        %3793 = vst.msk [vmem:[#allocation4 + $0xe0] sm:$0xff] %vm3764, %v3728
        %3794 = vst.msk [vmem:[#allocation4 + $0xe8] sm:$0xff] %vm3764, %v3729
        %3795 = vst.msk [vmem:[#allocation4 + $0xf0] sm:$0xff] %vm3764, %v3730
        %3796 = vst.msk [vmem:[#allocation4 + $0xf8] sm:$0xff] %vm3764, %v3731
        %3797 = vst.msk [vmem:[#allocation4 + $0x100] sm:$0xff] %vm3764, %v3732
        %3798 = vst.msk [vmem:[#allocation4 + $0x108] sm:$0xff] %vm3764, %v3733
        %3799 = vst.msk [vmem:[#allocation4 + $0x110] sm:$0xff] %vm3764, %v3734
        %3800 = vst.msk [vmem:[#allocation4 + $0x118] sm:$0xff] %vm3764, %v3735
        %3801 = vst.msk [vmem:[#allocation4 + $0x120] sm:$0xff] %vm3764, %v3736
        %3802 = vst.msk [vmem:[#allocation4 + $0x128] sm:$0xff] %vm3764, %v3737
        %3803 = vst.msk [vmem:[#allocation4 + $0x130] sm:$0xff] %vm3764, %v3738
        %3804 = vst.msk [vmem:[#allocation4 + $0x138] sm:$0xff] %vm3764, %v3739
        %3805 = vst.msk [vmem:[#allocation4 + $0x140] sm:$0xff] %vm3764, %v3740
        %3806 = vst.msk [vmem:[#allocation4 + $0x148] sm:$0xff] %vm3764, %v3741
        %3807 = vst.msk [vmem:[#allocation4 + $0x150] sm:$0xff] %vm3764, %v3742
        %3808 = vst.msk [vmem:[#allocation4 + $0x158] sm:$0xff] %vm3764, %v3743
        %3809 = vst.msk [vmem:[#allocation4 + $0x160] sm:$0xff] %vm3764, %v3744
        %3810 = vst.msk [vmem:[#allocation4 + $0x168] sm:$0xff] %vm3764, %v3745
        %3811 = vst.msk [vmem:[#allocation4 + $0x170] sm:$0xff] %vm3764, %v3746
        %3812 = vst.msk [vmem:[#allocation4 + $0x178] sm:$0xff] %vm3764, %v3747
        %3813 = vst.msk [vmem:[#allocation4 + $0x180] sm:$0xff] %vm3764, %v3748
        %3814 = vst.msk [vmem:[#allocation4 + $0x188] sm:$0xff] %vm3764, %v3749
        %3815 = vst.msk [vmem:[#allocation4 + $0x190] sm:$0xff] %vm3764, %v3750
        %3816 = vst.msk [vmem:[#allocation4 + $0x198] sm:$0xff] %vm3764, %v3751
        %3817 = vst.msk [vmem:[#allocation4 + $0x1a0] sm:$0xff] %vm3764, %v3752
        %3818 = vst.msk [vmem:[#allocation4 + $0x1a8] sm:$0xff] %vm3764, %v3753
        %3819 = vst.msk [vmem:[#allocation4 + $0x1b0] sm:$0xff] %vm3764, %v3754
        %3820 = vst.msk [vmem:[#allocation4 + $0x1b8] sm:$0xff] %vm3764, %v3755
        %3821 = vst.msk [vmem:[#allocation4 + $0x1c0] sm:$0xff] %vm3764, %v3756
        %3822 = vst.msk [vmem:[#allocation4 + $0x1c8] sm:$0xff] %vm3764, %v3757
        %3823 = vst.msk [vmem:[#allocation4 + $0x1d0] sm:$0xff] %vm3764, %v3758
        %3824 = vst.msk [vmem:[#allocation4 + $0x1d8] sm:$0xff] %vm3764, %v3759
        %3825 = vst.msk [vmem:[#allocation4 + $0x1e0] sm:$0xff] %vm3764, %v3760
        %3826 = vst.msk [vmem:[#allocation4 + $0x1e8] sm:$0xff] %vm3764, %v3761
        %3827 = vst.msk [vmem:[#allocation4 + $0x1f0] sm:$0xff] %vm3764, %v3762
        %3828 = vst.msk [vmem:[#allocation4 + $0x1f8] sm:$0xff] %vm3764, %v3763
        %v3829 = vld [vmem:[#allocation5] sm:$0xff]
        %v3830 = vld [vmem:[#allocation5 + $0x8] sm:$0xff]
        %v3831 = vld [vmem:[#allocation5 + $0x10] sm:$0xff]
        %v3832 = vld [vmem:[#allocation5 + $0x18] sm:$0xff]
        %v3833 = vld [vmem:[#allocation5 + $0x20] sm:$0xff]
        %v3834 = vld [vmem:[#allocation5 + $0x28] sm:$0xff]
        %v3835 = vld [vmem:[#allocation5 + $0x30] sm:$0xff]
        %v3836 = vld [vmem:[#allocation5 + $0x38] sm:$0xff]
        %v3837 = vld [vmem:[#allocation5 + $0x40] sm:$0xff]
        %v3838 = vld [vmem:[#allocation5 + $0x48] sm:$0xff]
        %v3839 = vld [vmem:[#allocation5 + $0x50] sm:$0xff]
        %v3840 = vld [vmem:[#allocation5 + $0x58] sm:$0xff]
        %v3841 = vld [vmem:[#allocation5 + $0x60] sm:$0xff]
        %v3842 = vld [vmem:[#allocation5 + $0x68] sm:$0xff]
        %v3843 = vld [vmem:[#allocation5 + $0x70] sm:$0xff]
        %v3844 = vld [vmem:[#allocation5 + $0x78] sm:$0xff]
        %v3845 = vld [vmem:[#allocation5 + $0x80] sm:$0xff]
        %v3846 = vld [vmem:[#allocation5 + $0x88] sm:$0xff]
        %v3847 = vld [vmem:[#allocation5 + $0x90] sm:$0xff]
        %v3848 = vld [vmem:[#allocation5 + $0x98] sm:$0xff]
        %v3849 = vld [vmem:[#allocation5 + $0xa0] sm:$0xff]
        %v3850 = vld [vmem:[#allocation5 + $0xa8] sm:$0xff]
        %v3851 = vld [vmem:[#allocation5 + $0xb0] sm:$0xff]
        %v3852 = vld [vmem:[#allocation5 + $0xb8] sm:$0xff]
        %v3853 = vld [vmem:[#allocation5 + $0xc0] sm:$0xff]
        %v3854 = vld [vmem:[#allocation5 + $0xc8] sm:$0xff]
        %v3855 = vld [vmem:[#allocation5 + $0xd0] sm:$0xff]
        %v3856 = vld [vmem:[#allocation5 + $0xd8] sm:$0xff]
        %v3857 = vld [vmem:[#allocation5 + $0xe0] sm:$0xff]
        %v3858 = vld [vmem:[#allocation5 + $0xe8] sm:$0xff]
        %v3859 = vld [vmem:[#allocation5 + $0xf0] sm:$0xff]
        %v3860 = vld [vmem:[#allocation5 + $0xf8] sm:$0xff]
        %v3861 = vld [vmem:[#allocation5 + $0x100] sm:$0xff]
        %v3862 = vld [vmem:[#allocation5 + $0x108] sm:$0xff]
        %v3863 = vld [vmem:[#allocation5 + $0x110] sm:$0xff]
        %v3864 = vld [vmem:[#allocation5 + $0x118] sm:$0xff]
        %v3865 = vld [vmem:[#allocation5 + $0x120] sm:$0xff]
        %v3866 = vld [vmem:[#allocation5 + $0x128] sm:$0xff]
        %v3867 = vld [vmem:[#allocation5 + $0x130] sm:$0xff]
        %v3868 = vld [vmem:[#allocation5 + $0x138] sm:$0xff]
        %v3869 = vld [vmem:[#allocation5 + $0x140] sm:$0xff]
        %v3870 = vld [vmem:[#allocation5 + $0x148] sm:$0xff]
        %v3871 = vld [vmem:[#allocation5 + $0x150] sm:$0xff]
        %v3872 = vld [vmem:[#allocation5 + $0x158] sm:$0xff]
        %v3873 = vld [vmem:[#allocation5 + $0x160] sm:$0xff]
        %v3874 = vld [vmem:[#allocation5 + $0x168] sm:$0xff]
        %v3875 = vld [vmem:[#allocation5 + $0x170] sm:$0xff]
        %v3876 = vld [vmem:[#allocation5 + $0x178] sm:$0xff]
        %v3877 = vld [vmem:[#allocation5 + $0x180] sm:$0xff]
        %v3878 = vld [vmem:[#allocation5 + $0x188] sm:$0xff]
        %v3879 = vld [vmem:[#allocation5 + $0x190] sm:$0xff]
        %v3880 = vld [vmem:[#allocation5 + $0x198] sm:$0xff]
        %v3881 = vld [vmem:[#allocation5 + $0x1a0] sm:$0xff]
        %v3882 = vld [vmem:[#allocation5 + $0x1a8] sm:$0xff]
        %v3883 = vld [vmem:[#allocation5 + $0x1b0] sm:$0xff]
        %v3884 = vld [vmem:[#allocation5 + $0x1b8] sm:$0xff]
        %v3885 = vld [vmem:[#allocation5 + $0x1c0] sm:$0xff]
        %v3886 = vld [vmem:[#allocation5 + $0x1c8] sm:$0xff]
        %v3887 = vld [vmem:[#allocation5 + $0x1d0] sm:$0xff]
        %v3888 = vld [vmem:[#allocation5 + $0x1d8] sm:$0xff]
        %v3889 = vld [vmem:[#allocation5 + $0x1e0] sm:$0xff]
        %v3890 = vld [vmem:[#allocation5 + $0x1e8] sm:$0xff]
        %v3891 = vld [vmem:[#allocation5 + $0x1f0] sm:$0xff]
        %v3892 = vld [vmem:[#allocation5 + $0x1f8] sm:$0xff]
        %3894 = vset.pattern.permute.xlu0 0
        %3895 = vperm.xlu0 %3894, %v2741
        %v3896 = vpop.permute.xlu0 %3895
        %3899 = vset.pattern.permute.xlu0 0
        %3900 = vperm.xlu0 %3899, %v2743
        %v3901 = vpop.permute.xlu0 %3900
        %3904 = vset.pattern.permute.xlu0 0
        %3905 = vperm.xlu0 %3904, %v2745
        %v3906 = vpop.permute.xlu0 %3905
        %3909 = vset.pattern.permute.xlu0 0
        %3910 = vperm.xlu0 %3909, %v2747
        %v3911 = vpop.permute.xlu0 %3910
        %3914 = vset.pattern.permute.xlu0 0
        %3915 = vperm.xlu0 %3914, %v2749
        %v3916 = vpop.permute.xlu0 %3915
        %3919 = vset.pattern.permute.xlu0 0
        %3920 = vperm.xlu0 %3919, %v2751
        %v3921 = vpop.permute.xlu0 %3920
        %3924 = vset.pattern.permute.xlu0 0
        %3925 = vperm.xlu0 %3924, %v2753
        %v3926 = vpop.permute.xlu0 %3925
        %3929 = vset.pattern.permute.xlu0 0
        %3930 = vperm.xlu0 %3929, %v2755
        %v3931 = vpop.permute.xlu0 %3930
        %3934 = vset.pattern.permute.xlu0 0
        %3935 = vperm.xlu0 %3934, %v2757
        %v3936 = vpop.permute.xlu0 %3935
        %3939 = vset.pattern.permute.xlu0 0
        %3940 = vperm.xlu0 %3939, %v2759
        %v3941 = vpop.permute.xlu0 %3940
        %3944 = vset.pattern.permute.xlu0 0
        %3945 = vperm.xlu0 %3944, %v2761
        %v3946 = vpop.permute.xlu0 %3945
        %3949 = vset.pattern.permute.xlu0 0
        %3950 = vperm.xlu0 %3949, %v2763
        %v3951 = vpop.permute.xlu0 %3950
        %3954 = vset.pattern.permute.xlu0 0
        %3955 = vperm.xlu0 %3954, %v2765
        %v3956 = vpop.permute.xlu0 %3955
        %3959 = vset.pattern.permute.xlu0 0
        %3960 = vperm.xlu0 %3959, %v2767
        %v3961 = vpop.permute.xlu0 %3960
        %3964 = vset.pattern.permute.xlu0 0
        %3965 = vperm.xlu0 %3964, %v2769
        %v3966 = vpop.permute.xlu0 %3965
        %3969 = vset.pattern.permute.xlu0 0
        %3970 = vperm.xlu0 %3969, %v2771
        %v3971 = vpop.permute.xlu0 %3970
        %3974 = vset.pattern.permute.xlu0 0
        %3975 = vperm.xlu0 %3974, %v2773
        %v3976 = vpop.permute.xlu0 %3975
        %3979 = vset.pattern.permute.xlu0 0
        %3980 = vperm.xlu0 %3979, %v2775
        %v3981 = vpop.permute.xlu0 %3980
        %3984 = vset.pattern.permute.xlu0 0
        %3985 = vperm.xlu0 %3984, %v2777
        %v3986 = vpop.permute.xlu0 %3985
        %3989 = vset.pattern.permute.xlu0 0
        %3990 = vperm.xlu0 %3989, %v2779
        %v3991 = vpop.permute.xlu0 %3990
        %3994 = vset.pattern.permute.xlu0 0
        %3995 = vperm.xlu0 %3994, %v2781
        %v3996 = vpop.permute.xlu0 %3995
        %3999 = vset.pattern.permute.xlu0 0
        %4000 = vperm.xlu0 %3999, %v2783
        %v4001 = vpop.permute.xlu0 %4000
        %4004 = vset.pattern.permute.xlu0 0
        %4005 = vperm.xlu0 %4004, %v2785
        %v4006 = vpop.permute.xlu0 %4005
        %4009 = vset.pattern.permute.xlu0 0
        %4010 = vperm.xlu0 %4009, %v2787
        %v4011 = vpop.permute.xlu0 %4010
        %4014 = vset.pattern.permute.xlu0 0
        %4015 = vperm.xlu0 %4014, %v2789
        %v4016 = vpop.permute.xlu0 %4015
        %4019 = vset.pattern.permute.xlu0 0
        %4020 = vperm.xlu0 %4019, %v2791
        %v4021 = vpop.permute.xlu0 %4020
        %4024 = vset.pattern.permute.xlu0 0
        %4025 = vperm.xlu0 %4024, %v2793
        %v4026 = vpop.permute.xlu0 %4025
        %4029 = vset.pattern.permute.xlu0 0
        %4030 = vperm.xlu0 %4029, %v2795
        %v4031 = vpop.permute.xlu0 %4030
        %4034 = vset.pattern.permute.xlu0 0
        %4035 = vperm.xlu0 %4034, %v2797
        %v4036 = vpop.permute.xlu0 %4035
        %4039 = vset.pattern.permute.xlu0 0
        %4040 = vperm.xlu0 %4039, %v2799
        %v4041 = vpop.permute.xlu0 %4040
        %4044 = vset.pattern.permute.xlu0 0
        %4045 = vperm.xlu0 %4044, %v2801
        %v4046 = vpop.permute.xlu0 %4045
        %4049 = vset.pattern.permute.xlu0 0
        %4050 = vperm.xlu0 %4049, %v2803
        %v4051 = vpop.permute.xlu0 %4050
        %4054 = vset.pattern.permute.xlu0 0
        %4055 = vperm.xlu0 %4054, %v2805
        %v4056 = vpop.permute.xlu0 %4055
        %4059 = vset.pattern.permute.xlu0 0
        %4060 = vperm.xlu0 %4059, %v2807
        %v4061 = vpop.permute.xlu0 %4060
        %4064 = vset.pattern.permute.xlu0 0
        %4065 = vperm.xlu0 %4064, %v2809
        %v4066 = vpop.permute.xlu0 %4065
        %4069 = vset.pattern.permute.xlu0 0
        %4070 = vperm.xlu0 %4069, %v2811
        %v4071 = vpop.permute.xlu0 %4070
        %4074 = vset.pattern.permute.xlu0 0
        %4075 = vperm.xlu0 %4074, %v2813
        %v4076 = vpop.permute.xlu0 %4075
        %4079 = vset.pattern.permute.xlu0 0
        %4080 = vperm.xlu0 %4079, %v2815
        %v4081 = vpop.permute.xlu0 %4080
        %4084 = vset.pattern.permute.xlu0 0
        %4085 = vperm.xlu0 %4084, %v2817
        %v4086 = vpop.permute.xlu0 %4085
        %4089 = vset.pattern.permute.xlu0 0
        %4090 = vperm.xlu0 %4089, %v2819
        %v4091 = vpop.permute.xlu0 %4090
        %4094 = vset.pattern.permute.xlu0 0
        %4095 = vperm.xlu0 %4094, %v2821
        %v4096 = vpop.permute.xlu0 %4095
        %4099 = vset.pattern.permute.xlu0 0
        %4100 = vperm.xlu0 %4099, %v2823
        %v4101 = vpop.permute.xlu0 %4100
        %4104 = vset.pattern.permute.xlu0 0
        %4105 = vperm.xlu0 %4104, %v2825
        %v4106 = vpop.permute.xlu0 %4105
        %4109 = vset.pattern.permute.xlu0 0
        %4110 = vperm.xlu0 %4109, %v2827
        %v4111 = vpop.permute.xlu0 %4110
        %4114 = vset.pattern.permute.xlu0 0
        %4115 = vperm.xlu0 %4114, %v2829
        %v4116 = vpop.permute.xlu0 %4115
        %4119 = vset.pattern.permute.xlu0 0
        %4120 = vperm.xlu0 %4119, %v2831
        %v4121 = vpop.permute.xlu0 %4120
        %4124 = vset.pattern.permute.xlu0 0
        %4125 = vperm.xlu0 %4124, %v2833
        %v4126 = vpop.permute.xlu0 %4125
        %4129 = vset.pattern.permute.xlu0 0
        %4130 = vperm.xlu0 %4129, %v2835
        %v4131 = vpop.permute.xlu0 %4130
        %4134 = vset.pattern.permute.xlu0 0
        %4135 = vperm.xlu0 %4134, %v2837
        %v4136 = vpop.permute.xlu0 %4135
        %4139 = vset.pattern.permute.xlu0 0
        %4140 = vperm.xlu0 %4139, %v2839
        %v4141 = vpop.permute.xlu0 %4140
        %4144 = vset.pattern.permute.xlu0 0
        %4145 = vperm.xlu0 %4144, %v2841
        %v4146 = vpop.permute.xlu0 %4145
        %4149 = vset.pattern.permute.xlu0 0
        %4150 = vperm.xlu0 %4149, %v2843
        %v4151 = vpop.permute.xlu0 %4150
        %4154 = vset.pattern.permute.xlu0 0
        %4155 = vperm.xlu0 %4154, %v2845
        %v4156 = vpop.permute.xlu0 %4155
        %4159 = vset.pattern.permute.xlu0 0
        %4160 = vperm.xlu0 %4159, %v2847
        %v4161 = vpop.permute.xlu0 %4160
        %4164 = vset.pattern.permute.xlu0 0
        %4165 = vperm.xlu0 %4164, %v2849
        %v4166 = vpop.permute.xlu0 %4165
        %4169 = vset.pattern.permute.xlu0 0
        %4170 = vperm.xlu0 %4169, %v2851
        %v4171 = vpop.permute.xlu0 %4170
        %4174 = vset.pattern.permute.xlu0 0
        %4175 = vperm.xlu0 %4174, %v2853
        %v4176 = vpop.permute.xlu0 %4175
        %4179 = vset.pattern.permute.xlu0 0
        %4180 = vperm.xlu0 %4179, %v2855
        %v4181 = vpop.permute.xlu0 %4180
        %4184 = vset.pattern.permute.xlu0 0
        %4185 = vperm.xlu0 %4184, %v2857
        %v4186 = vpop.permute.xlu0 %4185
        %4189 = vset.pattern.permute.xlu0 0
        %4190 = vperm.xlu0 %4189, %v2859
        %v4191 = vpop.permute.xlu0 %4190
        %4194 = vset.pattern.permute.xlu0 0
        %4195 = vperm.xlu0 %4194, %v2861
        %v4196 = vpop.permute.xlu0 %4195
        %4199 = vset.pattern.permute.xlu0 0
        %4200 = vperm.xlu0 %4199, %v2863
        %v4201 = vpop.permute.xlu0 %4200
        %4204 = vset.pattern.permute.xlu0 0
        %4205 = vperm.xlu0 %4204, %v2865
        %v4206 = vpop.permute.xlu0 %4205
        %4209 = vset.pattern.permute.xlu0 0
        %4210 = vperm.xlu0 %4209, %v2867
        %v4211 = vpop.permute.xlu0 %4210
        %v4213 = vmul.f32 %v3896, %v3829
        %v4214 = vmul.f32 %v3901, %v3830
        %v4215 = vmul.f32 %v3906, %v3831
        %v4216 = vmul.f32 %v3911, %v3832
        %v4217 = vmul.f32 %v3916, %v3833
        %v4218 = vmul.f32 %v3921, %v3834
        %v4219 = vmul.f32 %v3926, %v3835
        %v4220 = vmul.f32 %v3931, %v3836
        %v4221 = vmul.f32 %v3936, %v3837
        %v4222 = vmul.f32 %v3941, %v3838
        %v4223 = vmul.f32 %v3946, %v3839
        %v4224 = vmul.f32 %v3951, %v3840
        %v4225 = vmul.f32 %v3956, %v3841
        %v4226 = vmul.f32 %v3961, %v3842
        %v4227 = vmul.f32 %v3966, %v3843
        %v4228 = vmul.f32 %v3971, %v3844
        %v4229 = vmul.f32 %v3976, %v3845
        %v4230 = vmul.f32 %v3981, %v3846
        %v4231 = vmul.f32 %v3986, %v3847
        %v4232 = vmul.f32 %v3991, %v3848
        %v4233 = vmul.f32 %v3996, %v3849
        %v4234 = vmul.f32 %v4001, %v3850
        %v4235 = vmul.f32 %v4006, %v3851
        %v4236 = vmul.f32 %v4011, %v3852
        %v4237 = vmul.f32 %v4016, %v3853
        %v4238 = vmul.f32 %v4021, %v3854
        %v4239 = vmul.f32 %v4026, %v3855
        %v4240 = vmul.f32 %v4031, %v3856
        %v4241 = vmul.f32 %v4036, %v3857
        %v4242 = vmul.f32 %v4041, %v3858
        %v4243 = vmul.f32 %v4046, %v3859
        %v4244 = vmul.f32 %v4051, %v3860
        %v4245 = vmul.f32 %v4056, %v3861
        %v4246 = vmul.f32 %v4061, %v3862
        %v4247 = vmul.f32 %v4066, %v3863
        %v4248 = vmul.f32 %v4071, %v3864
        %v4249 = vmul.f32 %v4076, %v3865
        %v4250 = vmul.f32 %v4081, %v3866
        %v4251 = vmul.f32 %v4086, %v3867
        %v4252 = vmul.f32 %v4091, %v3868
        %v4253 = vmul.f32 %v4096, %v3869
        %v4254 = vmul.f32 %v4101, %v3870
        %v4255 = vmul.f32 %v4106, %v3871
        %v4256 = vmul.f32 %v4111, %v3872
        %v4257 = vmul.f32 %v4116, %v3873
        %v4258 = vmul.f32 %v4121, %v3874
        %v4259 = vmul.f32 %v4126, %v3875
        %v4260 = vmul.f32 %v4131, %v3876
        %v4261 = vmul.f32 %v4136, %v3877
        %v4262 = vmul.f32 %v4141, %v3878
        %v4263 = vmul.f32 %v4146, %v3879
        %v4264 = vmul.f32 %v4151, %v3880
        %v4265 = vmul.f32 %v4156, %v3881
        %v4266 = vmul.f32 %v4161, %v3882
        %v4267 = vmul.f32 %v4166, %v3883
        %v4268 = vmul.f32 %v4171, %v3884
        %v4269 = vmul.f32 %v4176, %v3885
        %v4270 = vmul.f32 %v4181, %v3886
        %v4271 = vmul.f32 %v4186, %v3887
        %v4272 = vmul.f32 %v4191, %v3888
        %v4273 = vmul.f32 %v4196, %v3889
        %v4274 = vmul.f32 %v4201, %v3890
        %v4275 = vmul.f32 %v4206, %v3891
        %v4276 = vmul.f32 %v4211, %v3892
        %v4278 = vsel %vm2419, %v3253, 0
        %v4281 = vsel %vm2419, %v3255, 0
        %v4284 = vsel %vm2419, %v3257, 0
        %v4287 = vsel %vm2419, %v3259, 0
        %v4290 = vsel %vm2419, %v3261, 0
        %v4293 = vsel %vm2419, %v3263, 0
        %v4296 = vsel %vm2419, %v3265, 0
        %v4299 = vsel %vm2419, %v3267, 0
        %4301 = vmatprep.subr.mxu0 0.0
        %4302 = vmatpush1.msra.mxu0 0.0
        %4303 = vmatprep.subr.mxu0 0.0
        %4304 = vmatpush1.msra.mxu0 0.0
        %4305 = vmatprep.subr.mxu0 0.0
        %4306 = vmatpush1.msra.mxu0 0.0
        %4307 = vmatprep.subr.mxu0 0.0
        %4308 = vmatpush1.msra.mxu0 0.0
        %4309 = vmatprep.subr.mxu0 0.0
        %4310 = vmatpush1.msra.mxu0 0.0
        %4311 = vmatprep.subr.mxu0 0.0
        %4312 = vmatpush1.msra.mxu0 0.0
        %4313 = vmatprep.subr.mxu0 0.0
        %4314 = vmatpush1.msra.mxu0 0.0
        %4315 = vmatprep.subr.mxu0 0.0
        %4316 = vmatpush1.msra.mxu0 0.0
        %4317 = vmatprep.subr.mxu0 0.0
        %4318 = vmatpush1.msra.mxu0 0.0
        %4319 = vmatprep.subr.mxu0 0.0
        %4320 = vmatpush1.msra.mxu0 0.0
        %4321 = vmatprep.subr.mxu0 0.0
        %4322 = vmatpush1.msra.mxu0 0.0
        %4323 = vmatprep.subr.mxu0 0.0
        %4324 = vmatpush1.msra.mxu0 0.0
        %4325 = vmatprep.subr.mxu0 0.0
        %4326 = vmatpush1.msra.mxu0 %v1281
        %4327 = vmatprep.subr.mxu0 0.0
        %4328 = vmatpush1.msra.mxu0 %v1275
        %4329 = vmatprep.subr.mxu0 0.0
        %4330 = vmatpush1.msra.mxu0 %v1269
        %4331 = vmatprep.subr.mxu0 0.0
        %4332 = vmatpush1.msra.mxu0 %v1263
        %4333 = vmatprep.subr.mxu0 0.0
        %4334 = vmatpush2.msra.mxu0 0.0
        %4335 = vmatprep.subr.mxu0 0.0
        %4336 = vmatpush2.msra.mxu0 0.0
        %4337 = vmatprep.subr.mxu0 0.0
        %4338 = vmatpush2.msra.mxu0 0.0
        %4339 = vmatprep.subr.mxu0 0.0
        %4340 = vmatpush2.msra.mxu0 0.0
        %4341 = vmatprep.subr.mxu0 0.0
        %4342 = vmatpush2.msra.mxu0 0.0
        %4343 = vmatprep.subr.mxu0 0.0
        %4344 = vmatpush2.msra.mxu0 0.0
        %4345 = vmatprep.subr.mxu0 0.0
        %4346 = vmatpush2.msra.mxu0 0.0
        %4347 = vmatprep.subr.mxu0 0.0
        %4348 = vmatpush2.msra.mxu0 0.0
        %4349 = vmatprep.subr.mxu0 0.0
        %4350 = vmatpush2.msra.mxu0 0.0
        %4351 = vmatprep.subr.mxu0 0.0
        %4352 = vmatpush2.msra.mxu0 0.0
        %4353 = vmatprep.subr.mxu0 0.0
        %4354 = vmatpush2.msra.mxu0 0.0
        %4355 = vmatprep.subr.mxu0 0.0
        %4356 = vmatpush2.msra.mxu0 0.0
        %4357 = vmatprep.subr.mxu0 0.0
        %4358 = vmatpush2.msra.mxu0 0.0
        %4359 = vmatprep.subr.mxu0 0.0
        %4360 = vmatpush2.msra.mxu0 0.0
        %4361 = vmatprep.subr.mxu0 0.0
        %4362 = vmatpush2.msra.mxu0 0.0
        %4363 = vmatprep.subr.mxu0 0.0
        %4364 = vmatpush2.msra.mxu0 0.0
        %4365 = vmatprep.mubr.f32.mxu0 0.0
        %4366 = vmatmul.mubr.f32.gmra.mxu0 %v4278
        %v4367 = vpop.f32.mrf.mxu0
        %v4368 = vadd.f32 0.0, %v4367
        %v4369 = vpop.f32.mrf.mxu0
        %4370 = vmatprep.mubr.f32.mxu0 0.0
        %4371 = vmatmul.mubr.f32.gmra.mxu0 %v4281
        %v4372 = vpop.f32.mrf.mxu0
        %v4373 = vadd.f32 0.0, %v4372
        %v4374 = vpop.f32.mrf.mxu0
        %4375 = vmatprep.mubr.f32.mxu0 0.0
        %4376 = vmatmul.mubr.f32.gmra.mxu0 %v4284
        %v4377 = vpop.f32.mrf.mxu0
        %v4378 = vadd.f32 0.0, %v4377
        %v4379 = vpop.f32.mrf.mxu0
        %4380 = vmatprep.mubr.f32.mxu0 0.0
        %4381 = vmatmul.mubr.f32.gmra.mxu0 %v4287
        %v4382 = vpop.f32.mrf.mxu0
        %v4383 = vadd.f32 0.0, %v4382
        %v4384 = vpop.f32.mrf.mxu0
        %4385 = vmatprep.mubr.f32.mxu0 0.0
        %4386 = vmatmul.mubr.f32.gmra.mxu0 %v4290
        %v4387 = vpop.f32.mrf.mxu0
        %v4388 = vadd.f32 0.0, %v4387
        %v4389 = vpop.f32.mrf.mxu0
        %4390 = vmatprep.mubr.f32.mxu0 0.0
        %4391 = vmatmul.mubr.f32.gmra.mxu0 %v4293
        %v4392 = vpop.f32.mrf.mxu0
        %v4393 = vadd.f32 0.0, %v4392
        %v4394 = vpop.f32.mrf.mxu0
        %4395 = vmatprep.mubr.f32.mxu0 0.0
        %4396 = vmatmul.mubr.f32.gmra.mxu0 %v4296
        %v4397 = vpop.f32.mrf.mxu0
        %v4398 = vadd.f32 0.0, %v4397
        %v4399 = vpop.f32.mrf.mxu0
        %4400 = vmatprep.mubr.f32.mxu0 0.0
        %4401 = vmatmul.mubr.f32.gmra.mxu0 %v4299
        %v4402 = vpop.f32.mrf.mxu0
        %v4403 = vadd.f32 0.0, %v4402
        %v4404 = vpop.f32.mrf.mxu0
        %4405 = vdwg.mxu0
        %v4407 = vsel %vm2419, %v3269, 0
        %v4410 = vsel %vm2419, %v3271, 0
        %v4413 = vsel %vm2419, %v3273, 0
        %v4416 = vsel %vm2419, %v3275, 0
        %v4419 = vsel %vm2419, %v3277, 0
        %v4422 = vsel %vm2419, %v3279, 0
        %v4425 = vsel %vm2419, %v3281, 0
        %v4428 = vsel %vm2419, %v3283, 0
        %4430 = vmatprep.subr.mxu0 0.0
        %4431 = vmatpush1.msra.mxu0 0.0
        %4432 = vmatprep.subr.mxu0 0.0
        %4433 = vmatpush1.msra.mxu0 0.0
        %4434 = vmatprep.subr.mxu0 0.0
        %4435 = vmatpush1.msra.mxu0 0.0
        %4436 = vmatprep.subr.mxu0 0.0
        %4437 = vmatpush1.msra.mxu0 0.0
        %4438 = vmatprep.subr.mxu0 0.0
        %4439 = vmatpush1.msra.mxu0 0.0
        %4440 = vmatprep.subr.mxu0 0.0
        %4441 = vmatpush1.msra.mxu0 0.0
        %4442 = vmatprep.subr.mxu0 0.0
        %4443 = vmatpush1.msra.mxu0 0.0
        %4444 = vmatprep.subr.mxu0 0.0
        %4445 = vmatpush1.msra.mxu0 0.0
        %4446 = vmatprep.subr.mxu0 0.0
        %4447 = vmatpush1.msra.mxu0 0.0
        %4448 = vmatprep.subr.mxu0 0.0
        %4449 = vmatpush1.msra.mxu0 0.0
        %4450 = vmatprep.subr.mxu0 0.0
        %4451 = vmatpush1.msra.mxu0 0.0
        %4452 = vmatprep.subr.mxu0 0.0
        %4453 = vmatpush1.msra.mxu0 0.0
        %4454 = vmatprep.subr.mxu0 0.0
        %4455 = vmatpush1.msra.mxu0 %v1305
        %4456 = vmatprep.subr.mxu0 0.0
        %4457 = vmatpush1.msra.mxu0 %v1299
        %4458 = vmatprep.subr.mxu0 0.0
        %4459 = vmatpush1.msra.mxu0 %v1293
        %4460 = vmatprep.subr.mxu0 0.0
        %4461 = vmatpush1.msra.mxu0 %v1287
        %4462 = vmatprep.subr.mxu0 0.0
        %4463 = vmatpush2.msra.mxu0 0.0
        %4464 = vmatprep.subr.mxu0 0.0
        %4465 = vmatpush2.msra.mxu0 0.0
        %4466 = vmatprep.subr.mxu0 0.0
        %4467 = vmatpush2.msra.mxu0 0.0
        %4468 = vmatprep.subr.mxu0 0.0
        %4469 = vmatpush2.msra.mxu0 0.0
        %4470 = vmatprep.subr.mxu0 0.0
        %4471 = vmatpush2.msra.mxu0 0.0
        %4472 = vmatprep.subr.mxu0 0.0
        %4473 = vmatpush2.msra.mxu0 0.0
        %4474 = vmatprep.subr.mxu0 0.0
        %4475 = vmatpush2.msra.mxu0 0.0
        %4476 = vmatprep.subr.mxu0 0.0
        %4477 = vmatpush2.msra.mxu0 0.0
        %4478 = vmatprep.subr.mxu0 0.0
        %4479 = vmatpush2.msra.mxu0 0.0
        %4480 = vmatprep.subr.mxu0 0.0
        %4481 = vmatpush2.msra.mxu0 0.0
        %4482 = vmatprep.subr.mxu0 0.0
        %4483 = vmatpush2.msra.mxu0 0.0
        %4484 = vmatprep.subr.mxu0 0.0
        %4485 = vmatpush2.msra.mxu0 0.0
        %4486 = vmatprep.subr.mxu0 0.0
        %4487 = vmatpush2.msra.mxu0 0.0
        %4488 = vmatprep.subr.mxu0 0.0
        %4489 = vmatpush2.msra.mxu0 0.0
        %4490 = vmatprep.subr.mxu0 0.0
        %4491 = vmatpush2.msra.mxu0 0.0
        %4492 = vmatprep.subr.mxu0 0.0
        %4493 = vmatpush2.msra.mxu0 0.0
        %4494 = vmatprep.mubr.f32.mxu0 0.0
        %4495 = vmatmul.mubr.f32.gmra.mxu0 %v4407
        %v4496 = vpop.f32.mrf.mxu0
        %v4497 = vadd.f32 0.0, %v4496
        %v4498 = vpop.f32.mrf.mxu0
        %4499 = vmatprep.mubr.f32.mxu0 0.0
        %4500 = vmatmul.mubr.f32.gmra.mxu0 %v4410
        %v4501 = vpop.f32.mrf.mxu0
        %v4502 = vadd.f32 0.0, %v4501
        %v4503 = vpop.f32.mrf.mxu0
        %4504 = vmatprep.mubr.f32.mxu0 0.0
        %4505 = vmatmul.mubr.f32.gmra.mxu0 %v4413
        %v4506 = vpop.f32.mrf.mxu0
        %v4507 = vadd.f32 0.0, %v4506
        %v4508 = vpop.f32.mrf.mxu0
        %4509 = vmatprep.mubr.f32.mxu0 0.0
        %4510 = vmatmul.mubr.f32.gmra.mxu0 %v4416
        %v4511 = vpop.f32.mrf.mxu0
        %v4512 = vadd.f32 0.0, %v4511
        %v4513 = vpop.f32.mrf.mxu0
        %4514 = vmatprep.mubr.f32.mxu0 0.0
        %4515 = vmatmul.mubr.f32.gmra.mxu0 %v4419
        %v4516 = vpop.f32.mrf.mxu0
        %v4517 = vadd.f32 0.0, %v4516
        %v4518 = vpop.f32.mrf.mxu0
        %4519 = vmatprep.mubr.f32.mxu0 0.0
        %4520 = vmatmul.mubr.f32.gmra.mxu0 %v4422
        %v4521 = vpop.f32.mrf.mxu0
        %v4522 = vadd.f32 0.0, %v4521
        %v4523 = vpop.f32.mrf.mxu0
        %4524 = vmatprep.mubr.f32.mxu0 0.0
        %4525 = vmatmul.mubr.f32.gmra.mxu0 %v4425
        %v4526 = vpop.f32.mrf.mxu0
        %v4527 = vadd.f32 0.0, %v4526
        %v4528 = vpop.f32.mrf.mxu0
        %4529 = vmatprep.mubr.f32.mxu0 0.0
        %4530 = vmatmul.mubr.f32.gmra.mxu0 %v4428
        %v4531 = vpop.f32.mrf.mxu0
        %v4532 = vadd.f32 0.0, %v4531
        %v4533 = vpop.f32.mrf.mxu0
        %4534 = vdwg.mxu0
        %v4536 = vsel %vm2419, %v3285, 0
        %v4539 = vsel %vm2419, %v3287, 0
        %v4542 = vsel %vm2419, %v3289, 0
        %v4545 = vsel %vm2419, %v3291, 0
        %v4548 = vsel %vm2419, %v3293, 0
        %v4551 = vsel %vm2419, %v3295, 0
        %v4554 = vsel %vm2419, %v3297, 0
        %v4557 = vsel %vm2419, %v3299, 0
        %4559 = vmatprep.subr.mxu0 0.0
        %4560 = vmatpush1.msra.mxu0 0.0
        %4561 = vmatprep.subr.mxu0 0.0
        %4562 = vmatpush1.msra.mxu0 0.0
        %4563 = vmatprep.subr.mxu0 0.0
        %4564 = vmatpush1.msra.mxu0 0.0
        %4565 = vmatprep.subr.mxu0 0.0
        %4566 = vmatpush1.msra.mxu0 0.0
        %4567 = vmatprep.subr.mxu0 0.0
        %4568 = vmatpush1.msra.mxu0 0.0
        %4569 = vmatprep.subr.mxu0 0.0
        %4570 = vmatpush1.msra.mxu0 0.0
        %4571 = vmatprep.subr.mxu0 0.0
        %4572 = vmatpush1.msra.mxu0 0.0
        %4573 = vmatprep.subr.mxu0 0.0
        %4574 = vmatpush1.msra.mxu0 0.0
        %4575 = vmatprep.subr.mxu0 0.0
        %4576 = vmatpush1.msra.mxu0 0.0
        %4577 = vmatprep.subr.mxu0 0.0
        %4578 = vmatpush1.msra.mxu0 0.0
        %4579 = vmatprep.subr.mxu0 0.0
        %4580 = vmatpush1.msra.mxu0 0.0
        %4581 = vmatprep.subr.mxu0 0.0
        %4582 = vmatpush1.msra.mxu0 0.0
        %4583 = vmatprep.subr.mxu0 0.0
        %4584 = vmatpush1.msra.mxu0 %v1329
        %4585 = vmatprep.subr.mxu0 0.0
        %4586 = vmatpush1.msra.mxu0 %v1323
        %4587 = vmatprep.subr.mxu0 0.0
        %4588 = vmatpush1.msra.mxu0 %v1317
        %4589 = vmatprep.subr.mxu0 0.0
        %4590 = vmatpush1.msra.mxu0 %v1311
        %4591 = vmatprep.subr.mxu0 0.0
        %4592 = vmatpush2.msra.mxu0 0.0
        %4593 = vmatprep.subr.mxu0 0.0
        %4594 = vmatpush2.msra.mxu0 0.0
        %4595 = vmatprep.subr.mxu0 0.0
        %4596 = vmatpush2.msra.mxu0 0.0
        %4597 = vmatprep.subr.mxu0 0.0
        %4598 = vmatpush2.msra.mxu0 0.0
        %4599 = vmatprep.subr.mxu0 0.0
        %4600 = vmatpush2.msra.mxu0 0.0
        %4601 = vmatprep.subr.mxu0 0.0
        %4602 = vmatpush2.msra.mxu0 0.0
        %4603 = vmatprep.subr.mxu0 0.0
        %4604 = vmatpush2.msra.mxu0 0.0
        %4605 = vmatprep.subr.mxu0 0.0
        %4606 = vmatpush2.msra.mxu0 0.0
        %4607 = vmatprep.subr.mxu0 0.0
        %4608 = vmatpush2.msra.mxu0 0.0
        %4609 = vmatprep.subr.mxu0 0.0
        %4610 = vmatpush2.msra.mxu0 0.0
        %4611 = vmatprep.subr.mxu0 0.0
        %4612 = vmatpush2.msra.mxu0 0.0
        %4613 = vmatprep.subr.mxu0 0.0
        %4614 = vmatpush2.msra.mxu0 0.0
        %4615 = vmatprep.subr.mxu0 0.0
        %4616 = vmatpush2.msra.mxu0 0.0
        %4617 = vmatprep.subr.mxu0 0.0
        %4618 = vmatpush2.msra.mxu0 0.0
        %4619 = vmatprep.subr.mxu0 0.0
        %4620 = vmatpush2.msra.mxu0 0.0
        %4621 = vmatprep.subr.mxu0 0.0
        %4622 = vmatpush2.msra.mxu0 0.0
        %4623 = vmatprep.mubr.f32.mxu0 0.0
        %4624 = vmatmul.mubr.f32.gmra.mxu0 %v4536
        %v4625 = vpop.f32.mrf.mxu0
        %v4626 = vadd.f32 0.0, %v4625
        %v4627 = vpop.f32.mrf.mxu0
        %4628 = vmatprep.mubr.f32.mxu0 0.0
        %4629 = vmatmul.mubr.f32.gmra.mxu0 %v4539
        %v4630 = vpop.f32.mrf.mxu0
        %v4631 = vadd.f32 0.0, %v4630
        %v4632 = vpop.f32.mrf.mxu0
        %4633 = vmatprep.mubr.f32.mxu0 0.0
        %4634 = vmatmul.mubr.f32.gmra.mxu0 %v4542
        %v4635 = vpop.f32.mrf.mxu0
        %v4636 = vadd.f32 0.0, %v4635
        %v4637 = vpop.f32.mrf.mxu0
        %4638 = vmatprep.mubr.f32.mxu0 0.0
        %4639 = vmatmul.mubr.f32.gmra.mxu0 %v4545
        %v4640 = vpop.f32.mrf.mxu0
        %v4641 = vadd.f32 0.0, %v4640
        %v4642 = vpop.f32.mrf.mxu0
        %4643 = vmatprep.mubr.f32.mxu0 0.0
        %4644 = vmatmul.mubr.f32.gmra.mxu0 %v4548
        %v4645 = vpop.f32.mrf.mxu0
        %v4646 = vadd.f32 0.0, %v4645
        %v4647 = vpop.f32.mrf.mxu0
        %4648 = vmatprep.mubr.f32.mxu0 0.0
        %4649 = vmatmul.mubr.f32.gmra.mxu0 %v4551
        %v4650 = vpop.f32.mrf.mxu0
        %v4651 = vadd.f32 0.0, %v4650
        %v4652 = vpop.f32.mrf.mxu0
        %4653 = vmatprep.mubr.f32.mxu0 0.0
        %4654 = vmatmul.mubr.f32.gmra.mxu0 %v4554
        %v4655 = vpop.f32.mrf.mxu0
        %v4656 = vadd.f32 0.0, %v4655
        %v4657 = vpop.f32.mrf.mxu0
        %4658 = vmatprep.mubr.f32.mxu0 0.0
        %4659 = vmatmul.mubr.f32.gmra.mxu0 %v4557
        %v4660 = vpop.f32.mrf.mxu0
        %v4661 = vadd.f32 0.0, %v4660
        %v4662 = vpop.f32.mrf.mxu0
        %4663 = vdwg.mxu0
        %v4665 = vsel %vm2419, %v3301, 0
        %v4668 = vsel %vm2419, %v3303, 0
        %v4671 = vsel %vm2419, %v3305, 0
        %v4674 = vsel %vm2419, %v3307, 0
        %v4677 = vsel %vm2419, %v3309, 0
        %v4680 = vsel %vm2419, %v3311, 0
        %v4683 = vsel %vm2419, %v3313, 0
        %v4686 = vsel %vm2419, %v3315, 0
        %4688 = vmatprep.subr.mxu0 0.0
        %4689 = vmatpush1.msra.mxu0 0.0
        %4690 = vmatprep.subr.mxu0 0.0
        %4691 = vmatpush1.msra.mxu0 0.0
        %4692 = vmatprep.subr.mxu0 0.0
        %4693 = vmatpush1.msra.mxu0 0.0
        %4694 = vmatprep.subr.mxu0 0.0
        %4695 = vmatpush1.msra.mxu0 0.0
        %4696 = vmatprep.subr.mxu0 0.0
        %4697 = vmatpush1.msra.mxu0 0.0
        %4698 = vmatprep.subr.mxu0 0.0
        %4699 = vmatpush1.msra.mxu0 0.0
        %4700 = vmatprep.subr.mxu0 0.0
        %4701 = vmatpush1.msra.mxu0 0.0
        %4702 = vmatprep.subr.mxu0 0.0
        %4703 = vmatpush1.msra.mxu0 0.0
        %4704 = vmatprep.subr.mxu0 0.0
        %4705 = vmatpush1.msra.mxu0 0.0
        %4706 = vmatprep.subr.mxu0 0.0
        %4707 = vmatpush1.msra.mxu0 0.0
        %4708 = vmatprep.subr.mxu0 0.0
        %4709 = vmatpush1.msra.mxu0 0.0
        %4710 = vmatprep.subr.mxu0 0.0
        %4711 = vmatpush1.msra.mxu0 0.0
        %4712 = vmatprep.subr.mxu0 0.0
        %4713 = vmatpush1.msra.mxu0 %v1353
        %4714 = vmatprep.subr.mxu0 0.0
        %4715 = vmatpush1.msra.mxu0 %v1347
        %4716 = vmatprep.subr.mxu0 0.0
        %4717 = vmatpush1.msra.mxu0 %v1341
        %4718 = vmatprep.subr.mxu0 0.0
        %4719 = vmatpush1.msra.mxu0 %v1335
        %4720 = vmatprep.subr.mxu0 0.0
        %4721 = vmatpush2.msra.mxu0 0.0
        %4722 = vmatprep.subr.mxu0 0.0
        %4723 = vmatpush2.msra.mxu0 0.0
        %4724 = vmatprep.subr.mxu0 0.0
        %4725 = vmatpush2.msra.mxu0 0.0
        %4726 = vmatprep.subr.mxu0 0.0
        %4727 = vmatpush2.msra.mxu0 0.0
        %4728 = vmatprep.subr.mxu0 0.0
        %4729 = vmatpush2.msra.mxu0 0.0
        %4730 = vmatprep.subr.mxu0 0.0
        %4731 = vmatpush2.msra.mxu0 0.0
        %4732 = vmatprep.subr.mxu0 0.0
        %4733 = vmatpush2.msra.mxu0 0.0
        %4734 = vmatprep.subr.mxu0 0.0
        %4735 = vmatpush2.msra.mxu0 0.0
        %4736 = vmatprep.subr.mxu0 0.0
        %4737 = vmatpush2.msra.mxu0 0.0
        %4738 = vmatprep.subr.mxu0 0.0
        %4739 = vmatpush2.msra.mxu0 0.0
        %4740 = vmatprep.subr.mxu0 0.0
        %4741 = vmatpush2.msra.mxu0 0.0
        %4742 = vmatprep.subr.mxu0 0.0
        %4743 = vmatpush2.msra.mxu0 0.0
        %4744 = vmatprep.subr.mxu0 0.0
        %4745 = vmatpush2.msra.mxu0 0.0
        %4746 = vmatprep.subr.mxu0 0.0
        %4747 = vmatpush2.msra.mxu0 0.0
        %4748 = vmatprep.subr.mxu0 0.0
        %4749 = vmatpush2.msra.mxu0 0.0
        %4750 = vmatprep.subr.mxu0 0.0
        %4751 = vmatpush2.msra.mxu0 0.0
        %4752 = vmatprep.mubr.f32.mxu0 0.0
        %4753 = vmatmul.mubr.f32.gmra.mxu0 %v4665
        %v4754 = vpop.f32.mrf.mxu0
        %v4755 = vadd.f32 0.0, %v4754
        %v4756 = vpop.f32.mrf.mxu0
        %4757 = vmatprep.mubr.f32.mxu0 0.0
        %4758 = vmatmul.mubr.f32.gmra.mxu0 %v4668
        %v4759 = vpop.f32.mrf.mxu0
        %v4760 = vadd.f32 0.0, %v4759
        %v4761 = vpop.f32.mrf.mxu0
        %4762 = vmatprep.mubr.f32.mxu0 0.0
        %4763 = vmatmul.mubr.f32.gmra.mxu0 %v4671
        %v4764 = vpop.f32.mrf.mxu0
        %v4765 = vadd.f32 0.0, %v4764
        %v4766 = vpop.f32.mrf.mxu0
        %4767 = vmatprep.mubr.f32.mxu0 0.0
        %4768 = vmatmul.mubr.f32.gmra.mxu0 %v4674
        %v4769 = vpop.f32.mrf.mxu0
        %v4770 = vadd.f32 0.0, %v4769
        %v4771 = vpop.f32.mrf.mxu0
        %4772 = vmatprep.mubr.f32.mxu0 0.0
        %4773 = vmatmul.mubr.f32.gmra.mxu0 %v4677
        %v4774 = vpop.f32.mrf.mxu0
        %v4775 = vadd.f32 0.0, %v4774
        %v4776 = vpop.f32.mrf.mxu0
        %4777 = vmatprep.mubr.f32.mxu0 0.0
        %4778 = vmatmul.mubr.f32.gmra.mxu0 %v4680
        %v4779 = vpop.f32.mrf.mxu0
        %v4780 = vadd.f32 0.0, %v4779
        %v4781 = vpop.f32.mrf.mxu0
        %4782 = vmatprep.mubr.f32.mxu0 0.0
        %4783 = vmatmul.mubr.f32.gmra.mxu0 %v4683
        %v4784 = vpop.f32.mrf.mxu0
        %v4785 = vadd.f32 0.0, %v4784
        %v4786 = vpop.f32.mrf.mxu0
        %4787 = vmatprep.mubr.f32.mxu0 0.0
        %4788 = vmatmul.mubr.f32.gmra.mxu0 %v4686
        %v4789 = vpop.f32.mrf.mxu0
        %v4790 = vadd.f32 0.0, %v4789
        %v4791 = vpop.f32.mrf.mxu0
        %4792 = vdwg.mxu0
        %v4794 = vsel %vm2419, %v3317, 0
        %v4797 = vsel %vm2419, %v3319, 0
        %v4800 = vsel %vm2419, %v3321, 0
        %v4803 = vsel %vm2419, %v3323, 0
        %v4806 = vsel %vm2419, %v3325, 0
        %v4809 = vsel %vm2419, %v3327, 0
        %v4812 = vsel %vm2419, %v3329, 0
        %v4815 = vsel %vm2419, %v3331, 0
        %4817 = vmatprep.subr.mxu0 0.0
        %4818 = vmatpush1.msra.mxu0 0.0
        %4819 = vmatprep.subr.mxu0 0.0
        %4820 = vmatpush1.msra.mxu0 0.0
        %4821 = vmatprep.subr.mxu0 0.0
        %4822 = vmatpush1.msra.mxu0 0.0
        %4823 = vmatprep.subr.mxu0 0.0
        %4824 = vmatpush1.msra.mxu0 0.0
        %4825 = vmatprep.subr.mxu0 0.0
        %4826 = vmatpush1.msra.mxu0 0.0
        %4827 = vmatprep.subr.mxu0 0.0
        %4828 = vmatpush1.msra.mxu0 0.0
        %4829 = vmatprep.subr.mxu0 0.0
        %4830 = vmatpush1.msra.mxu0 0.0
        %4831 = vmatprep.subr.mxu0 0.0
        %4832 = vmatpush1.msra.mxu0 0.0
        %4833 = vmatprep.subr.mxu0 0.0
        %4834 = vmatpush1.msra.mxu0 0.0
        %4835 = vmatprep.subr.mxu0 0.0
        %4836 = vmatpush1.msra.mxu0 0.0
        %4837 = vmatprep.subr.mxu0 0.0
        %4838 = vmatpush1.msra.mxu0 0.0
        %4839 = vmatprep.subr.mxu0 0.0
        %4840 = vmatpush1.msra.mxu0 0.0
        %4841 = vmatprep.subr.mxu0 0.0
        %4842 = vmatpush1.msra.mxu0 %v1377
        %4843 = vmatprep.subr.mxu0 0.0
        %4844 = vmatpush1.msra.mxu0 %v1371
        %4845 = vmatprep.subr.mxu0 0.0
        %4846 = vmatpush1.msra.mxu0 %v1365
        %4847 = vmatprep.subr.mxu0 0.0
        %4848 = vmatpush1.msra.mxu0 %v1359
        %4849 = vmatprep.subr.mxu0 0.0
        %4850 = vmatpush2.msra.mxu0 0.0
        %4851 = vmatprep.subr.mxu0 0.0
        %4852 = vmatpush2.msra.mxu0 0.0
        %4853 = vmatprep.subr.mxu0 0.0
        %4854 = vmatpush2.msra.mxu0 0.0
        %4855 = vmatprep.subr.mxu0 0.0
        %4856 = vmatpush2.msra.mxu0 0.0
        %4857 = vmatprep.subr.mxu0 0.0
        %4858 = vmatpush2.msra.mxu0 0.0
        %4859 = vmatprep.subr.mxu0 0.0
        %4860 = vmatpush2.msra.mxu0 0.0
        %4861 = vmatprep.subr.mxu0 0.0
        %4862 = vmatpush2.msra.mxu0 0.0
        %4863 = vmatprep.subr.mxu0 0.0
        %4864 = vmatpush2.msra.mxu0 0.0
        %4865 = vmatprep.subr.mxu0 0.0
        %4866 = vmatpush2.msra.mxu0 0.0
        %4867 = vmatprep.subr.mxu0 0.0
        %4868 = vmatpush2.msra.mxu0 0.0
        %4869 = vmatprep.subr.mxu0 0.0
        %4870 = vmatpush2.msra.mxu0 0.0
        %4871 = vmatprep.subr.mxu0 0.0
        %4872 = vmatpush2.msra.mxu0 0.0
        %4873 = vmatprep.subr.mxu0 0.0
        %4874 = vmatpush2.msra.mxu0 0.0
        %4875 = vmatprep.subr.mxu0 0.0
        %4876 = vmatpush2.msra.mxu0 0.0
        %4877 = vmatprep.subr.mxu0 0.0
        %4878 = vmatpush2.msra.mxu0 0.0
        %4879 = vmatprep.subr.mxu0 0.0
        %4880 = vmatpush2.msra.mxu0 0.0
        %4881 = vmatprep.mubr.f32.mxu0 0.0
        %4882 = vmatmul.mubr.f32.gmra.mxu0 %v4794
        %v4883 = vpop.f32.mrf.mxu0
        %v4884 = vadd.f32 0.0, %v4883
        %v4885 = vpop.f32.mrf.mxu0
        %4886 = vmatprep.mubr.f32.mxu0 0.0
        %4887 = vmatmul.mubr.f32.gmra.mxu0 %v4797
        %v4888 = vpop.f32.mrf.mxu0
        %v4889 = vadd.f32 0.0, %v4888
        %v4890 = vpop.f32.mrf.mxu0
        %4891 = vmatprep.mubr.f32.mxu0 0.0
        %4892 = vmatmul.mubr.f32.gmra.mxu0 %v4800
        %v4893 = vpop.f32.mrf.mxu0
        %v4894 = vadd.f32 0.0, %v4893
        %v4895 = vpop.f32.mrf.mxu0
        %4896 = vmatprep.mubr.f32.mxu0 0.0
        %4897 = vmatmul.mubr.f32.gmra.mxu0 %v4803
        %v4898 = vpop.f32.mrf.mxu0
        %v4899 = vadd.f32 0.0, %v4898
        %v4900 = vpop.f32.mrf.mxu0
        %4901 = vmatprep.mubr.f32.mxu0 0.0
        %4902 = vmatmul.mubr.f32.gmra.mxu0 %v4806
        %v4903 = vpop.f32.mrf.mxu0
        %v4904 = vadd.f32 0.0, %v4903
        %v4905 = vpop.f32.mrf.mxu0
        %4906 = vmatprep.mubr.f32.mxu0 0.0
        %4907 = vmatmul.mubr.f32.gmra.mxu0 %v4809
        %v4908 = vpop.f32.mrf.mxu0
        %v4909 = vadd.f32 0.0, %v4908
        %v4910 = vpop.f32.mrf.mxu0
        %4911 = vmatprep.mubr.f32.mxu0 0.0
        %4912 = vmatmul.mubr.f32.gmra.mxu0 %v4812
        %v4913 = vpop.f32.mrf.mxu0
        %v4914 = vadd.f32 0.0, %v4913
        %v4915 = vpop.f32.mrf.mxu0
        %4916 = vmatprep.mubr.f32.mxu0 0.0
        %4917 = vmatmul.mubr.f32.gmra.mxu0 %v4815
        %v4918 = vpop.f32.mrf.mxu0
        %v4919 = vadd.f32 0.0, %v4918
        %v4920 = vpop.f32.mrf.mxu0
        %4921 = vdwg.mxu0
        %v4923 = vsel %vm2419, %v3333, 0
        %v4926 = vsel %vm2419, %v3335, 0
        %v4929 = vsel %vm2419, %v3337, 0
        %v4932 = vsel %vm2419, %v3339, 0
        %v4935 = vsel %vm2419, %v3341, 0
        %v4938 = vsel %vm2419, %v3343, 0
        %v4941 = vsel %vm2419, %v3345, 0
        %v4944 = vsel %vm2419, %v3347, 0
        %4946 = vmatprep.subr.mxu0 0.0
        %4947 = vmatpush1.msra.mxu0 0.0
        %4948 = vmatprep.subr.mxu0 0.0
        %4949 = vmatpush1.msra.mxu0 0.0
        %4950 = vmatprep.subr.mxu0 0.0
        %4951 = vmatpush1.msra.mxu0 0.0
        %4952 = vmatprep.subr.mxu0 0.0
        %4953 = vmatpush1.msra.mxu0 0.0
        %4954 = vmatprep.subr.mxu0 0.0
        %4955 = vmatpush1.msra.mxu0 0.0
        %4956 = vmatprep.subr.mxu0 0.0
        %4957 = vmatpush1.msra.mxu0 0.0
        %4958 = vmatprep.subr.mxu0 0.0
        %4959 = vmatpush1.msra.mxu0 0.0
        %4960 = vmatprep.subr.mxu0 0.0
        %4961 = vmatpush1.msra.mxu0 0.0
        %4962 = vmatprep.subr.mxu0 0.0
        %4963 = vmatpush1.msra.mxu0 0.0
        %4964 = vmatprep.subr.mxu0 0.0
        %4965 = vmatpush1.msra.mxu0 0.0
        %4966 = vmatprep.subr.mxu0 0.0
        %4967 = vmatpush1.msra.mxu0 0.0
        %4968 = vmatprep.subr.mxu0 0.0
        %4969 = vmatpush1.msra.mxu0 0.0
        %4970 = vmatprep.subr.mxu0 0.0
        %4971 = vmatpush1.msra.mxu0 %v1401
        %4972 = vmatprep.subr.mxu0 0.0
        %4973 = vmatpush1.msra.mxu0 %v1395
        %4974 = vmatprep.subr.mxu0 0.0
        %4975 = vmatpush1.msra.mxu0 %v1389
        %4976 = vmatprep.subr.mxu0 0.0
        %4977 = vmatpush1.msra.mxu0 %v1383
        %4978 = vmatprep.subr.mxu0 0.0
        %4979 = vmatpush2.msra.mxu0 0.0
        %4980 = vmatprep.subr.mxu0 0.0
        %4981 = vmatpush2.msra.mxu0 0.0
        %4982 = vmatprep.subr.mxu0 0.0
        %4983 = vmatpush2.msra.mxu0 0.0
        %4984 = vmatprep.subr.mxu0 0.0
        %4985 = vmatpush2.msra.mxu0 0.0
        %4986 = vmatprep.subr.mxu0 0.0
        %4987 = vmatpush2.msra.mxu0 0.0
        %4988 = vmatprep.subr.mxu0 0.0
        %4989 = vmatpush2.msra.mxu0 0.0
        %4990 = vmatprep.subr.mxu0 0.0
        %4991 = vmatpush2.msra.mxu0 0.0
        %4992 = vmatprep.subr.mxu0 0.0
        %4993 = vmatpush2.msra.mxu0 0.0
        %4994 = vmatprep.subr.mxu0 0.0
        %4995 = vmatpush2.msra.mxu0 0.0
        %4996 = vmatprep.subr.mxu0 0.0
        %4997 = vmatpush2.msra.mxu0 0.0
        %4998 = vmatprep.subr.mxu0 0.0
        %4999 = vmatpush2.msra.mxu0 0.0
        %5000 = vmatprep.subr.mxu0 0.0
        %5001 = vmatpush2.msra.mxu0 0.0
        %5002 = vmatprep.subr.mxu0 0.0
        %5003 = vmatpush2.msra.mxu0 0.0
        %5004 = vmatprep.subr.mxu0 0.0
        %5005 = vmatpush2.msra.mxu0 0.0
        %5006 = vmatprep.subr.mxu0 0.0
        %5007 = vmatpush2.msra.mxu0 0.0
        %5008 = vmatprep.subr.mxu0 0.0
        %5009 = vmatpush2.msra.mxu0 0.0
        %5010 = vmatprep.mubr.f32.mxu0 0.0
        %5011 = vmatmul.mubr.f32.gmra.mxu0 %v4923
        %v5012 = vpop.f32.mrf.mxu0
        %v5013 = vadd.f32 0.0, %v5012
        %v5014 = vpop.f32.mrf.mxu0
        %5015 = vmatprep.mubr.f32.mxu0 0.0
        %5016 = vmatmul.mubr.f32.gmra.mxu0 %v4926
        %v5017 = vpop.f32.mrf.mxu0
        %v5018 = vadd.f32 0.0, %v5017
        %v5019 = vpop.f32.mrf.mxu0
        %5020 = vmatprep.mubr.f32.mxu0 0.0
        %5021 = vmatmul.mubr.f32.gmra.mxu0 %v4929
        %v5022 = vpop.f32.mrf.mxu0
        %v5023 = vadd.f32 0.0, %v5022
        %v5024 = vpop.f32.mrf.mxu0
        %5025 = vmatprep.mubr.f32.mxu0 0.0
        %5026 = vmatmul.mubr.f32.gmra.mxu0 %v4932
        %v5027 = vpop.f32.mrf.mxu0
        %v5028 = vadd.f32 0.0, %v5027
        %v5029 = vpop.f32.mrf.mxu0
        %5030 = vmatprep.mubr.f32.mxu0 0.0
        %5031 = vmatmul.mubr.f32.gmra.mxu0 %v4935
        %v5032 = vpop.f32.mrf.mxu0
        %v5033 = vadd.f32 0.0, %v5032
        %v5034 = vpop.f32.mrf.mxu0
        %5035 = vmatprep.mubr.f32.mxu0 0.0
        %5036 = vmatmul.mubr.f32.gmra.mxu0 %v4938
        %v5037 = vpop.f32.mrf.mxu0
        %v5038 = vadd.f32 0.0, %v5037
        %v5039 = vpop.f32.mrf.mxu0
        %5040 = vmatprep.mubr.f32.mxu0 0.0
        %5041 = vmatmul.mubr.f32.gmra.mxu0 %v4941
        %v5042 = vpop.f32.mrf.mxu0
        %v5043 = vadd.f32 0.0, %v5042
        %v5044 = vpop.f32.mrf.mxu0
        %5045 = vmatprep.mubr.f32.mxu0 0.0
        %5046 = vmatmul.mubr.f32.gmra.mxu0 %v4944
        %v5047 = vpop.f32.mrf.mxu0
        %v5048 = vadd.f32 0.0, %v5047
        %v5049 = vpop.f32.mrf.mxu0
        %5050 = vdwg.mxu0
        %v5052 = vsel %vm2419, %v3349, 0
        %v5055 = vsel %vm2419, %v3351, 0
        %v5058 = vsel %vm2419, %v3353, 0
        %v5061 = vsel %vm2419, %v3355, 0
        %v5064 = vsel %vm2419, %v3357, 0
        %v5067 = vsel %vm2419, %v3359, 0
        %v5070 = vsel %vm2419, %v3361, 0
        %v5073 = vsel %vm2419, %v3363, 0
        %5075 = vmatprep.subr.mxu0 0.0
        %5076 = vmatpush1.msra.mxu0 0.0
        %5077 = vmatprep.subr.mxu0 0.0
        %5078 = vmatpush1.msra.mxu0 0.0
        %5079 = vmatprep.subr.mxu0 0.0
        %5080 = vmatpush1.msra.mxu0 0.0
        %5081 = vmatprep.subr.mxu0 0.0
        %5082 = vmatpush1.msra.mxu0 0.0
        %5083 = vmatprep.subr.mxu0 0.0
        %5084 = vmatpush1.msra.mxu0 0.0
        %5085 = vmatprep.subr.mxu0 0.0
        %5086 = vmatpush1.msra.mxu0 0.0
        %5087 = vmatprep.subr.mxu0 0.0
        %5088 = vmatpush1.msra.mxu0 0.0
        %5089 = vmatprep.subr.mxu0 0.0
        %5090 = vmatpush1.msra.mxu0 0.0
        %5091 = vmatprep.subr.mxu0 0.0
        %5092 = vmatpush1.msra.mxu0 0.0
        %5093 = vmatprep.subr.mxu0 0.0
        %5094 = vmatpush1.msra.mxu0 0.0
        %5095 = vmatprep.subr.mxu0 0.0
        %5096 = vmatpush1.msra.mxu0 0.0
        %5097 = vmatprep.subr.mxu0 0.0
        %5098 = vmatpush1.msra.mxu0 0.0
        %5099 = vmatprep.subr.mxu0 0.0
        %5100 = vmatpush1.msra.mxu0 %v1425
        %5101 = vmatprep.subr.mxu0 0.0
        %5102 = vmatpush1.msra.mxu0 %v1419
        %5103 = vmatprep.subr.mxu0 0.0
        %5104 = vmatpush1.msra.mxu0 %v1413
        %5105 = vmatprep.subr.mxu0 0.0
        %5106 = vmatpush1.msra.mxu0 %v1407
        %5107 = vmatprep.subr.mxu0 0.0
        %5108 = vmatpush2.msra.mxu0 0.0
        %5109 = vmatprep.subr.mxu0 0.0
        %5110 = vmatpush2.msra.mxu0 0.0
        %5111 = vmatprep.subr.mxu0 0.0
        %5112 = vmatpush2.msra.mxu0 0.0
        %5113 = vmatprep.subr.mxu0 0.0
        %5114 = vmatpush2.msra.mxu0 0.0
        %5115 = vmatprep.subr.mxu0 0.0
        %5116 = vmatpush2.msra.mxu0 0.0
        %5117 = vmatprep.subr.mxu0 0.0
        %5118 = vmatpush2.msra.mxu0 0.0
        %5119 = vmatprep.subr.mxu0 0.0
        %5120 = vmatpush2.msra.mxu0 0.0
        %5121 = vmatprep.subr.mxu0 0.0
        %5122 = vmatpush2.msra.mxu0 0.0
        %5123 = vmatprep.subr.mxu0 0.0
        %5124 = vmatpush2.msra.mxu0 0.0
        %5125 = vmatprep.subr.mxu0 0.0
        %5126 = vmatpush2.msra.mxu0 0.0
        %5127 = vmatprep.subr.mxu0 0.0
        %5128 = vmatpush2.msra.mxu0 0.0
        %5129 = vmatprep.subr.mxu0 0.0
        %5130 = vmatpush2.msra.mxu0 0.0
        %5131 = vmatprep.subr.mxu0 0.0
        %5132 = vmatpush2.msra.mxu0 0.0
        %5133 = vmatprep.subr.mxu0 0.0
        %5134 = vmatpush2.msra.mxu0 0.0
        %5135 = vmatprep.subr.mxu0 0.0
        %5136 = vmatpush2.msra.mxu0 0.0
        %5137 = vmatprep.subr.mxu0 0.0
        %5138 = vmatpush2.msra.mxu0 0.0
        %5139 = vmatprep.mubr.f32.mxu0 0.0
        %5140 = vmatmul.mubr.f32.gmra.mxu0 %v5052
        %v5141 = vpop.f32.mrf.mxu0
        %v5142 = vadd.f32 0.0, %v5141
        %v5143 = vpop.f32.mrf.mxu0
        %5144 = vmatprep.mubr.f32.mxu0 0.0
        %5145 = vmatmul.mubr.f32.gmra.mxu0 %v5055
        %v5146 = vpop.f32.mrf.mxu0
        %v5147 = vadd.f32 0.0, %v5146
        %v5148 = vpop.f32.mrf.mxu0
        %5149 = vmatprep.mubr.f32.mxu0 0.0
        %5150 = vmatmul.mubr.f32.gmra.mxu0 %v5058
        %v5151 = vpop.f32.mrf.mxu0
        %v5152 = vadd.f32 0.0, %v5151
        %v5153 = vpop.f32.mrf.mxu0
        %5154 = vmatprep.mubr.f32.mxu0 0.0
        %5155 = vmatmul.mubr.f32.gmra.mxu0 %v5061
        %v5156 = vpop.f32.mrf.mxu0
        %v5157 = vadd.f32 0.0, %v5156
        %v5158 = vpop.f32.mrf.mxu0
        %5159 = vmatprep.mubr.f32.mxu0 0.0
        %5160 = vmatmul.mubr.f32.gmra.mxu0 %v5064
        %v5161 = vpop.f32.mrf.mxu0
        %v5162 = vadd.f32 0.0, %v5161
        %v5163 = vpop.f32.mrf.mxu0
        %5164 = vmatprep.mubr.f32.mxu0 0.0
        %5165 = vmatmul.mubr.f32.gmra.mxu0 %v5067
        %v5166 = vpop.f32.mrf.mxu0
        %v5167 = vadd.f32 0.0, %v5166
        %v5168 = vpop.f32.mrf.mxu0
        %5169 = vmatprep.mubr.f32.mxu0 0.0
        %5170 = vmatmul.mubr.f32.gmra.mxu0 %v5070
        %v5171 = vpop.f32.mrf.mxu0
        %v5172 = vadd.f32 0.0, %v5171
        %v5173 = vpop.f32.mrf.mxu0
        %5174 = vmatprep.mubr.f32.mxu0 0.0
        %5175 = vmatmul.mubr.f32.gmra.mxu0 %v5073
        %v5176 = vpop.f32.mrf.mxu0
        %v5177 = vadd.f32 0.0, %v5176
        %v5178 = vpop.f32.mrf.mxu0
        %5179 = vdwg.mxu0
        %v5181 = vsel %vm2419, %v3365, 0
        %v5184 = vsel %vm2419, %v3367, 0
        %v5187 = vsel %vm2419, %v3369, 0
        %v5190 = vsel %vm2419, %v3371, 0
        %v5193 = vsel %vm2419, %v3373, 0
        %v5196 = vsel %vm2419, %v3375, 0
        %v5199 = vsel %vm2419, %v3377, 0
        %v5202 = vsel %vm2419, %v3379, 0
        %5204 = vmatprep.subr.mxu0 0.0
        %5205 = vmatpush1.msra.mxu0 0.0
        %5206 = vmatprep.subr.mxu0 0.0
        %5207 = vmatpush1.msra.mxu0 0.0
        %5208 = vmatprep.subr.mxu0 0.0
        %5209 = vmatpush1.msra.mxu0 0.0
        %5210 = vmatprep.subr.mxu0 0.0
        %5211 = vmatpush1.msra.mxu0 0.0
        %5212 = vmatprep.subr.mxu0 0.0
        %5213 = vmatpush1.msra.mxu0 0.0
        %5214 = vmatprep.subr.mxu0 0.0
        %5215 = vmatpush1.msra.mxu0 0.0
        %5216 = vmatprep.subr.mxu0 0.0
        %5217 = vmatpush1.msra.mxu0 0.0
        %5218 = vmatprep.subr.mxu0 0.0
        %5219 = vmatpush1.msra.mxu0 0.0
        %5220 = vmatprep.subr.mxu0 0.0
        %5221 = vmatpush1.msra.mxu0 0.0
        %5222 = vmatprep.subr.mxu0 0.0
        %5223 = vmatpush1.msra.mxu0 0.0
        %5224 = vmatprep.subr.mxu0 0.0
        %5225 = vmatpush1.msra.mxu0 0.0
        %5226 = vmatprep.subr.mxu0 0.0
        %5227 = vmatpush1.msra.mxu0 0.0
        %5228 = vmatprep.subr.mxu0 0.0
        %5229 = vmatpush1.msra.mxu0 %v1449
        %5230 = vmatprep.subr.mxu0 0.0
        %5231 = vmatpush1.msra.mxu0 %v1443
        %5232 = vmatprep.subr.mxu0 0.0
        %5233 = vmatpush1.msra.mxu0 %v1437
        %5234 = vmatprep.subr.mxu0 0.0
        %5235 = vmatpush1.msra.mxu0 %v1431
        %5236 = vmatprep.subr.mxu0 0.0
        %5237 = vmatpush2.msra.mxu0 0.0
        %5238 = vmatprep.subr.mxu0 0.0
        %5239 = vmatpush2.msra.mxu0 0.0
        %5240 = vmatprep.subr.mxu0 0.0
        %5241 = vmatpush2.msra.mxu0 0.0
        %5242 = vmatprep.subr.mxu0 0.0
        %5243 = vmatpush2.msra.mxu0 0.0
        %5244 = vmatprep.subr.mxu0 0.0
        %5245 = vmatpush2.msra.mxu0 0.0
        %5246 = vmatprep.subr.mxu0 0.0
        %5247 = vmatpush2.msra.mxu0 0.0
        %5248 = vmatprep.subr.mxu0 0.0
        %5249 = vmatpush2.msra.mxu0 0.0
        %5250 = vmatprep.subr.mxu0 0.0
        %5251 = vmatpush2.msra.mxu0 0.0
        %5252 = vmatprep.subr.mxu0 0.0
        %5253 = vmatpush2.msra.mxu0 0.0
        %5254 = vmatprep.subr.mxu0 0.0
        %5255 = vmatpush2.msra.mxu0 0.0
        %5256 = vmatprep.subr.mxu0 0.0
        %5257 = vmatpush2.msra.mxu0 0.0
        %5258 = vmatprep.subr.mxu0 0.0
        %5259 = vmatpush2.msra.mxu0 0.0
        %5260 = vmatprep.subr.mxu0 0.0
        %5261 = vmatpush2.msra.mxu0 0.0
        %5262 = vmatprep.subr.mxu0 0.0
        %5263 = vmatpush2.msra.mxu0 0.0
        %5264 = vmatprep.subr.mxu0 0.0
        %5265 = vmatpush2.msra.mxu0 0.0
        %5266 = vmatprep.subr.mxu0 0.0
        %5267 = vmatpush2.msra.mxu0 0.0
        %5268 = vmatprep.mubr.f32.mxu0 0.0
        %5269 = vmatmul.mubr.f32.gmra.mxu0 %v5181
        %v5270 = vpop.f32.mrf.mxu0
        %v5271 = vadd.f32 0.0, %v5270
        %v5272 = vpop.f32.mrf.mxu0
        %5273 = vmatprep.mubr.f32.mxu0 0.0
        %5274 = vmatmul.mubr.f32.gmra.mxu0 %v5184
        %v5275 = vpop.f32.mrf.mxu0
        %v5276 = vadd.f32 0.0, %v5275
        %v5277 = vpop.f32.mrf.mxu0
        %5278 = vmatprep.mubr.f32.mxu0 0.0
        %5279 = vmatmul.mubr.f32.gmra.mxu0 %v5187
        %v5280 = vpop.f32.mrf.mxu0
        %v5281 = vadd.f32 0.0, %v5280
        %v5282 = vpop.f32.mrf.mxu0
        %5283 = vmatprep.mubr.f32.mxu0 0.0
        %5284 = vmatmul.mubr.f32.gmra.mxu0 %v5190
        %v5285 = vpop.f32.mrf.mxu0
        %v5286 = vadd.f32 0.0, %v5285
        %v5287 = vpop.f32.mrf.mxu0
        %5288 = vmatprep.mubr.f32.mxu0 0.0
        %5289 = vmatmul.mubr.f32.gmra.mxu0 %v5193
        %v5290 = vpop.f32.mrf.mxu0
        %v5291 = vadd.f32 0.0, %v5290
        %v5292 = vpop.f32.mrf.mxu0
        %5293 = vmatprep.mubr.f32.mxu0 0.0
        %5294 = vmatmul.mubr.f32.gmra.mxu0 %v5196
        %v5295 = vpop.f32.mrf.mxu0
        %v5296 = vadd.f32 0.0, %v5295
        %v5297 = vpop.f32.mrf.mxu0
        %5298 = vmatprep.mubr.f32.mxu0 0.0
        %5299 = vmatmul.mubr.f32.gmra.mxu0 %v5199
        %v5300 = vpop.f32.mrf.mxu0
        %v5301 = vadd.f32 0.0, %v5300
        %v5302 = vpop.f32.mrf.mxu0
        %5303 = vmatprep.mubr.f32.mxu0 0.0
        %5304 = vmatmul.mubr.f32.gmra.mxu0 %v5202
        %v5305 = vpop.f32.mrf.mxu0
        %v5306 = vadd.f32 0.0, %v5305
        %v5307 = vpop.f32.mrf.mxu0
        %5308 = vdwg.mxu0
        %v5309 = vadd.f32 %v4213, %v4368
        %v5310 = vadd.f32 %v4214, %v4373
        %v5311 = vadd.f32 %v4215, %v4378
        %v5312 = vadd.f32 %v4216, %v4383
        %v5313 = vadd.f32 %v4217, %v4388
        %v5314 = vadd.f32 %v4218, %v4393
        %v5315 = vadd.f32 %v4219, %v4398
        %v5316 = vadd.f32 %v4220, %v4403
        %v5317 = vadd.f32 %v4221, %v4497
        %v5318 = vadd.f32 %v4222, %v4502
        %v5319 = vadd.f32 %v4223, %v4507
        %v5320 = vadd.f32 %v4224, %v4512
        %v5321 = vadd.f32 %v4225, %v4517
        %v5322 = vadd.f32 %v4226, %v4522
        %v5323 = vadd.f32 %v4227, %v4527
        %v5324 = vadd.f32 %v4228, %v4532
        %v5325 = vadd.f32 %v4229, %v4626
        %v5326 = vadd.f32 %v4230, %v4631
        %v5327 = vadd.f32 %v4231, %v4636
        %v5328 = vadd.f32 %v4232, %v4641
        %v5329 = vadd.f32 %v4233, %v4646
        %v5330 = vadd.f32 %v4234, %v4651
        %v5331 = vadd.f32 %v4235, %v4656
        %v5332 = vadd.f32 %v4236, %v4661
        %v5333 = vadd.f32 %v4237, %v4755
        %v5334 = vadd.f32 %v4238, %v4760
        %v5335 = vadd.f32 %v4239, %v4765
        %v5336 = vadd.f32 %v4240, %v4770
        %v5337 = vadd.f32 %v4241, %v4775
        %v5338 = vadd.f32 %v4242, %v4780
        %v5339 = vadd.f32 %v4243, %v4785
        %v5340 = vadd.f32 %v4244, %v4790
        %v5341 = vadd.f32 %v4245, %v4884
        %v5342 = vadd.f32 %v4246, %v4889
        %v5343 = vadd.f32 %v4247, %v4894
        %v5344 = vadd.f32 %v4248, %v4899
        %v5345 = vadd.f32 %v4249, %v4904
        %v5346 = vadd.f32 %v4250, %v4909
        %v5347 = vadd.f32 %v4251, %v4914
        %v5348 = vadd.f32 %v4252, %v4919
        %v5349 = vadd.f32 %v4253, %v5013
        %v5350 = vadd.f32 %v4254, %v5018
        %v5351 = vadd.f32 %v4255, %v5023
        %v5352 = vadd.f32 %v4256, %v5028
        %v5353 = vadd.f32 %v4257, %v5033
        %v5354 = vadd.f32 %v4258, %v5038
        %v5355 = vadd.f32 %v4259, %v5043
        %v5356 = vadd.f32 %v4260, %v5048
        %v5357 = vadd.f32 %v4261, %v5142
        %v5358 = vadd.f32 %v4262, %v5147
        %v5359 = vadd.f32 %v4263, %v5152
        %v5360 = vadd.f32 %v4264, %v5157
        %v5361 = vadd.f32 %v4265, %v5162
        %v5362 = vadd.f32 %v4266, %v5167
        %v5363 = vadd.f32 %v4267, %v5172
        %v5364 = vadd.f32 %v4268, %v5177
        %v5365 = vadd.f32 %v4269, %v5271
        %v5366 = vadd.f32 %v4270, %v5276
        %v5367 = vadd.f32 %v4271, %v5281
        %v5368 = vadd.f32 %v4272, %v5286
        %v5369 = vadd.f32 %v4273, %v5291
        %v5370 = vadd.f32 %v4274, %v5296
        %v5371 = vadd.f32 %v4275, %v5301
        %v5372 = vadd.f32 %v4276, %v5306
        %5373 = vst [vmem:[#allocation5] sm:$0xff] %v5309
        %5374 = vst [vmem:[#allocation5 + $0x8] sm:$0xff] %v5310
        %5375 = vst [vmem:[#allocation5 + $0x10] sm:$0xff] %v5311
        %5376 = vst [vmem:[#allocation5 + $0x18] sm:$0xff] %v5312
        %5377 = vst [vmem:[#allocation5 + $0x20] sm:$0xff] %v5313
        %5378 = vst [vmem:[#allocation5 + $0x28] sm:$0xff] %v5314
        %5379 = vst [vmem:[#allocation5 + $0x30] sm:$0xff] %v5315
        %5380 = vst [vmem:[#allocation5 + $0x38] sm:$0xff] %v5316
        %5381 = vst [vmem:[#allocation5 + $0x40] sm:$0xff] %v5317
        %5382 = vst [vmem:[#allocation5 + $0x48] sm:$0xff] %v5318
        %5383 = vst [vmem:[#allocation5 + $0x50] sm:$0xff] %v5319
        %5384 = vst [vmem:[#allocation5 + $0x58] sm:$0xff] %v5320
        %5385 = vst [vmem:[#allocation5 + $0x60] sm:$0xff] %v5321
        %5386 = vst [vmem:[#allocation5 + $0x68] sm:$0xff] %v5322
        %5387 = vst [vmem:[#allocation5 + $0x70] sm:$0xff] %v5323
        %5388 = vst [vmem:[#allocation5 + $0x78] sm:$0xff] %v5324
        %5389 = vst [vmem:[#allocation5 + $0x80] sm:$0xff] %v5325
        %5390 = vst [vmem:[#allocation5 + $0x88] sm:$0xff] %v5326
        %5391 = vst [vmem:[#allocation5 + $0x90] sm:$0xff] %v5327
        %5392 = vst [vmem:[#allocation5 + $0x98] sm:$0xff] %v5328
        %5393 = vst [vmem:[#allocation5 + $0xa0] sm:$0xff] %v5329
        %5394 = vst [vmem:[#allocation5 + $0xa8] sm:$0xff] %v5330
        %5395 = vst [vmem:[#allocation5 + $0xb0] sm:$0xff] %v5331
        %5396 = vst [vmem:[#allocation5 + $0xb8] sm:$0xff] %v5332
        %5397 = vst [vmem:[#allocation5 + $0xc0] sm:$0xff] %v5333
        %5398 = vst [vmem:[#allocation5 + $0xc8] sm:$0xff] %v5334
        %5399 = vst [vmem:[#allocation5 + $0xd0] sm:$0xff] %v5335
        %5400 = vst [vmem:[#allocation5 + $0xd8] sm:$0xff] %v5336
        %5401 = vst [vmem:[#allocation5 + $0xe0] sm:$0xff] %v5337
        %5402 = vst [vmem:[#allocation5 + $0xe8] sm:$0xff] %v5338
        %5403 = vst [vmem:[#allocation5 + $0xf0] sm:$0xff] %v5339
        %5404 = vst [vmem:[#allocation5 + $0xf8] sm:$0xff] %v5340
        %5405 = vst [vmem:[#allocation5 + $0x100] sm:$0xff] %v5341
        %5406 = vst [vmem:[#allocation5 + $0x108] sm:$0xff] %v5342
        %5407 = vst [vmem:[#allocation5 + $0x110] sm:$0xff] %v5343
        %5408 = vst [vmem:[#allocation5 + $0x118] sm:$0xff] %v5344
        %5409 = vst [vmem:[#allocation5 + $0x120] sm:$0xff] %v5345
        %5410 = vst [vmem:[#allocation5 + $0x128] sm:$0xff] %v5346
        %5411 = vst [vmem:[#allocation5 + $0x130] sm:$0xff] %v5347
        %5412 = vst [vmem:[#allocation5 + $0x138] sm:$0xff] %v5348
        %5413 = vst [vmem:[#allocation5 + $0x140] sm:$0xff] %v5349
        %5414 = vst [vmem:[#allocation5 + $0x148] sm:$0xff] %v5350
        %5415 = vst [vmem:[#allocation5 + $0x150] sm:$0xff] %v5351
        %5416 = vst [vmem:[#allocation5 + $0x158] sm:$0xff] %v5352
        %5417 = vst [vmem:[#allocation5 + $0x160] sm:$0xff] %v5353
        %5418 = vst [vmem:[#allocation5 + $0x168] sm:$0xff] %v5354
        %5419 = vst [vmem:[#allocation5 + $0x170] sm:$0xff] %v5355
        %5420 = vst [vmem:[#allocation5 + $0x178] sm:$0xff] %v5356
        %5421 = vst [vmem:[#allocation5 + $0x180] sm:$0xff] %v5357
        %5422 = vst [vmem:[#allocation5 + $0x188] sm:$0xff] %v5358
        %5423 = vst [vmem:[#allocation5 + $0x190] sm:$0xff] %v5359
        %5424 = vst [vmem:[#allocation5 + $0x198] sm:$0xff] %v5360
        %5425 = vst [vmem:[#allocation5 + $0x1a0] sm:$0xff] %v5361
        %5426 = vst [vmem:[#allocation5 + $0x1a8] sm:$0xff] %v5362
        %5427 = vst [vmem:[#allocation5 + $0x1b0] sm:$0xff] %v5363
        %5428 = vst [vmem:[#allocation5 + $0x1b8] sm:$0xff] %v5364
        %5429 = vst [vmem:[#allocation5 + $0x1c0] sm:$0xff] %v5365
        %5430 = vst [vmem:[#allocation5 + $0x1c8] sm:$0xff] %v5366
        %5431 = vst [vmem:[#allocation5 + $0x1d0] sm:$0xff] %v5367
        %5432 = vst [vmem:[#allocation5 + $0x1d8] sm:$0xff] %v5368
        %5433 = vst [vmem:[#allocation5 + $0x1e0] sm:$0xff] %v5369
        %5434 = vst [vmem:[#allocation5 + $0x1e8] sm:$0xff] %v5370
        %5435 = vst [vmem:[#allocation5 + $0x1f0] sm:$0xff] %v5371
        %5436 = vst [vmem:[#allocation5 + $0x1f8] sm:$0xff] %v5372
        %5437 = vst.msk [vmem:[#allocation3] sm:$0xff] %vm3764, %v2612
        %5438 = vst.msk [vmem:[#allocation3 + $0x8] sm:$0xff] %vm3764, %v2613
        %5439 = vst.msk [vmem:[#allocation3 + $0x10] sm:$0xff] %vm3764, %v2614
        %5440 = vst.msk [vmem:[#allocation3 + $0x18] sm:$0xff] %vm3764, %v2615
        %5441 = vst.msk [vmem:[#allocation3 + $0x20] sm:$0xff] %vm3764, %v2616
        %5442 = vst.msk [vmem:[#allocation3 + $0x28] sm:$0xff] %vm3764, %v2617
        %5443 = vst.msk [vmem:[#allocation3 + $0x30] sm:$0xff] %vm3764, %v2618
        %5444 = vst.msk [vmem:[#allocation3 + $0x38] sm:$0xff] %vm3764, %v2619
        %5445 = vst.msk [vmem:[#allocation3 + $0x40] sm:$0xff] %vm3764, %v2620
        %5446 = vst.msk [vmem:[#allocation3 + $0x48] sm:$0xff] %vm3764, %v2621
        %5447 = vst.msk [vmem:[#allocation3 + $0x50] sm:$0xff] %vm3764, %v2622
        %5448 = vst.msk [vmem:[#allocation3 + $0x58] sm:$0xff] %vm3764, %v2623
        %5449 = vst.msk [vmem:[#allocation3 + $0x60] sm:$0xff] %vm3764, %v2624
        %5450 = vst.msk [vmem:[#allocation3 + $0x68] sm:$0xff] %vm3764, %v2625
        %5451 = vst.msk [vmem:[#allocation3 + $0x70] sm:$0xff] %vm3764, %v2626
        %5452 = vst.msk [vmem:[#allocation3 + $0x78] sm:$0xff] %vm3764, %v2627
        %5453 = vst.msk [vmem:[#allocation3 + $0x80] sm:$0xff] %vm3764, %v2628
        %5454 = vst.msk [vmem:[#allocation3 + $0x88] sm:$0xff] %vm3764, %v2629
        %5455 = vst.msk [vmem:[#allocation3 + $0x90] sm:$0xff] %vm3764, %v2630
        %5456 = vst.msk [vmem:[#allocation3 + $0x98] sm:$0xff] %vm3764, %v2631
        %5457 = vst.msk [vmem:[#allocation3 + $0xa0] sm:$0xff] %vm3764, %v2632
        %5458 = vst.msk [vmem:[#allocation3 + $0xa8] sm:$0xff] %vm3764, %v2633
        %5459 = vst.msk [vmem:[#allocation3 + $0xb0] sm:$0xff] %vm3764, %v2634
        %5460 = vst.msk [vmem:[#allocation3 + $0xb8] sm:$0xff] %vm3764, %v2635
        %5461 = vst.msk [vmem:[#allocation3 + $0xc0] sm:$0xff] %vm3764, %v2636
        %5462 = vst.msk [vmem:[#allocation3 + $0xc8] sm:$0xff] %vm3764, %v2637
        %5463 = vst.msk [vmem:[#allocation3 + $0xd0] sm:$0xff] %vm3764, %v2638
        %5464 = vst.msk [vmem:[#allocation3 + $0xd8] sm:$0xff] %vm3764, %v2639
        %5465 = vst.msk [vmem:[#allocation3 + $0xe0] sm:$0xff] %vm3764, %v2640
        %5466 = vst.msk [vmem:[#allocation3 + $0xe8] sm:$0xff] %vm3764, %v2641
        %5467 = vst.msk [vmem:[#allocation3 + $0xf0] sm:$0xff] %vm3764, %v2642
        %5468 = vst.msk [vmem:[#allocation3 + $0xf8] sm:$0xff] %vm3764, %v2643
        %5469 = vst.msk [vmem:[#allocation3 + $0x100] sm:$0xff] %vm3764, %v2644
        %5470 = vst.msk [vmem:[#allocation3 + $0x108] sm:$0xff] %vm3764, %v2645
        %5471 = vst.msk [vmem:[#allocation3 + $0x110] sm:$0xff] %vm3764, %v2646
        %5472 = vst.msk [vmem:[#allocation3 + $0x118] sm:$0xff] %vm3764, %v2647
        %5473 = vst.msk [vmem:[#allocation3 + $0x120] sm:$0xff] %vm3764, %v2648
        %5474 = vst.msk [vmem:[#allocation3 + $0x128] sm:$0xff] %vm3764, %v2649
        %5475 = vst.msk [vmem:[#allocation3 + $0x130] sm:$0xff] %vm3764, %v2650
        %5476 = vst.msk [vmem:[#allocation3 + $0x138] sm:$0xff] %vm3764, %v2651
        %5477 = vst.msk [vmem:[#allocation3 + $0x140] sm:$0xff] %vm3764, %v2652
        %5478 = vst.msk [vmem:[#allocation3 + $0x148] sm:$0xff] %vm3764, %v2653
        %5479 = vst.msk [vmem:[#allocation3 + $0x150] sm:$0xff] %vm3764, %v2654
        %5480 = vst.msk [vmem:[#allocation3 + $0x158] sm:$0xff] %vm3764, %v2655
        %5481 = vst.msk [vmem:[#allocation3 + $0x160] sm:$0xff] %vm3764, %v2656
        %5482 = vst.msk [vmem:[#allocation3 + $0x168] sm:$0xff] %vm3764, %v2657
        %5483 = vst.msk [vmem:[#allocation3 + $0x170] sm:$0xff] %vm3764, %v2658
        %5484 = vst.msk [vmem:[#allocation3 + $0x178] sm:$0xff] %vm3764, %v2659
        %5485 = vst.msk [vmem:[#allocation3 + $0x180] sm:$0xff] %vm3764, %v2660
        %5486 = vst.msk [vmem:[#allocation3 + $0x188] sm:$0xff] %vm3764, %v2661
        %5487 = vst.msk [vmem:[#allocation3 + $0x190] sm:$0xff] %vm3764, %v2662
        %5488 = vst.msk [vmem:[#allocation3 + $0x198] sm:$0xff] %vm3764, %v2663
        %5489 = vst.msk [vmem:[#allocation3 + $0x1a0] sm:$0xff] %vm3764, %v2664
        %5490 = vst.msk [vmem:[#allocation3 + $0x1a8] sm:$0xff] %vm3764, %v2665
        %5491 = vst.msk [vmem:[#allocation3 + $0x1b0] sm:$0xff] %vm3764, %v2666
        %5492 = vst.msk [vmem:[#allocation3 + $0x1b8] sm:$0xff] %vm3764, %v2667
        %5493 = vst.msk [vmem:[#allocation3 + $0x1c0] sm:$0xff] %vm3764, %v2668
        %5494 = vst.msk [vmem:[#allocation3 + $0x1c8] sm:$0xff] %vm3764, %v2669
        %5495 = vst.msk [vmem:[#allocation3 + $0x1d0] sm:$0xff] %vm3764, %v2670
        %5496 = vst.msk [vmem:[#allocation3 + $0x1d8] sm:$0xff] %vm3764, %v2671
        %5497 = vst.msk [vmem:[#allocation3 + $0x1e0] sm:$0xff] %vm3764, %v2672
        %5498 = vst.msk [vmem:[#allocation3 + $0x1e8] sm:$0xff] %vm3764, %v2673
        %5499 = vst.msk [vmem:[#allocation3 + $0x1f0] sm:$0xff] %vm3764, %v2674
        %5500 = vst.msk [vmem:[#allocation3 + $0x1f8] sm:$0xff] %vm3764, %v2675
        %p5501 = scmp.eq.s32.totalorder %s32, 1
        // Predicated region
        $region65: #{self_attention.1} parent=43 // pred_check
          %p5502 = pneg %p5501
        $region66: #{self_attention.1} parent=43 // pred_check_branch
          %5504 = sbr.rel (%p5502) target = $region68
        $region67: #{self_attention.1} parent=43 // pred_region
          %v5505 = vld [vmem:[#allocation5] sm:$0xff]
          %v5506 = vld [vmem:[#allocation5 + $0x8] sm:$0xff]
          %v5507 = vld [vmem:[#allocation5 + $0x10] sm:$0xff]
          %v5508 = vld [vmem:[#allocation5 + $0x18] sm:$0xff]
          %v5509 = vld [vmem:[#allocation5 + $0x20] sm:$0xff]
          %v5510 = vld [vmem:[#allocation5 + $0x28] sm:$0xff]
          %v5511 = vld [vmem:[#allocation5 + $0x30] sm:$0xff]
          %v5512 = vld [vmem:[#allocation5 + $0x38] sm:$0xff]
          %v5513 = vld [vmem:[#allocation5 + $0x40] sm:$0xff]
          %v5514 = vld [vmem:[#allocation5 + $0x48] sm:$0xff]
          %v5515 = vld [vmem:[#allocation5 + $0x50] sm:$0xff]
          %v5516 = vld [vmem:[#allocation5 + $0x58] sm:$0xff]
          %v5517 = vld [vmem:[#allocation5 + $0x60] sm:$0xff]
          %v5518 = vld [vmem:[#allocation5 + $0x68] sm:$0xff]
          %v5519 = vld [vmem:[#allocation5 + $0x70] sm:$0xff]
          %v5520 = vld [vmem:[#allocation5 + $0x78] sm:$0xff]
          %v5521 = vld [vmem:[#allocation5 + $0x80] sm:$0xff]
          %v5522 = vld [vmem:[#allocation5 + $0x88] sm:$0xff]
          %v5523 = vld [vmem:[#allocation5 + $0x90] sm:$0xff]
          %v5524 = vld [vmem:[#allocation5 + $0x98] sm:$0xff]
          %v5525 = vld [vmem:[#allocation5 + $0xa0] sm:$0xff]
          %v5526 = vld [vmem:[#allocation5 + $0xa8] sm:$0xff]
          %v5527 = vld [vmem:[#allocation5 + $0xb0] sm:$0xff]
          %v5528 = vld [vmem:[#allocation5 + $0xb8] sm:$0xff]
          %v5529 = vld [vmem:[#allocation5 + $0xc0] sm:$0xff]
          %v5530 = vld [vmem:[#allocation5 + $0xc8] sm:$0xff]
          %v5531 = vld [vmem:[#allocation5 + $0xd0] sm:$0xff]
          %v5532 = vld [vmem:[#allocation5 + $0xd8] sm:$0xff]
          %v5533 = vld [vmem:[#allocation5 + $0xe0] sm:$0xff]
          %v5534 = vld [vmem:[#allocation5 + $0xe8] sm:$0xff]
          %v5535 = vld [vmem:[#allocation5 + $0xf0] sm:$0xff]
          %v5536 = vld [vmem:[#allocation5 + $0xf8] sm:$0xff]
          %v5537 = vld [vmem:[#allocation5 + $0x100] sm:$0xff]
          %v5538 = vld [vmem:[#allocation5 + $0x108] sm:$0xff]
          %v5539 = vld [vmem:[#allocation5 + $0x110] sm:$0xff]
          %v5540 = vld [vmem:[#allocation5 + $0x118] sm:$0xff]
          %v5541 = vld [vmem:[#allocation5 + $0x120] sm:$0xff]
          %v5542 = vld [vmem:[#allocation5 + $0x128] sm:$0xff]
          %v5543 = vld [vmem:[#allocation5 + $0x130] sm:$0xff]
          %v5544 = vld [vmem:[#allocation5 + $0x138] sm:$0xff]
          %v5545 = vld [vmem:[#allocation5 + $0x140] sm:$0xff]
          %v5546 = vld [vmem:[#allocation5 + $0x148] sm:$0xff]
          %v5547 = vld [vmem:[#allocation5 + $0x150] sm:$0xff]
          %v5548 = vld [vmem:[#allocation5 + $0x158] sm:$0xff]
          %v5549 = vld [vmem:[#allocation5 + $0x160] sm:$0xff]
          %v5550 = vld [vmem:[#allocation5 + $0x168] sm:$0xff]
          %v5551 = vld [vmem:[#allocation5 + $0x170] sm:$0xff]
          %v5552 = vld [vmem:[#allocation5 + $0x178] sm:$0xff]
          %v5553 = vld [vmem:[#allocation5 + $0x180] sm:$0xff]
          %v5554 = vld [vmem:[#allocation5 + $0x188] sm:$0xff]
          %v5555 = vld [vmem:[#allocation5 + $0x190] sm:$0xff]
          %v5556 = vld [vmem:[#allocation5 + $0x198] sm:$0xff]
          %v5557 = vld [vmem:[#allocation5 + $0x1a0] sm:$0xff]
          %v5558 = vld [vmem:[#allocation5 + $0x1a8] sm:$0xff]
          %v5559 = vld [vmem:[#allocation5 + $0x1b0] sm:$0xff]
          %v5560 = vld [vmem:[#allocation5 + $0x1b8] sm:$0xff]
          %v5561 = vld [vmem:[#allocation5 + $0x1c0] sm:$0xff]
          %v5562 = vld [vmem:[#allocation5 + $0x1c8] sm:$0xff]
          %v5563 = vld [vmem:[#allocation5 + $0x1d0] sm:$0xff]
          %v5564 = vld [vmem:[#allocation5 + $0x1d8] sm:$0xff]
          %v5565 = vld [vmem:[#allocation5 + $0x1e0] sm:$0xff]
          %v5566 = vld [vmem:[#allocation5 + $0x1e8] sm:$0xff]
          %v5567 = vld [vmem:[#allocation5 + $0x1f0] sm:$0xff]
          %v5568 = vld [vmem:[#allocation5 + $0x1f8] sm:$0xff]
          %v5569 = vld [vmem:[#allocation4] sm:$0xff]
          %v5570 = vld [vmem:[#allocation4 + $0x8] sm:$0xff]
          %v5571 = vld [vmem:[#allocation4 + $0x10] sm:$0xff]
          %v5572 = vld [vmem:[#allocation4 + $0x18] sm:$0xff]
          %v5573 = vld [vmem:[#allocation4 + $0x20] sm:$0xff]
          %v5574 = vld [vmem:[#allocation4 + $0x28] sm:$0xff]
          %v5575 = vld [vmem:[#allocation4 + $0x30] sm:$0xff]
          %v5576 = vld [vmem:[#allocation4 + $0x38] sm:$0xff]
          %v5577 = vld [vmem:[#allocation4 + $0x40] sm:$0xff]
          %v5578 = vld [vmem:[#allocation4 + $0x48] sm:$0xff]
          %v5579 = vld [vmem:[#allocation4 + $0x50] sm:$0xff]
          %v5580 = vld [vmem:[#allocation4 + $0x58] sm:$0xff]
          %v5581 = vld [vmem:[#allocation4 + $0x60] sm:$0xff]
          %v5582 = vld [vmem:[#allocation4 + $0x68] sm:$0xff]
          %v5583 = vld [vmem:[#allocation4 + $0x70] sm:$0xff]
          %v5584 = vld [vmem:[#allocation4 + $0x78] sm:$0xff]
          %v5585 = vld [vmem:[#allocation4 + $0x80] sm:$0xff]
          %v5586 = vld [vmem:[#allocation4 + $0x88] sm:$0xff]
          %v5587 = vld [vmem:[#allocation4 + $0x90] sm:$0xff]
          %v5588 = vld [vmem:[#allocation4 + $0x98] sm:$0xff]
          %v5589 = vld [vmem:[#allocation4 + $0xa0] sm:$0xff]
          %v5590 = vld [vmem:[#allocation4 + $0xa8] sm:$0xff]
          %v5591 = vld [vmem:[#allocation4 + $0xb0] sm:$0xff]
          %v5592 = vld [vmem:[#allocation4 + $0xb8] sm:$0xff]
          %v5593 = vld [vmem:[#allocation4 + $0xc0] sm:$0xff]
          %v5594 = vld [vmem:[#allocation4 + $0xc8] sm:$0xff]
          %v5595 = vld [vmem:[#allocation4 + $0xd0] sm:$0xff]
          %v5596 = vld [vmem:[#allocation4 + $0xd8] sm:$0xff]
          %v5597 = vld [vmem:[#allocation4 + $0xe0] sm:$0xff]
          %v5598 = vld [vmem:[#allocation4 + $0xe8] sm:$0xff]
          %v5599 = vld [vmem:[#allocation4 + $0xf0] sm:$0xff]
          %v5600 = vld [vmem:[#allocation4 + $0xf8] sm:$0xff]
          %v5601 = vld [vmem:[#allocation4 + $0x100] sm:$0xff]
          %v5602 = vld [vmem:[#allocation4 + $0x108] sm:$0xff]
          %v5603 = vld [vmem:[#allocation4 + $0x110] sm:$0xff]
          %v5604 = vld [vmem:[#allocation4 + $0x118] sm:$0xff]
          %v5605 = vld [vmem:[#allocation4 + $0x120] sm:$0xff]
          %v5606 = vld [vmem:[#allocation4 + $0x128] sm:$0xff]
          %v5607 = vld [vmem:[#allocation4 + $0x130] sm:$0xff]
          %v5608 = vld [vmem:[#allocation4 + $0x138] sm:$0xff]
          %v5609 = vld [vmem:[#allocation4 + $0x140] sm:$0xff]
          %v5610 = vld [vmem:[#allocation4 + $0x148] sm:$0xff]
          %v5611 = vld [vmem:[#allocation4 + $0x150] sm:$0xff]
          %v5612 = vld [vmem:[#allocation4 + $0x158] sm:$0xff]
          %v5613 = vld [vmem:[#allocation4 + $0x160] sm:$0xff]
          %v5614 = vld [vmem:[#allocation4 + $0x168] sm:$0xff]
          %v5615 = vld [vmem:[#allocation4 + $0x170] sm:$0xff]
          %v5616 = vld [vmem:[#allocation4 + $0x178] sm:$0xff]
          %v5617 = vld [vmem:[#allocation4 + $0x180] sm:$0xff]
          %v5618 = vld [vmem:[#allocation4 + $0x188] sm:$0xff]
          %v5619 = vld [vmem:[#allocation4 + $0x190] sm:$0xff]
          %v5620 = vld [vmem:[#allocation4 + $0x198] sm:$0xff]
          %v5621 = vld [vmem:[#allocation4 + $0x1a0] sm:$0xff]
          %v5622 = vld [vmem:[#allocation4 + $0x1a8] sm:$0xff]
          %v5623 = vld [vmem:[#allocation4 + $0x1b0] sm:$0xff]
          %v5624 = vld [vmem:[#allocation4 + $0x1b8] sm:$0xff]
          %v5625 = vld [vmem:[#allocation4 + $0x1c0] sm:$0xff]
          %v5626 = vld [vmem:[#allocation4 + $0x1c8] sm:$0xff]
          %v5627 = vld [vmem:[#allocation4 + $0x1d0] sm:$0xff]
          %v5628 = vld [vmem:[#allocation4 + $0x1d8] sm:$0xff]
          %v5629 = vld [vmem:[#allocation4 + $0x1e0] sm:$0xff]
          %v5630 = vld [vmem:[#allocation4 + $0x1e8] sm:$0xff]
          %v5631 = vld [vmem:[#allocation4 + $0x1f0] sm:$0xff]
          %v5632 = vld [vmem:[#allocation4 + $0x1f8] sm:$0xff]
          %5634 = vset.pattern.permute.xlu0 0
          %5635 = vperm.xlu0 %5634, %v5569
          %v5636 = vpop.permute.xlu0 %5635
          %5639 = vset.pattern.permute.xlu0 0
          %5640 = vperm.xlu0 %5639, %v5570
          %v5641 = vpop.permute.xlu0 %5640
          %5644 = vset.pattern.permute.xlu0 0
          %5645 = vperm.xlu0 %5644, %v5571
          %v5646 = vpop.permute.xlu0 %5645
          %5649 = vset.pattern.permute.xlu0 0
          %5650 = vperm.xlu0 %5649, %v5572
          %v5651 = vpop.permute.xlu0 %5650
          %5654 = vset.pattern.permute.xlu0 0
          %5655 = vperm.xlu0 %5654, %v5573
          %v5656 = vpop.permute.xlu0 %5655
          %5659 = vset.pattern.permute.xlu0 0
          %5660 = vperm.xlu0 %5659, %v5574
          %v5661 = vpop.permute.xlu0 %5660
          %5664 = vset.pattern.permute.xlu0 0
          %5665 = vperm.xlu0 %5664, %v5575
          %v5666 = vpop.permute.xlu0 %5665
          %5669 = vset.pattern.permute.xlu0 0
          %5670 = vperm.xlu0 %5669, %v5576
          %v5671 = vpop.permute.xlu0 %5670
          %5674 = vset.pattern.permute.xlu0 0
          %5675 = vperm.xlu0 %5674, %v5577
          %v5676 = vpop.permute.xlu0 %5675
          %5679 = vset.pattern.permute.xlu0 0
          %5680 = vperm.xlu0 %5679, %v5578
          %v5681 = vpop.permute.xlu0 %5680
          %5684 = vset.pattern.permute.xlu0 0
          %5685 = vperm.xlu0 %5684, %v5579
          %v5686 = vpop.permute.xlu0 %5685
          %5689 = vset.pattern.permute.xlu0 0
          %5690 = vperm.xlu0 %5689, %v5580
          %v5691 = vpop.permute.xlu0 %5690
          %5694 = vset.pattern.permute.xlu0 0
          %5695 = vperm.xlu0 %5694, %v5581
          %v5696 = vpop.permute.xlu0 %5695
          %5699 = vset.pattern.permute.xlu0 0
          %5700 = vperm.xlu0 %5699, %v5582
          %v5701 = vpop.permute.xlu0 %5700
          %5704 = vset.pattern.permute.xlu0 0
          %5705 = vperm.xlu0 %5704, %v5583
          %v5706 = vpop.permute.xlu0 %5705
          %5709 = vset.pattern.permute.xlu0 0
          %5710 = vperm.xlu0 %5709, %v5584
          %v5711 = vpop.permute.xlu0 %5710
          %5714 = vset.pattern.permute.xlu0 0
          %5715 = vperm.xlu0 %5714, %v5585
          %v5716 = vpop.permute.xlu0 %5715
          %5719 = vset.pattern.permute.xlu0 0
          %5720 = vperm.xlu0 %5719, %v5586
          %v5721 = vpop.permute.xlu0 %5720
          %5724 = vset.pattern.permute.xlu0 0
          %5725 = vperm.xlu0 %5724, %v5587
          %v5726 = vpop.permute.xlu0 %5725
          %5729 = vset.pattern.permute.xlu0 0
          %5730 = vperm.xlu0 %5729, %v5588
          %v5731 = vpop.permute.xlu0 %5730
          %5734 = vset.pattern.permute.xlu0 0
          %5735 = vperm.xlu0 %5734, %v5589
          %v5736 = vpop.permute.xlu0 %5735
          %5739 = vset.pattern.permute.xlu0 0
          %5740 = vperm.xlu0 %5739, %v5590
          %v5741 = vpop.permute.xlu0 %5740
          %5744 = vset.pattern.permute.xlu0 0
          %5745 = vperm.xlu0 %5744, %v5591
          %v5746 = vpop.permute.xlu0 %5745
          %5749 = vset.pattern.permute.xlu0 0
          %5750 = vperm.xlu0 %5749, %v5592
          %v5751 = vpop.permute.xlu0 %5750
          %5754 = vset.pattern.permute.xlu0 0
          %5755 = vperm.xlu0 %5754, %v5593
          %v5756 = vpop.permute.xlu0 %5755
          %5759 = vset.pattern.permute.xlu0 0
          %5760 = vperm.xlu0 %5759, %v5594
          %v5761 = vpop.permute.xlu0 %5760
          %5764 = vset.pattern.permute.xlu0 0
          %5765 = vperm.xlu0 %5764, %v5595
          %v5766 = vpop.permute.xlu0 %5765
          %5769 = vset.pattern.permute.xlu0 0
          %5770 = vperm.xlu0 %5769, %v5596
          %v5771 = vpop.permute.xlu0 %5770
          %5774 = vset.pattern.permute.xlu0 0
          %5775 = vperm.xlu0 %5774, %v5597
          %v5776 = vpop.permute.xlu0 %5775
          %5779 = vset.pattern.permute.xlu0 0
          %5780 = vperm.xlu0 %5779, %v5598
          %v5781 = vpop.permute.xlu0 %5780
          %5784 = vset.pattern.permute.xlu0 0
          %5785 = vperm.xlu0 %5784, %v5599
          %v5786 = vpop.permute.xlu0 %5785
          %5789 = vset.pattern.permute.xlu0 0
          %5790 = vperm.xlu0 %5789, %v5600
          %v5791 = vpop.permute.xlu0 %5790
          %5794 = vset.pattern.permute.xlu0 0
          %5795 = vperm.xlu0 %5794, %v5601
          %v5796 = vpop.permute.xlu0 %5795
          %5799 = vset.pattern.permute.xlu0 0
          %5800 = vperm.xlu0 %5799, %v5602
          %v5801 = vpop.permute.xlu0 %5800
          %5804 = vset.pattern.permute.xlu0 0
          %5805 = vperm.xlu0 %5804, %v5603
          %v5806 = vpop.permute.xlu0 %5805
          %5809 = vset.pattern.permute.xlu0 0
          %5810 = vperm.xlu0 %5809, %v5604
          %v5811 = vpop.permute.xlu0 %5810
          %5814 = vset.pattern.permute.xlu0 0
          %5815 = vperm.xlu0 %5814, %v5605
          %v5816 = vpop.permute.xlu0 %5815
          %5819 = vset.pattern.permute.xlu0 0
          %5820 = vperm.xlu0 %5819, %v5606
          %v5821 = vpop.permute.xlu0 %5820
          %5824 = vset.pattern.permute.xlu0 0
          %5825 = vperm.xlu0 %5824, %v5607
          %v5826 = vpop.permute.xlu0 %5825
          %5829 = vset.pattern.permute.xlu0 0
          %5830 = vperm.xlu0 %5829, %v5608
          %v5831 = vpop.permute.xlu0 %5830
          %5834 = vset.pattern.permute.xlu0 0
          %5835 = vperm.xlu0 %5834, %v5609
          %v5836 = vpop.permute.xlu0 %5835
          %5839 = vset.pattern.permute.xlu0 0
          %5840 = vperm.xlu0 %5839, %v5610
          %v5841 = vpop.permute.xlu0 %5840
          %5844 = vset.pattern.permute.xlu0 0
          %5845 = vperm.xlu0 %5844, %v5611
          %v5846 = vpop.permute.xlu0 %5845
          %5849 = vset.pattern.permute.xlu0 0
          %5850 = vperm.xlu0 %5849, %v5612
          %v5851 = vpop.permute.xlu0 %5850
          %5854 = vset.pattern.permute.xlu0 0
          %5855 = vperm.xlu0 %5854, %v5613
          %v5856 = vpop.permute.xlu0 %5855
          %5859 = vset.pattern.permute.xlu0 0
          %5860 = vperm.xlu0 %5859, %v5614
          %v5861 = vpop.permute.xlu0 %5860
          %5864 = vset.pattern.permute.xlu0 0
          %5865 = vperm.xlu0 %5864, %v5615
          %v5866 = vpop.permute.xlu0 %5865
          %5869 = vset.pattern.permute.xlu0 0
          %5870 = vperm.xlu0 %5869, %v5616
          %v5871 = vpop.permute.xlu0 %5870
          %5874 = vset.pattern.permute.xlu0 0
          %5875 = vperm.xlu0 %5874, %v5617
          %v5876 = vpop.permute.xlu0 %5875
          %5879 = vset.pattern.permute.xlu0 0
          %5880 = vperm.xlu0 %5879, %v5618
          %v5881 = vpop.permute.xlu0 %5880
          %5884 = vset.pattern.permute.xlu0 0
          %5885 = vperm.xlu0 %5884, %v5619
          %v5886 = vpop.permute.xlu0 %5885
          %5889 = vset.pattern.permute.xlu0 0
          %5890 = vperm.xlu0 %5889, %v5620
          %v5891 = vpop.permute.xlu0 %5890
          %5894 = vset.pattern.permute.xlu0 0
          %5895 = vperm.xlu0 %5894, %v5621
          %v5896 = vpop.permute.xlu0 %5895
          %5899 = vset.pattern.permute.xlu0 0
          %5900 = vperm.xlu0 %5899, %v5622
          %v5901 = vpop.permute.xlu0 %5900
          %5904 = vset.pattern.permute.xlu0 0
          %5905 = vperm.xlu0 %5904, %v5623
          %v5906 = vpop.permute.xlu0 %5905
          %5909 = vset.pattern.permute.xlu0 0
          %5910 = vperm.xlu0 %5909, %v5624
          %v5911 = vpop.permute.xlu0 %5910
          %5914 = vset.pattern.permute.xlu0 0
          %5915 = vperm.xlu0 %5914, %v5625
          %v5916 = vpop.permute.xlu0 %5915
          %5919 = vset.pattern.permute.xlu0 0
          %5920 = vperm.xlu0 %5919, %v5626
          %v5921 = vpop.permute.xlu0 %5920
          %5924 = vset.pattern.permute.xlu0 0
          %5925 = vperm.xlu0 %5924, %v5627
          %v5926 = vpop.permute.xlu0 %5925
          %5929 = vset.pattern.permute.xlu0 0
          %5930 = vperm.xlu0 %5929, %v5628
          %v5931 = vpop.permute.xlu0 %5930
          %5934 = vset.pattern.permute.xlu0 0
          %5935 = vperm.xlu0 %5934, %v5629
          %v5936 = vpop.permute.xlu0 %5935
          %5939 = vset.pattern.permute.xlu0 0
          %5940 = vperm.xlu0 %5939, %v5630
          %v5941 = vpop.permute.xlu0 %5940
          %5944 = vset.pattern.permute.xlu0 0
          %5945 = vperm.xlu0 %5944, %v5631
          %v5946 = vpop.permute.xlu0 %5945
          %5949 = vset.pattern.permute.xlu0 0
          %5950 = vperm.xlu0 %5949, %v5632
          %v5951 = vpop.permute.xlu0 %5950
          %v5953 = vrcp.pop %v5636
          %v5954 = vmul.f32 %v5505, %v5953
          %v5955 = vrcp.pop %v5641
          %v5956 = vmul.f32 %v5506, %v5955
          %v5957 = vrcp.pop %v5646
          %v5958 = vmul.f32 %v5507, %v5957
          %v5959 = vrcp.pop %v5651
          %v5960 = vmul.f32 %v5508, %v5959
          %v5961 = vrcp.pop %v5656
          %v5962 = vmul.f32 %v5509, %v5961
          %v5963 = vrcp.pop %v5661
          %v5964 = vmul.f32 %v5510, %v5963
          %v5965 = vrcp.pop %v5666
          %v5966 = vmul.f32 %v5511, %v5965
          %v5967 = vrcp.pop %v5671
          %v5968 = vmul.f32 %v5512, %v5967
          %v5969 = vrcp.pop %v5676
          %v5970 = vmul.f32 %v5513, %v5969
          %v5971 = vrcp.pop %v5681
          %v5972 = vmul.f32 %v5514, %v5971
          %v5973 = vrcp.pop %v5686
          %v5974 = vmul.f32 %v5515, %v5973
          %v5975 = vrcp.pop %v5691
          %v5976 = vmul.f32 %v5516, %v5975
          %v5977 = vrcp.pop %v5696
          %v5978 = vmul.f32 %v5517, %v5977
          %v5979 = vrcp.pop %v5701
          %v5980 = vmul.f32 %v5518, %v5979
          %v5981 = vrcp.pop %v5706
          %v5982 = vmul.f32 %v5519, %v5981
          %v5983 = vrcp.pop %v5711
          %v5984 = vmul.f32 %v5520, %v5983
          %v5985 = vrcp.pop %v5716
          %v5986 = vmul.f32 %v5521, %v5985
          %v5987 = vrcp.pop %v5721
          %v5988 = vmul.f32 %v5522, %v5987
          %v5989 = vrcp.pop %v5726
          %v5990 = vmul.f32 %v5523, %v5989
          %v5991 = vrcp.pop %v5731
          %v5992 = vmul.f32 %v5524, %v5991
          %v5993 = vrcp.pop %v5736
          %v5994 = vmul.f32 %v5525, %v5993
          %v5995 = vrcp.pop %v5741
          %v5996 = vmul.f32 %v5526, %v5995
          %v5997 = vrcp.pop %v5746
          %v5998 = vmul.f32 %v5527, %v5997
          %v5999 = vrcp.pop %v5751
          %v6000 = vmul.f32 %v5528, %v5999
          %v6001 = vrcp.pop %v5756
          %v6002 = vmul.f32 %v5529, %v6001
          %v6003 = vrcp.pop %v5761
          %v6004 = vmul.f32 %v5530, %v6003
          %v6005 = vrcp.pop %v5766
          %v6006 = vmul.f32 %v5531, %v6005
          %v6007 = vrcp.pop %v5771
          %v6008 = vmul.f32 %v5532, %v6007
          %v6009 = vrcp.pop %v5776
          %v6010 = vmul.f32 %v5533, %v6009
          %v6011 = vrcp.pop %v5781
          %v6012 = vmul.f32 %v5534, %v6011
          %v6013 = vrcp.pop %v5786
          %v6014 = vmul.f32 %v5535, %v6013
          %v6015 = vrcp.pop %v5791
          %v6016 = vmul.f32 %v5536, %v6015
          %v6017 = vrcp.pop %v5796
          %v6018 = vmul.f32 %v5537, %v6017
          %v6019 = vrcp.pop %v5801
          %v6020 = vmul.f32 %v5538, %v6019
          %v6021 = vrcp.pop %v5806
          %v6022 = vmul.f32 %v5539, %v6021
          %v6023 = vrcp.pop %v5811
          %v6024 = vmul.f32 %v5540, %v6023
          %v6025 = vrcp.pop %v5816
          %v6026 = vmul.f32 %v5541, %v6025
          %v6027 = vrcp.pop %v5821
          %v6028 = vmul.f32 %v5542, %v6027
          %v6029 = vrcp.pop %v5826
          %v6030 = vmul.f32 %v5543, %v6029
          %v6031 = vrcp.pop %v5831
          %v6032 = vmul.f32 %v5544, %v6031
          %v6033 = vrcp.pop %v5836
          %v6034 = vmul.f32 %v5545, %v6033
          %v6035 = vrcp.pop %v5841
          %v6036 = vmul.f32 %v5546, %v6035
          %v6037 = vrcp.pop %v5846
          %v6038 = vmul.f32 %v5547, %v6037
          %v6039 = vrcp.pop %v5851
          %v6040 = vmul.f32 %v5548, %v6039
          %v6041 = vrcp.pop %v5856
          %v6042 = vmul.f32 %v5549, %v6041
          %v6043 = vrcp.pop %v5861
          %v6044 = vmul.f32 %v5550, %v6043
          %v6045 = vrcp.pop %v5866
          %v6046 = vmul.f32 %v5551, %v6045
          %v6047 = vrcp.pop %v5871
          %v6048 = vmul.f32 %v5552, %v6047
          %v6049 = vrcp.pop %v5876
          %v6050 = vmul.f32 %v5553, %v6049
          %v6051 = vrcp.pop %v5881
          %v6052 = vmul.f32 %v5554, %v6051
          %v6053 = vrcp.pop %v5886
          %v6054 = vmul.f32 %v5555, %v6053
          %v6055 = vrcp.pop %v5891
          %v6056 = vmul.f32 %v5556, %v6055
          %v6057 = vrcp.pop %v5896
          %v6058 = vmul.f32 %v5557, %v6057
          %v6059 = vrcp.pop %v5901
          %v6060 = vmul.f32 %v5558, %v6059
          %v6061 = vrcp.pop %v5906
          %v6062 = vmul.f32 %v5559, %v6061
          %v6063 = vrcp.pop %v5911
          %v6064 = vmul.f32 %v5560, %v6063
          %v6065 = vrcp.pop %v5916
          %v6066 = vmul.f32 %v5561, %v6065
          %v6067 = vrcp.pop %v5921
          %v6068 = vmul.f32 %v5562, %v6067
          %v6069 = vrcp.pop %v5926
          %v6070 = vmul.f32 %v5563, %v6069
          %v6071 = vrcp.pop %v5931
          %v6072 = vmul.f32 %v5564, %v6071
          %v6073 = vrcp.pop %v5936
          %v6074 = vmul.f32 %v5565, %v6073
          %v6075 = vrcp.pop %v5941
          %v6076 = vmul.f32 %v5566, %v6075
          %v6077 = vrcp.pop %v5946
          %v6078 = vmul.f32 %v5567, %v6077
          %v6079 = vrcp.pop %v5951
          %v6080 = vmul.f32 %v5568, %v6079
          %v6081 = vmax.f32 %v5954, %v5956
          %v6082 = vmax.f32 %v6081, %v5958
          %v6083 = vmax.f32 %v6082, %v5960
          %v6084 = vmax.f32 %v6083, %v5962
          %v6085 = vmax.f32 %v6084, %v5964
          %v6086 = vmax.f32 %v6085, %v5966
          %v6087 = vmax.f32 %v6086, %v5968
          %v6088 = vrot.slane %v6087, 4
          %v6089 = vmax.f32 %v6087, %v6088
          %v6090 = vrot.slane %v6089, 2
          %v6091 = vmax.f32 %v6089, %v6090
          %v6092 = vrot.slane %v6091, 1
          %v6093 = vmax.f32 %v6091, %v6092
          %v6094 = vmax.f32 %v5970, %v5972
          %v6095 = vmax.f32 %v6094, %v5974
          %v6096 = vmax.f32 %v6095, %v5976
          %v6097 = vmax.f32 %v6096, %v5978
          %v6098 = vmax.f32 %v6097, %v5980
          %v6099 = vmax.f32 %v6098, %v5982
          %v6100 = vmax.f32 %v6099, %v5984
          %v6101 = vrot.slane %v6100, 4
          %v6102 = vmax.f32 %v6100, %v6101
          %v6103 = vrot.slane %v6102, 2
          %v6104 = vmax.f32 %v6102, %v6103
          %v6105 = vrot.slane %v6104, 1
          %v6106 = vmax.f32 %v6104, %v6105
          %v6107 = vmax.f32 %v5986, %v5988
          %v6108 = vmax.f32 %v6107, %v5990
          %v6109 = vmax.f32 %v6108, %v5992
          %v6110 = vmax.f32 %v6109, %v5994
          %v6111 = vmax.f32 %v6110, %v5996
          %v6112 = vmax.f32 %v6111, %v5998
          %v6113 = vmax.f32 %v6112, %v6000
          %v6114 = vrot.slane %v6113, 4
          %v6115 = vmax.f32 %v6113, %v6114
          %v6116 = vrot.slane %v6115, 2
          %v6117 = vmax.f32 %v6115, %v6116
          %v6118 = vrot.slane %v6117, 1
          %v6119 = vmax.f32 %v6117, %v6118
          %v6120 = vmax.f32 %v6002, %v6004
          %v6121 = vmax.f32 %v6120, %v6006
          %v6122 = vmax.f32 %v6121, %v6008
          %v6123 = vmax.f32 %v6122, %v6010
          %v6124 = vmax.f32 %v6123, %v6012
          %v6125 = vmax.f32 %v6124, %v6014
          %v6126 = vmax.f32 %v6125, %v6016
          %v6127 = vrot.slane %v6126, 4
          %v6128 = vmax.f32 %v6126, %v6127
          %v6129 = vrot.slane %v6128, 2
          %v6130 = vmax.f32 %v6128, %v6129
          %v6131 = vrot.slane %v6130, 1
          %v6132 = vmax.f32 %v6130, %v6131
          %v6133 = vmax.f32 %v6018, %v6020
          %v6134 = vmax.f32 %v6133, %v6022
          %v6135 = vmax.f32 %v6134, %v6024
          %v6136 = vmax.f32 %v6135, %v6026
          %v6137 = vmax.f32 %v6136, %v6028
          %v6138 = vmax.f32 %v6137, %v6030
          %v6139 = vmax.f32 %v6138, %v6032
          %v6140 = vrot.slane %v6139, 4
          %v6141 = vmax.f32 %v6139, %v6140
          %v6142 = vrot.slane %v6141, 2
          %v6143 = vmax.f32 %v6141, %v6142
          %v6144 = vrot.slane %v6143, 1
          %v6145 = vmax.f32 %v6143, %v6144
          %v6146 = vmax.f32 %v6034, %v6036
          %v6147 = vmax.f32 %v6146, %v6038
          %v6148 = vmax.f32 %v6147, %v6040
          %v6149 = vmax.f32 %v6148, %v6042
          %v6150 = vmax.f32 %v6149, %v6044
          %v6151 = vmax.f32 %v6150, %v6046
          %v6152 = vmax.f32 %v6151, %v6048
          %v6153 = vrot.slane %v6152, 4
          %v6154 = vmax.f32 %v6152, %v6153
          %v6155 = vrot.slane %v6154, 2
          %v6156 = vmax.f32 %v6154, %v6155
          %v6157 = vrot.slane %v6156, 1
          %v6158 = vmax.f32 %v6156, %v6157
          %v6159 = vmax.f32 %v6050, %v6052
          %v6160 = vmax.f32 %v6159, %v6054
          %v6161 = vmax.f32 %v6160, %v6056
          %v6162 = vmax.f32 %v6161, %v6058
          %v6163 = vmax.f32 %v6162, %v6060
          %v6164 = vmax.f32 %v6163, %v6062
          %v6165 = vmax.f32 %v6164, %v6064
          %v6166 = vrot.slane %v6165, 4
          %v6167 = vmax.f32 %v6165, %v6166
          %v6168 = vrot.slane %v6167, 2
          %v6169 = vmax.f32 %v6167, %v6168
          %v6170 = vrot.slane %v6169, 1
          %v6171 = vmax.f32 %v6169, %v6170
          %v6172 = vmax.f32 %v6066, %v6068
          %v6173 = vmax.f32 %v6172, %v6070
          %v6174 = vmax.f32 %v6173, %v6072
          %v6175 = vmax.f32 %v6174, %v6074
          %v6176 = vmax.f32 %v6175, %v6076
          %v6177 = vmax.f32 %v6176, %v6078
          %v6178 = vmax.f32 %v6177, %v6080
          %v6179 = vrot.slane %v6178, 4
          %v6180 = vmax.f32 %v6178, %v6179
          %v6181 = vrot.slane %v6180, 2
          %v6182 = vmax.f32 %v6180, %v6181
          %v6183 = vrot.slane %v6182, 1
          %v6184 = vmax.f32 %v6182, %v6183
          %vm6193 = vcmask 1041409
          %v6194 = vsel %vm6193, %v6106, %v6093
          %vm6195 = vcmask 1042434
          %v6196 = vsel %vm6195, %v6119, %v6194
          %vm6197 = vcmask 1043459
          %v6198 = vsel %vm6197, %v6132, %v6196
          %vm6199 = vcmask 1044484
          %v6200 = vsel %vm6199, %v6145, %v6198
          %vm6201 = vcmask 1045509
          %v6202 = vsel %vm6201, %v6158, %v6200
          %vm6203 = vcmask 1046534
          %v6204 = vsel %vm6203, %v6171, %v6202
          %vm6205 = vcmask 1047559
          %v6206 = vsel %vm6205, %v6184, %v6204
          %6208 = vst [vmem:[%s381] sm:$0xff] %v6206
        $region68: #{self_attention.1} parent=43 // pred_fallthru
          _
        %s6209 = sand.u32 %s185, 1
        %s6210 = scalar_lea.sflag [#allocation8], %s6209
        %s6211 = sand.u32 %s185, 1
        %s6212 = smul.addr %s6211, 8
        %s6213 = scalar_lea.vmem [#allocation14], %s6212
        // Predicated region
        $region69: #{self_attention.1} parent=43 // pred_check
          %p6214 = pneg %p195
        $region70: #{self_attention.1} parent=43 // pred_check_branch
          %6216 = sbr.rel (%p6214) target = $region72
        $region71: #{self_attention.1} parent=43 // pred_region
          %s6218 = ssub.s32 128, 128
          %6219 = vsyncadd %s6210, %s6218
          %s6220 = smul.addr %s31, 128
          %s6221 = scalar_lea.hbm %s6, %s6220
          %s6223 = sshll.u32 %s6213, 4
          %s6224 = int_to_ptr.vmem [resolvable:$true] %s6223
          %6226 = dma.vmem_to_hbm [thread:$0]  %s6224, 128, %s6221, %s6210
        $region72: #{self_attention.1} parent=43 // pred_fallthru
          _
      $region44: #{self_attention.1} parent=5 // pred_fallthru
        _
      %p6227 = scmp.le.s32.totalorder 2, %s22
      // Predicated region
      $region73: #{self_attention.1} parent=5 // pred_check
        %p6228 = pneg %p6227
      $region74: #{self_attention.1} parent=5 // pred_check_branch
        %6230 = sbr.rel (%p6228) target = $region76
      $region75: #{self_attention.1} parent=5 // pred_region
        %s6231 = ssub.s32 %s22, 2
        // Predicated region
        $region77: #{self_attention.1} parent=75 // pred_check
          %p6232 = pneg %p201
        $region78: #{self_attention.1} parent=75 // pred_check_branch
          %6234 = sbr.rel (%p6232) target = $region80
        $region79: #{self_attention.1} parent=75 // pred_region
          %s6235 = sand.u32 %s186, 1
          %s6236 = scalar_lea.sflag [#allocation8], %s6235
          %s6237 = sand.u32 %s186, 1
          %s6238 = smul.addr %s6237, 8
          %s6239 = scalar_lea.vmem [#allocation14], %s6238
          %6240 = dma.done %s6236, 128
        $region80: #{self_attention.1} parent=75 // pred_fallthru
          _
      $region76: #{self_attention.1} parent=5 // pred_fallthru
        _
    $region6: #{self_attention.1} parent=1 // loop_footer
      %s26 = sadd.s32 1, %s22
    $region7: #{self_attention.1} parent=1 // loop_footer_branch
      %21 = sbr.rel target = $region3
    $region8: #{self_attention.1} parent=1 // loop_exit
      _
    %6241 = vsyncpa [#allocation7], 1
    %s6242 = scalar_lea.sflag [#allocation7], 1
    %6243 = vsyncpa %s6242, 1
    %6244 = vsyncpa [#allocation10], 1
    %s6245 = scalar_lea.sflag [#allocation10], 1
    %6246 = vsyncpa %s6245, 1
    %6247 = vsyncpa [#allocation13], 1
    %6248 = vsyncpa [#allocation8], 1
    %s6249 = scalar_lea.sflag [#allocation8], 1
    %6250 = vsyncpa %s6249, 1

</llo_original>
